<compile_context>
chip_gen: v7x
topology: tpu7x:2x2x1
jax: 0.10.0
libtpu: 0.0.40
codegen_flags: <defaults>
</compile_context>

<pallas_src>
import math

import jax
import jax.numpy as jnp
from jax.experimental import pallas as pl
from jax.experimental.pallas import tpu as pltpu


# --------------------------------------------------------------------------
# Single fused Pallas kernel: embeddings -> encoder layer -> decoder layer.
# --------------------------------------------------------------------------
def fouseformer_forward(params, a, e, h, q, mask):
    """Fouseformer forward. Returns (d, encoder_tokens[:, -1:, :])."""
    B, n_agents, input_dim = a.shape
    n_entities = e.shape[1]
    n_hist, emb = h.shape[1], h.shape[2]
    S_pe = n_agents + n_entities           # rows that receive positional emb
    S_enc = S_pe + n_hist                  # encoder sequence length
    S_dec = 1 + n_entities                 # decoder sequence length
    BSe, BSd = B * S_enc, B * S_dec
    f32 = jnp.float32
    scale = 1.0 / math.sqrt(emb)

    # ---- wrapper-side glue: cheap XLA ops on raw inputs, executed once ----
    ae3 = jnp.concatenate(
        [a, e, jnp.zeros((B, n_hist, input_dim), a.dtype)], axis=1).astype(f32)
    ae2 = ae3.reshape(BSe, input_dim)                 # packed (a | e | 0) rows
    x_col = ae3[:, :, 2:3].reshape(BSe, 1)            # positional (x, y) inputs
    y_col = ae3[:, :, 3:4].reshape(BSe, 1)
    h2 = jnp.concatenate(
        [jnp.zeros((B, S_pe, emb), f32), h.astype(f32)], axis=1).reshape(BSe, emb)
    ep2 = jnp.concatenate(
        [jnp.zeros((B, 1, input_dim), e.dtype), e],
        axis=1).astype(f32).reshape(BSd, input_dim)   # decoder rows (q-slot | e)
    q2 = q.astype(f32).reshape(1, emb)                # repeat_interleave == bcast
    mask_row = mask.astype(f32).reshape(1, BSe)       # 1 = valid key

    # Packed-row bookkeeping (batch id / position id per row), built once.
    ar_e = jnp.arange(BSe, dtype=jnp.int32)
    ar_d = jnp.arange(BSd, dtype=jnp.int32)
    pos_e = (ar_e % S_enc).reshape(BSe, 1)
    bat_e_c = (ar_e // S_enc).reshape(BSe, 1)
    bat_e_r = (ar_e // S_enc).reshape(1, BSe)
    pos_d = (ar_d % S_dec).reshape(BSd, 1)
    bat_d_c = (ar_d // S_dec).reshape(BSd, 1)
    bat_d_r = (ar_d // S_dec).reshape(1, BSd)

    flat_params, treedef = jax.tree_util.tree_flatten(params)
    flat_params = [w.astype(f32) for w in flat_params]
    n_p = len(flat_params)

    def kernel(ae_ref, h_ref, ep_ref, q_ref, mask_ref, x_ref, y_ref,
               pe_ref, bec_ref, ber_ref, pd_ref, bdc_ref, bdr_ref, *rest):
        p_refs = rest[:n_p]
        d_ref, enc_ref = rest[n_p], rest[n_p + 1]
        P = jax.tree_util.tree_unflatten(treedef, [r[...] for r in p_refs])
        NEG = jnp.float32(-1e9)

        def lin(x, w, b):
            return jnp.dot(x, w, preferred_element_type=jnp.float32) + b

        def layer_norm(x, g, b):
            mu = jnp.mean(x, axis=-1, keepdims=True)
            xc = x - mu
            var = jnp.mean(xc * xc, axis=-1, keepdims=True)
            return xc * jax.lax.rsqrt(var + 1e-5) * g + b

        def attend(qh, kh, vh, bias, wo, bo):
            # contracting dims (1, 1): q @ k^T with no in-kernel transpose.
            s = jax.lax.dot_general(qh, kh, (((1,), (1,)), ((), ())),
                                    preferred_element_type=jnp.float32)
            s = s * scale + bias
            s = s - jnp.max(s, axis=-1, keepdims=True)
            pr = jnp.exp(s)
            pr = pr * pl.reciprocal(jnp.sum(pr, axis=-1, keepdims=True),
                                    approx=True)
            o = jnp.dot(pr, vh, preferred_element_type=jnp.float32)
            return lin(o, wo, bo)

        def mha(x_q, x_kv, ap, bias):
            qh = lin(x_q, ap["wq"], ap["bq"])
            kh = lin(x_kv, ap["wk"], ap["bk"])
            vh = lin(x_kv, ap["wv"], ap["bv"])
            return attend(qh, kh, vh, bias, ap["wo"], ap["bo"])

        def ffn(x, lp):
            hid = jnp.maximum(lin(x, lp["ff1_w"], lp["ff1_b"]), 0.0)
            return lin(hid, lp["ff2_w"], lp["ff2_b"])

        # ---------------- token embeddings -> encoder input ----------------
        ae = ae_ref[...]
        pe = pe_ref[...]
        agent_tok = lin(ae, P["agent_w"], P["agent_b"])
        entity_tok = lin(ae, P["entity_w"], P["entity_b"])
        # Linear(2, emb) positional branch as two VPU FMAs (no MXU pass).
        pos_emb = x_ref[...] * P["pos_wx"] + y_ref[...] * P["pos_wy"] + P["pos_b"]
        tok = jnp.where(pe == 0, agent_tok, entity_tok) + pos_emb
        enc_in = jnp.where(pe < S_pe, tok, h_ref[...])

        # ---------------- encoder layer (single-head, post-LN) -------------
        encp = P["encoder"]
        same_e = bec_ref[...] == ber_ref[...]     # block-diag (per-batch) mask
        valid_e = mask_ref[...] > 0.0             # key-padding mask (1 = valid)
        enc_bias = jnp.where(jnp.logical_and(same_e, valid_e), 0.0, NEG)

        a1 = mha(enc_in, enc_in, encp["attn"], enc_bias)
        x1 = layer_norm(enc_in + a1, encp["ln1_g"], encp["ln1_b"])
        enc_out = layer_norm(x1 + ffn(x1, encp), encp["ln2_g"], encp["ln2_b"])
        enc_ref[...] = enc_out

        # ---------------- decoder tokens ------------------------------------
        decp = P["decoder"]
        enemy_tok = lin(ep_ref[...], P["enemy_w"], P["enemy_b"])
        pd = pd_ref[...]
        dec_in = jnp.where(pd == 0, q_ref[...], enemy_tok)

        # ---------------- decoder layer (self-attn, cross-attn, FFN) --------
        same_d = bdc_ref[...] == bdr_ref[...]
        dec_bias = jnp.where(same_d, 0.0, NEG)
        sa = mha(dec_in, dec_in, decp["self_attn"], dec_bias)
        y1 = layer_norm(dec_in + sa, decp["ln1_g"], decp["ln1_b"])

        # TODO(synk): the reference passes no memory key-padding mask to the
        # decoder, so padded encoder keys stay visible to cross-attention.
        cross_bias = jnp.where(bdc_ref[...] == ber_ref[...], 0.0, NEG)
        ca = mha(y1, enc_out, decp["cross_attn"], cross_bias)
        y2 = layer_norm(y1 + ca, decp["ln2_g"], decp["ln2_b"])

        d_out = layer_norm(y2 + ffn(y2, decp), decp["ln3_g"], decp["ln3_b"])
        d_ref[...] = d_out

    d2, enc2 = pl.pallas_call(
        kernel,
        out_shape=(jax.ShapeDtypeStruct((BSd, emb), f32),
                   jax.ShapeDtypeStruct((BSe, emb), f32)),
        compiler_params=pltpu.CompilerParams(vmem_limit_bytes=32 * 1024 * 1024),
    )(ae2, h2, ep2, q2, mask_row, x_col, y_col,
      pos_e, bat_e_c, bat_e_r, pos_d, bat_d_c, bat_d_r,
      *flat_params)

    d = d2.reshape(B, S_dec, emb)
    enc_tokens = enc2.reshape(B, S_enc, emb)
    return d, enc_tokens[:, -1:, :]


# --------------------------------------------------------------------------
# Deterministic parameter init (PyTorch nn.Linear-style uniform)
# --------------------------------------------------------------------------
def init_params(key, input_dim, emb, ff):
    keys = iter(jax.random.split(key, 96))

    def lin_p(fan_in, fan_out):
        bound = 1.0 / math.sqrt(fan_in)
        w = jax.random.uniform(next(keys), (fan_in, fan_out), jnp.float32, -bound, bound)
        b = jax.random.uniform(next(keys), (1, fan_out), jnp.float32, -bound, bound)
        return w, b

    def attn_p():
        p = {}
        for n in ("q", "k", "v", "o"):
            p["w" + n], p["b" + n] = lin_p(emb, emb)
        return p

    def ones(n):
        return jnp.ones((1, n), jnp.float32)

    def zeros(n):
        return jnp.zeros((1, n), jnp.float32)

    params = {}
    params["agent_w"], params["agent_b"] = lin_p(input_dim, emb)
    params["entity_w"], params["entity_b"] = lin_p(input_dim, emb)
    params["enemy_w"], params["enemy_b"] = lin_p(input_dim, emb)
    pos_w, pos_b = lin_p(2, emb)
    params["pos_wx"] = pos_w[0:1, :]   # Linear(2, emb) rows split -> VPU FMAs
    params["pos_wy"] = pos_w[1:2, :]
    params["pos_b"] = pos_b

    enc = {"attn": attn_p()}
    enc["ff1_w"], enc["ff1_b"] = lin_p(emb, ff)
    enc["ff2_w"], enc["ff2_b"] = lin_p(ff, emb)
    enc["ln1_g"], enc["ln1_b"] = ones(emb), zeros(emb)
    enc["ln2_g"], enc["ln2_b"] = ones(emb), zeros(emb)
    params["encoder"] = enc

    dec = {"self_attn": attn_p(), "cross_attn": attn_p()}
    dec["ff1_w"], dec["ff1_b"] = lin_p(emb, ff)
    dec["ff2_w"], dec["ff2_b"] = lin_p(ff, emb)
    dec["ln1_g"], dec["ln1_b"] = ones(emb), zeros(emb)
    dec["ln2_g"], dec["ln2_b"] = ones(emb), zeros(emb)
    dec["ln3_g"], dec["ln3_b"] = ones(emb), zeros(emb)
    params["decoder"] = dec
    return params


# --------------------------------------------------------------------------
if __name__ == "__main__":
    key = jax.random.PRNGKey(0)
    B, n_agents, n_entities, n_hist = 2, 3, 4, 2
    input_dim, emb, ff = 8, 32, 64

    ks = jax.random.split(key, 6)
    a = jax.random.normal(ks[0], (B, n_agents, input_dim), jnp.float32)
    e = jax.random.normal(ks[1], (B, n_entities, input_dim), jnp.float32)
    h = jax.random.normal(ks[2], (B, n_hist, emb), jnp.float32)
    q = jax.random.normal(ks[3], (1, 1, emb), jnp.float32)

    s_enc = n_agents + n_entities + n_hist
    mask = jnp.ones((B, s_enc), jnp.float32).at[1, -1].set(0.0)  # 1 = valid key

    params = init_params(ks[4], input_dim, emb, ff)

    fwd = jax.jit(fouseformer_forward)
    d, enc_last = fwd(params, a, e, h, q, mask)
    d, enc_last = jax.block_until_ready((d, enc_last))

    assert d.shape == (B, 1 + n_entities, emb), d.shape
    assert enc_last.shape == (B, 1, emb), enc_last.shape
    assert bool(jnp.all(jnp.isfinite(d))) and bool(jnp.all(jnp.isfinite(enc_last)))
    print("KERNEL_OK")
</pallas_src>

<mosaic_0001>
module attributes {stable_mosaic.version = 11 : i64} {
  func.func @kernel(%arg0: memref<18x8xf32, #tpu.memory_space<vmem>>, %arg1: memref<18x32xf32, #tpu.memory_space<vmem>>, %arg2: memref<10x8xf32, #tpu.memory_space<vmem>>, %arg3: memref<1x32xf32, #tpu.memory_space<vmem>>, %arg4: memref<1x18xf32, #tpu.memory_space<vmem>>, %arg5: memref<18x1xf32, #tpu.memory_space<vmem>>, %arg6: memref<18x1xf32, #tpu.memory_space<vmem>>, %arg7: memref<18x1xi32, #tpu.memory_space<vmem>>, %arg8: memref<18x1xi32, #tpu.memory_space<vmem>>, %arg9: memref<1x18xi32, #tpu.memory_space<vmem>>, %arg10: memref<10x1xi32, #tpu.memory_space<vmem>>, %arg11: memref<10x1xi32, #tpu.memory_space<vmem>>, %arg12: memref<1x10xi32, #tpu.memory_space<vmem>>, %arg13: memref<1x32xf32, #tpu.memory_space<vmem>>, %arg14: memref<8x32xf32, #tpu.memory_space<vmem>>, %arg15: memref<1x32xf32, #tpu.memory_space<vmem>>, %arg16: memref<1x32xf32, #tpu.memory_space<vmem>>, %arg17: memref<1x32xf32, #tpu.memory_space<vmem>>, %arg18: memref<1x32xf32, #tpu.memory_space<vmem>>, %arg19: memref<32x32xf32, #tpu.memory_space<vmem>>, %arg20: memref<32x32xf32, #tpu.memory_space<vmem>>, %arg21: memref<32x32xf32, #tpu.memory_space<vmem>>, %arg22: memref<32x32xf32, #tpu.memory_space<vmem>>, %arg23: memref<1x64xf32, #tpu.memory_space<vmem>>, %arg24: memref<32x64xf32, #tpu.memory_space<vmem>>, %arg25: memref<1x32xf32, #tpu.memory_space<vmem>>, %arg26: memref<64x32xf32, #tpu.memory_space<vmem>>, %arg27: memref<1x32xf32, #tpu.memory_space<vmem>>, %arg28: memref<1x32xf32, #tpu.memory_space<vmem>>, %arg29: memref<1x32xf32, #tpu.memory_space<vmem>>, %arg30: memref<1x32xf32, #tpu.memory_space<vmem>>, %arg31: memref<1x32xf32, #tpu.memory_space<vmem>>, %arg32: memref<1x32xf32, #tpu.memory_space<vmem>>, %arg33: memref<1x32xf32, #tpu.memory_space<vmem>>, %arg34: memref<1x32xf32, #tpu.memory_space<vmem>>, %arg35: memref<1x32xf32, #tpu.memory_space<vmem>>, %arg36: memref<1x32xf32, #tpu.memory_space<vmem>>, %arg37: memref<32x32xf32, #tpu.memory_space<vmem>>, %arg38: memref<32x32xf32, #tpu.memory_space<vmem>>, %arg39: memref<32x32xf32, #tpu.memory_space<vmem>>, %arg40: memref<32x32xf32, #tpu.memory_space<vmem>>, %arg41: memref<1x32xf32, #tpu.memory_space<vmem>>, %arg42: memref<1x32xf32, #tpu.memory_space<vmem>>, %arg43: memref<1x32xf32, #tpu.memory_space<vmem>>, %arg44: memref<1x32xf32, #tpu.memory_space<vmem>>, %arg45: memref<32x32xf32, #tpu.memory_space<vmem>>, %arg46: memref<32x32xf32, #tpu.memory_space<vmem>>, %arg47: memref<32x32xf32, #tpu.memory_space<vmem>>, %arg48: memref<32x32xf32, #tpu.memory_space<vmem>>, %arg49: memref<1x64xf32, #tpu.memory_space<vmem>>, %arg50: memref<32x64xf32, #tpu.memory_space<vmem>>, %arg51: memref<1x32xf32, #tpu.memory_space<vmem>>, %arg52: memref<64x32xf32, #tpu.memory_space<vmem>>, %arg53: memref<1x32xf32, #tpu.memory_space<vmem>>, %arg54: memref<1x32xf32, #tpu.memory_space<vmem>>, %arg55: memref<1x32xf32, #tpu.memory_space<vmem>>, %arg56: memref<1x32xf32, #tpu.memory_space<vmem>>, %arg57: memref<1x32xf32, #tpu.memory_space<vmem>>, %arg58: memref<8x32xf32, #tpu.memory_space<vmem>>, %arg59: memref<1x32xf32, #tpu.memory_space<vmem>>, %arg60: memref<8x32xf32, #tpu.memory_space<vmem>>, %arg61: memref<1x32xf32, #tpu.memory_space<vmem>>, %arg62: memref<1x32xf32, #tpu.memory_space<vmem>>, %arg63: memref<1x32xf32, #tpu.memory_space<vmem>>, %arg64: memref<10x32xf32, #tpu.memory_space<vmem>>, %arg65: memref<18x32xf32, #tpu.memory_space<vmem>>) attributes {dimension_semantics = [], scalar_prefetch = 0 : i64, scratch_operands = 0 : i64, tpu.core_type = #tpu.core_type<tc>} {
    %c0 = arith.constant 0 : index
    %c0_0 = arith.constant 0 : index
    %0 = vector.load %arg13[%c0, %c0_0] : memref<1x32xf32, #tpu.memory_space<vmem>>, vector<1x32xf32>
    %c0_1 = arith.constant 0 : index
    %c0_2 = arith.constant 0 : index
    %1 = vector.load %arg14[%c0_1, %c0_2] : memref<8x32xf32, #tpu.memory_space<vmem>>, vector<8x32xf32>
    %c0_3 = arith.constant 0 : index
    %c0_4 = arith.constant 0 : index
    %2 = vector.load %arg15[%c0_3, %c0_4] : memref<1x32xf32, #tpu.memory_space<vmem>>, vector<1x32xf32>
    %c0_5 = arith.constant 0 : index
    %c0_6 = arith.constant 0 : index
    %3 = vector.load %arg16[%c0_5, %c0_6] : memref<1x32xf32, #tpu.memory_space<vmem>>, vector<1x32xf32>
    %c0_7 = arith.constant 0 : index
    %c0_8 = arith.constant 0 : index
    %4 = vector.load %arg17[%c0_7, %c0_8] : memref<1x32xf32, #tpu.memory_space<vmem>>, vector<1x32xf32>
    %c0_9 = arith.constant 0 : index
    %c0_10 = arith.constant 0 : index
    %5 = vector.load %arg18[%c0_9, %c0_10] : memref<1x32xf32, #tpu.memory_space<vmem>>, vector<1x32xf32>
    %c0_11 = arith.constant 0 : index
    %c0_12 = arith.constant 0 : index
    %6 = vector.load %arg19[%c0_11, %c0_12] : memref<32x32xf32, #tpu.memory_space<vmem>>, vector<32x32xf32>
    %c0_13 = arith.constant 0 : index
    %c0_14 = arith.constant 0 : index
    %7 = vector.load %arg20[%c0_13, %c0_14] : memref<32x32xf32, #tpu.memory_space<vmem>>, vector<32x32xf32>
    %c0_15 = arith.constant 0 : index
    %c0_16 = arith.constant 0 : index
    %8 = vector.load %arg21[%c0_15, %c0_16] : memref<32x32xf32, #tpu.memory_space<vmem>>, vector<32x32xf32>
    %c0_17 = arith.constant 0 : index
    %c0_18 = arith.constant 0 : index
    %9 = vector.load %arg22[%c0_17, %c0_18] : memref<32x32xf32, #tpu.memory_space<vmem>>, vector<32x32xf32>
    %c0_19 = arith.constant 0 : index
    %c0_20 = arith.constant 0 : index
    %10 = vector.load %arg23[%c0_19, %c0_20] : memref<1x64xf32, #tpu.memory_space<vmem>>, vector<1x64xf32>
    %c0_21 = arith.constant 0 : index
    %c0_22 = arith.constant 0 : index
    %11 = vector.load %arg24[%c0_21, %c0_22] : memref<32x64xf32, #tpu.memory_space<vmem>>, vector<32x64xf32>
    %c0_23 = arith.constant 0 : index
    %c0_24 = arith.constant 0 : index
    %12 = vector.load %arg25[%c0_23, %c0_24] : memref<1x32xf32, #tpu.memory_space<vmem>>, vector<1x32xf32>
    %c0_25 = arith.constant 0 : index
    %c0_26 = arith.constant 0 : index
    %13 = vector.load %arg26[%c0_25, %c0_26] : memref<64x32xf32, #tpu.memory_space<vmem>>, vector<64x32xf32>
    %c0_27 = arith.constant 0 : index
    %c0_28 = arith.constant 0 : index
    %14 = vector.load %arg27[%c0_27, %c0_28] : memref<1x32xf32, #tpu.memory_space<vmem>>, vector<1x32xf32>
    %c0_29 = arith.constant 0 : index
    %c0_30 = arith.constant 0 : index
    %15 = vector.load %arg28[%c0_29, %c0_30] : memref<1x32xf32, #tpu.memory_space<vmem>>, vector<1x32xf32>
    %c0_31 = arith.constant 0 : index
    %c0_32 = arith.constant 0 : index
    %16 = vector.load %arg29[%c0_31, %c0_32] : memref<1x32xf32, #tpu.memory_space<vmem>>, vector<1x32xf32>
    %c0_33 = arith.constant 0 : index
    %c0_34 = arith.constant 0 : index
    %17 = vector.load %arg30[%c0_33, %c0_34] : memref<1x32xf32, #tpu.memory_space<vmem>>, vector<1x32xf32>
    %c0_35 = arith.constant 0 : index
    %c0_36 = arith.constant 0 : index
    %18 = vector.load %arg31[%c0_35, %c0_36] : memref<1x32xf32, #tpu.memory_space<vmem>>, vector<1x32xf32>
    %c0_37 = arith.constant 0 : index
    %c0_38 = arith.constant 0 : index
    %19 = vector.load %arg32[%c0_37, %c0_38] : memref<1x32xf32, #tpu.memory_space<vmem>>, vector<1x32xf32>
    %c0_39 = arith.constant 0 : index
    %c0_40 = arith.constant 0 : index
    %20 = vector.load %arg33[%c0_39, %c0_40] : memref<1x32xf32, #tpu.memory_space<vmem>>, vector<1x32xf32>
    %c0_41 = arith.constant 0 : index
    %c0_42 = arith.constant 0 : index
    %21 = vector.load %arg34[%c0_41, %c0_42] : memref<1x32xf32, #tpu.memory_space<vmem>>, vector<1x32xf32>
    %c0_43 = arith.constant 0 : index
    %c0_44 = arith.constant 0 : index
    %22 = vector.load %arg35[%c0_43, %c0_44] : memref<1x32xf32, #tpu.memory_space<vmem>>, vector<1x32xf32>
    %c0_45 = arith.constant 0 : index
    %c0_46 = arith.constant 0 : index
    %23 = vector.load %arg36[%c0_45, %c0_46] : memref<1x32xf32, #tpu.memory_space<vmem>>, vector<1x32xf32>
    %c0_47 = arith.constant 0 : index
    %c0_48 = arith.constant 0 : index
    %24 = vector.load %arg37[%c0_47, %c0_48] : memref<32x32xf32, #tpu.memory_space<vmem>>, vector<32x32xf32>
    %c0_49 = arith.constant 0 : index
    %c0_50 = arith.constant 0 : index
    %25 = vector.load %arg38[%c0_49, %c0_50] : memref<32x32xf32, #tpu.memory_space<vmem>>, vector<32x32xf32>
    %c0_51 = arith.constant 0 : index
    %c0_52 = arith.constant 0 : index
    %26 = vector.load %arg39[%c0_51, %c0_52] : memref<32x32xf32, #tpu.memory_space<vmem>>, vector<32x32xf32>
    %c0_53 = arith.constant 0 : index
    %c0_54 = arith.constant 0 : index
    %27 = vector.load %arg40[%c0_53, %c0_54] : memref<32x32xf32, #tpu.memory_space<vmem>>, vector<32x32xf32>
    %c0_55 = arith.constant 0 : index
    %c0_56 = arith.constant 0 : index
    %28 = vector.load %arg41[%c0_55, %c0_56] : memref<1x32xf32, #tpu.memory_space<vmem>>, vector<1x32xf32>
    %c0_57 = arith.constant 0 : index
    %c0_58 = arith.constant 0 : index
    %29 = vector.load %arg42[%c0_57, %c0_58] : memref<1x32xf32, #tpu.memory_space<vmem>>, vector<1x32xf32>
    %c0_59 = arith.constant 0 : index
    %c0_60 = arith.constant 0 : index
    %30 = vector.load %arg43[%c0_59, %c0_60] : memref<1x32xf32, #tpu.memory_space<vmem>>, vector<1x32xf32>
    %c0_61 = arith.constant 0 : index
    %c0_62 = arith.constant 0 : index
    %31 = vector.load %arg44[%c0_61, %c0_62] : memref<1x32xf32, #tpu.memory_space<vmem>>, vector<1x32xf32>
    %c0_63 = arith.constant 0 : index
    %c0_64 = arith.constant 0 : index
    %32 = vector.load %arg45[%c0_63, %c0_64] : memref<32x32xf32, #tpu.memory_space<vmem>>, vector<32x32xf32>
    %c0_65 = arith.constant 0 : index
    %c0_66 = arith.constant 0 : index
    %33 = vector.load %arg46[%c0_65, %c0_66] : memref<32x32xf32, #tpu.memory_space<vmem>>, vector<32x32xf32>
    %c0_67 = arith.constant 0 : index
    %c0_68 = arith.constant 0 : index
    %34 = vector.load %arg47[%c0_67, %c0_68] : memref<32x32xf32, #tpu.memory_space<vmem>>, vector<32x32xf32>
    %c0_69 = arith.constant 0 : index
    %c0_70 = arith.constant 0 : index
    %35 = vector.load %arg48[%c0_69, %c0_70] : memref<32x32xf32, #tpu.memory_space<vmem>>, vector<32x32xf32>
    %c0_71 = arith.constant 0 : index
    %c0_72 = arith.constant 0 : index
    %36 = vector.load %arg49[%c0_71, %c0_72] : memref<1x64xf32, #tpu.memory_space<vmem>>, vector<1x64xf32>
    %c0_73 = arith.constant 0 : index
    %c0_74 = arith.constant 0 : index
    %37 = vector.load %arg50[%c0_73, %c0_74] : memref<32x64xf32, #tpu.memory_space<vmem>>, vector<32x64xf32>
    %c0_75 = arith.constant 0 : index
    %c0_76 = arith.constant 0 : index
    %38 = vector.load %arg51[%c0_75, %c0_76] : memref<1x32xf32, #tpu.memory_space<vmem>>, vector<1x32xf32>
    %c0_77 = arith.constant 0 : index
    %c0_78 = arith.constant 0 : index
    %39 = vector.load %arg52[%c0_77, %c0_78] : memref<64x32xf32, #tpu.memory_space<vmem>>, vector<64x32xf32>
    %c0_79 = arith.constant 0 : index
    %c0_80 = arith.constant 0 : index
    %40 = vector.load %arg53[%c0_79, %c0_80] : memref<1x32xf32, #tpu.memory_space<vmem>>, vector<1x32xf32>
    %c0_81 = arith.constant 0 : index
    %c0_82 = arith.constant 0 : index
    %41 = vector.load %arg54[%c0_81, %c0_82] : memref<1x32xf32, #tpu.memory_space<vmem>>, vector<1x32xf32>
    %c0_83 = arith.constant 0 : index
    %c0_84 = arith.constant 0 : index
    %42 = vector.load %arg55[%c0_83, %c0_84] : memref<1x32xf32, #tpu.memory_space<vmem>>, vector<1x32xf32>
    %c0_85 = arith.constant 0 : index
    %c0_86 = arith.constant 0 : index
    %43 = vector.load %arg56[%c0_85, %c0_86] : memref<1x32xf32, #tpu.memory_space<vmem>>, vector<1x32xf32>
    %c0_87 = arith.constant 0 : index
    %c0_88 = arith.constant 0 : index
    %44 = vector.load %arg57[%c0_87, %c0_88] : memref<1x32xf32, #tpu.memory_space<vmem>>, vector<1x32xf32>
    %c0_89 = arith.constant 0 : index
    %c0_90 = arith.constant 0 : index
    %45 = vector.load %arg58[%c0_89, %c0_90] : memref<8x32xf32, #tpu.memory_space<vmem>>, vector<8x32xf32>
    %c0_91 = arith.constant 0 : index
    %c0_92 = arith.constant 0 : index
    %46 = vector.load %arg59[%c0_91, %c0_92] : memref<1x32xf32, #tpu.memory_space<vmem>>, vector<1x32xf32>
    %c0_93 = arith.constant 0 : index
    %c0_94 = arith.constant 0 : index
    %47 = vector.load %arg60[%c0_93, %c0_94] : memref<8x32xf32, #tpu.memory_space<vmem>>, vector<8x32xf32>
    %c0_95 = arith.constant 0 : index
    %c0_96 = arith.constant 0 : index
    %48 = vector.load %arg61[%c0_95, %c0_96] : memref<1x32xf32, #tpu.memory_space<vmem>>, vector<1x32xf32>
    %c0_97 = arith.constant 0 : index
    %c0_98 = arith.constant 0 : index
    %49 = vector.load %arg62[%c0_97, %c0_98] : memref<1x32xf32, #tpu.memory_space<vmem>>, vector<1x32xf32>
    %c0_99 = arith.constant 0 : index
    %c0_100 = arith.constant 0 : index
    %50 = vector.load %arg63[%c0_99, %c0_100] : memref<1x32xf32, #tpu.memory_space<vmem>>, vector<1x32xf32>
    %c0_101 = arith.constant 0 : index
    %c0_102 = arith.constant 0 : index
    %51 = vector.load %arg0[%c0_101, %c0_102] : memref<18x8xf32, #tpu.memory_space<vmem>>, vector<18x8xf32>
    %c0_103 = arith.constant 0 : index
    %c0_104 = arith.constant 0 : index
    %52 = vector.load %arg7[%c0_103, %c0_104] : memref<18x1xi32, #tpu.memory_space<vmem>>, vector<18x1xi32>
    %cst = arith.constant dense<0.000000e+00> : vector<18x32xf32>
    %53 = tpu.matmul %51, %1, %cst {dimension_numbers = #tpu.dot_dimension_numbers<[1], [0], [0], [1], [0, 0, 1, 1], [], []>} : vector<18x8xf32>, vector<8x32xf32>, vector<18x32xf32> -> vector<18x32xf32>
    %54 = vector.broadcast %0 : vector<1x32xf32> to vector<18x32xf32>
    %55 = arith.addf %53, %54 : vector<18x32xf32>
    %cst_105 = arith.constant dense<0.000000e+00> : vector<18x32xf32>
    %56 = tpu.matmul %51, %47, %cst_105 {dimension_numbers = #tpu.dot_dimension_numbers<[1], [0], [0], [1], [0, 0, 1, 1], [], []>} : vector<18x8xf32>, vector<8x32xf32>, vector<18x32xf32> -> vector<18x32xf32>
    %57 = vector.broadcast %46 : vector<1x32xf32> to vector<18x32xf32>
    %58 = arith.addf %56, %57 : vector<18x32xf32>
    %c0_106 = arith.constant 0 : index
    %c0_107 = arith.constant 0 : index
    %59 = vector.load %arg5[%c0_106, %c0_107] : memref<18x1xf32, #tpu.memory_space<vmem>>, vector<18x1xf32>
    %60 = vector.broadcast %59 : vector<18x1xf32> to vector<18x32xf32>
    %61 = vector.broadcast %49 : vector<1x32xf32> to vector<18x32xf32>
    %62 = arith.mulf %60, %61 : vector<18x32xf32>
    %c0_108 = arith.constant 0 : index
    %c0_109 = arith.constant 0 : index
    %63 = vector.load %arg6[%c0_108, %c0_109] : memref<18x1xf32, #tpu.memory_space<vmem>>, vector<18x1xf32>
    %64 = vector.broadcast %63 : vector<18x1xf32> to vector<18x32xf32>
    %65 = vector.broadcast %50 : vector<1x32xf32> to vector<18x32xf32>
    %66 = arith.mulf %64, %65 : vector<18x32xf32>
    %67 = arith.addf %62, %66 : vector<18x32xf32>
    %68 = vector.broadcast %48 : vector<1x32xf32> to vector<18x32xf32>
    %69 = arith.addf %67, %68 : vector<18x32xf32>
    %c0_i32 = arith.constant 0 : i32
    %70 = vector.broadcast %c0_i32 : i32 to vector<18x1xi32>
    %71 = arith.cmpi eq, %52, %70 : vector<18x1xi32>
    %72 = vector.shape_cast %71 : vector<18x1xi1> to vector<18x1xi1>
    %73 = vector.broadcast %72 : vector<18x1xi1> to vector<18x32xi1>
    %74 = arith.select %73, %55, %58 : vector<18x32xi1>, vector<18x32xf32>
    %75 = arith.addf %74, %69 : vector<18x32xf32>
    %c7_i32 = arith.constant 7 : i32
    %76 = vector.broadcast %c7_i32 : i32 to vector<18x1xi32>
    %77 = arith.cmpi slt, %52, %76 : vector<18x1xi32>
    %c0_110 = arith.constant 0 : index
    %c0_111 = arith.constant 0 : index
    %78 = vector.load %arg1[%c0_110, %c0_111] : memref<18x32xf32, #tpu.memory_space<vmem>>, vector<18x32xf32>
    %79 = vector.shape_cast %77 : vector<18x1xi1> to vector<18x1xi1>
    %80 = vector.broadcast %79 : vector<18x1xi1> to vector<18x32xi1>
    %81 = arith.select %80, %75, %78 : vector<18x32xi1>, vector<18x32xf32>
    %c0_112 = arith.constant 0 : index
    %c0_113 = arith.constant 0 : index
    %82 = vector.load %arg8[%c0_112, %c0_113] : memref<18x1xi32, #tpu.memory_space<vmem>>, vector<18x1xi32>
    %c0_114 = arith.constant 0 : index
    %c0_115 = arith.constant 0 : index
    %83 = vector.load %arg9[%c0_114, %c0_115] : memref<1x18xi32, #tpu.memory_space<vmem>>, vector<1x18xi32>
    %84 = vector.broadcast %82 : vector<18x1xi32> to vector<18x18xi32>
    %85 = vector.broadcast %83 : vector<1x18xi32> to vector<18x18xi32>
    %86 = arith.cmpi eq, %84, %85 : vector<18x18xi32>
    %c0_116 = arith.constant 0 : index
    %c0_117 = arith.constant 0 : index
    %87 = vector.load %arg4[%c0_116, %c0_117] : memref<1x18xf32, #tpu.memory_space<vmem>>, vector<1x18xf32>
    %cst_118 = arith.constant 0.000000e+00 : f32
    %88 = vector.broadcast %cst_118 : f32 to vector<1x18xf32>
    %89 = arith.cmpf ogt, %87, %88 : vector<1x18xf32>
    %90 = vector.broadcast %89 : vector<1x18xi1> to vector<18x18xi1>
    %91 = arith.andi %86, %90 : vector<18x18xi1>
    %cst_119 = arith.constant 0.000000e+00 : f32
    %cst_120 = arith.constant -1.000000e+09 : f32
    %92 = vector.broadcast %cst_119 : f32 to vector<18x18xf32>
    %93 = vector.broadcast %cst_120 : f32 to vector<18x18xf32>
    %94 = arith.select %91, %92, %93 : vector<18x18xi1>, vector<18x18xf32>
    %cst_121 = arith.constant dense<0.000000e+00> : vector<18x32xf32>
    %95 = tpu.matmul %81, %34, %cst_121 {dimension_numbers = #tpu.dot_dimension_numbers<[1], [0], [0], [1], [0, 0, 1, 1], [], []>} : vector<18x32xf32>, vector<32x32xf32>, vector<18x32xf32> -> vector<18x32xf32>
    %96 = vector.broadcast %30 : vector<1x32xf32> to vector<18x32xf32>
    %97 = arith.addf %95, %96 : vector<18x32xf32>
    %cst_122 = arith.constant dense<0.000000e+00> : vector<18x32xf32>
    %98 = tpu.matmul %81, %32, %cst_122 {dimension_numbers = #tpu.dot_dimension_numbers<[1], [0], [0], [1], [0, 0, 1, 1], [], []>} : vector<18x32xf32>, vector<32x32xf32>, vector<18x32xf32> -> vector<18x32xf32>
    %99 = vector.broadcast %28 : vector<1x32xf32> to vector<18x32xf32>
    %100 = arith.addf %98, %99 : vector<18x32xf32>
    %cst_123 = arith.constant dense<0.000000e+00> : vector<18x32xf32>
    %101 = tpu.matmul %81, %35, %cst_123 {dimension_numbers = #tpu.dot_dimension_numbers<[1], [0], [0], [1], [0, 0, 1, 1], [], []>} : vector<18x32xf32>, vector<32x32xf32>, vector<18x32xf32> -> vector<18x32xf32>
    %102 = vector.broadcast %31 : vector<1x32xf32> to vector<18x32xf32>
    %103 = arith.addf %101, %102 : vector<18x32xf32>
    %cst_124 = arith.constant dense<0.000000e+00> : vector<18x18xf32>
    %104 = tpu.matmul %97, %100, %cst_124 {dimension_numbers = #tpu.dot_dimension_numbers<[1], [1], [0], [0], [0, 0, 1, 0], [], []>} : vector<18x32xf32>, vector<18x32xf32>, vector<18x18xf32> -> vector<18x18xf32>
    %cst_125 = arith.constant 0.176776692 : f32
    %105 = vector.broadcast %cst_125 : f32 to vector<18x18xf32>
    %106 = arith.mulf %104, %105 : vector<18x18xf32>
    %107 = arith.addf %106, %94 : vector<18x18xf32>
    %cst_126 = arith.constant dense<0xFF800000> : vector<18xf32>
    %108 = vector.multi_reduction <maximumf>, %107, %cst_126 [1] : vector<18x18xf32> to vector<18xf32>
    %109 = vector.shape_cast %108 : vector<18xf32> to vector<18x1xf32>
    %110 = vector.broadcast %109 : vector<18x1xf32> to vector<18x18xf32>
    %111 = arith.subf %107, %110 : vector<18x18xf32>
    %112 = math.exp %111 : vector<18x18xf32>
    %cst_127 = arith.constant dense<0.000000e+00> : vector<18xf32>
    %113 = vector.multi_reduction <add>, %112, %cst_127 [1] : vector<18x18xf32> to vector<18xf32>
    %114 = vector.shape_cast %113 : vector<18xf32> to vector<18x1xf32>
    %115 = tpu.reciprocal %114 {approx = true} : vector<18x1xf32> -> vector<18x1xf32>
    %116 = vector.broadcast %115 : vector<18x1xf32> to vector<18x18xf32>
    %117 = arith.mulf %112, %116 : vector<18x18xf32>
    %cst_128 = arith.constant dense<0.000000e+00> : vector<18x32xf32>
    %118 = tpu.matmul %117, %103, %cst_128 {dimension_numbers = #tpu.dot_dimension_numbers<[1], [0], [0], [1], [0, 0, 1, 1], [], []>} : vector<18x18xf32>, vector<18x32xf32>, vector<18x32xf32> -> vector<18x32xf32>
    %cst_129 = arith.constant dense<0.000000e+00> : vector<18x32xf32>
    %119 = tpu.matmul %118, %33, %cst_129 {dimension_numbers = #tpu.dot_dimension_numbers<[1], [0], [0], [1], [0, 0, 1, 1], [], []>} : vector<18x32xf32>, vector<32x32xf32>, vector<18x32xf32> -> vector<18x32xf32>
    %120 = vector.broadcast %29 : vector<1x32xf32> to vector<18x32xf32>
    %121 = arith.addf %119, %120 : vector<18x32xf32>
    %122 = arith.addf %81, %121 : vector<18x32xf32>
    %cst_130 = arith.constant dense<0.000000e+00> : vector<18xf32>
    %123 = vector.multi_reduction <add>, %122, %cst_130 [1] : vector<18x32xf32> to vector<18xf32>
    %124 = vector.shape_cast %123 : vector<18xf32> to vector<18x1xf32>
    %cst_131 = arith.constant 3.200000e+01 : f32
    %125 = vector.broadcast %cst_131 : f32 to vector<18x1xf32>
    %126 = arith.divf %124, %125 : vector<18x1xf32>
    %127 = vector.broadcast %126 : vector<18x1xf32> to vector<18x32xf32>
    %128 = arith.subf %122, %127 : vector<18x32xf32>
    %129 = arith.mulf %128, %128 : vector<18x32xf32>
    %cst_132 = arith.constant dense<0.000000e+00> : vector<18xf32>
    %130 = vector.multi_reduction <add>, %129, %cst_132 [1] : vector<18x32xf32> to vector<18xf32>
    %131 = vector.shape_cast %130 : vector<18xf32> to vector<18x1xf32>
    %cst_133 = arith.constant 3.200000e+01 : f32
    %132 = vector.broadcast %cst_133 : f32 to vector<18x1xf32>
    %133 = arith.divf %131, %132 : vector<18x1xf32>
    %cst_134 = arith.constant 9.99999974E-6 : f32
    %134 = vector.broadcast %cst_134 : f32 to vector<18x1xf32>
    %135 = arith.addf %133, %134 : vector<18x1xf32>
    %136 = math.rsqrt %135 : vector<18x1xf32>
    %137 = vector.broadcast %136 : vector<18x1xf32> to vector<18x32xf32>
    %138 = arith.mulf %128, %137 : vector<18x32xf32>
    %139 = vector.broadcast %41 : vector<1x32xf32> to vector<18x32xf32>
    %140 = arith.mulf %138, %139 : vector<18x32xf32>
    %141 = vector.broadcast %40 : vector<1x32xf32> to vector<18x32xf32>
    %142 = arith.addf %140, %141 : vector<18x32xf32>
    %cst_135 = arith.constant dense<0.000000e+00> : vector<18x64xf32>
    %143 = tpu.matmul %142, %37, %cst_135 {dimension_numbers = #tpu.dot_dimension_numbers<[1], [0], [0], [1], [0, 0, 1, 1], [], []>} : vector<18x32xf32>, vector<32x64xf32>, vector<18x64xf32> -> vector<18x64xf32>
    %144 = vector.broadcast %36 : vector<1x64xf32> to vector<18x64xf32>
    %145 = arith.addf %143, %144 : vector<18x64xf32>
    %cst_136 = arith.constant 0.000000e+00 : f32
    %146 = vector.broadcast %cst_136 : f32 to vector<18x64xf32>
    %147 = arith.maximumf %145, %146 : vector<18x64xf32>
    %cst_137 = arith.constant dense<0.000000e+00> : vector<18x32xf32>
    %148 = tpu.matmul %147, %39, %cst_137 {dimension_numbers = #tpu.dot_dimension_numbers<[1], [0], [0], [1], [0, 0, 1, 1], [], []>} : vector<18x64xf32>, vector<64x32xf32>, vector<18x32xf32> -> vector<18x32xf32>
    %149 = vector.broadcast %38 : vector<1x32xf32> to vector<18x32xf32>
    %150 = arith.addf %148, %149 : vector<18x32xf32>
    %151 = arith.addf %142, %150 : vector<18x32xf32>
    %cst_138 = arith.constant dense<0.000000e+00> : vector<18xf32>
    %152 = vector.multi_reduction <add>, %151, %cst_138 [1] : vector<18x32xf32> to vector<18xf32>
    %153 = vector.shape_cast %152 : vector<18xf32> to vector<18x1xf32>
    %cst_139 = arith.constant 3.200000e+01 : f32
    %154 = vector.broadcast %cst_139 : f32 to vector<18x1xf32>
    %155 = arith.divf %153, %154 : vector<18x1xf32>
    %156 = vector.broadcast %155 : vector<18x1xf32> to vector<18x32xf32>
    %157 = arith.subf %151, %156 : vector<18x32xf32>
    %158 = arith.mulf %157, %157 : vector<18x32xf32>
    %cst_140 = arith.constant dense<0.000000e+00> : vector<18xf32>
    %159 = vector.multi_reduction <add>, %158, %cst_140 [1] : vector<18x32xf32> to vector<18xf32>
    %160 = vector.shape_cast %159 : vector<18xf32> to vector<18x1xf32>
    %cst_141 = arith.constant 3.200000e+01 : f32
    %161 = vector.broadcast %cst_141 : f32 to vector<18x1xf32>
    %162 = arith.divf %160, %161 : vector<18x1xf32>
    %cst_142 = arith.constant 9.99999974E-6 : f32
    %163 = vector.broadcast %cst_142 : f32 to vector<18x1xf32>
    %164 = arith.addf %162, %163 : vector<18x1xf32>
    %165 = math.rsqrt %164 : vector<18x1xf32>
    %166 = vector.broadcast %165 : vector<18x1xf32> to vector<18x32xf32>
    %167 = arith.mulf %157, %166 : vector<18x32xf32>
    %168 = vector.broadcast %43 : vector<1x32xf32> to vector<18x32xf32>
    %169 = arith.mulf %167, %168 : vector<18x32xf32>
    %170 = vector.broadcast %42 : vector<1x32xf32> to vector<18x32xf32>
    %171 = arith.addf %169, %170 : vector<18x32xf32>
    %c0_143 = arith.constant 0 : index
    %c0_144 = arith.constant 0 : index
    %172 = vector.load %arg65[%c0_143, %c0_144] : memref<18x32xf32, #tpu.memory_space<vmem>>, vector<18x32xf32>
    tpu.vector_store %arg65[%c0_143, %c0_144], %171 {strides = array<i32>} : memref<18x32xf32, #tpu.memory_space<vmem>>, vector<18x32xf32>,
    %c0_145 = arith.constant 0 : index
    %c0_146 = arith.constant 0 : index
    %173 = vector.load %arg2[%c0_145, %c0_146] : memref<10x8xf32, #tpu.memory_space<vmem>>, vector<10x8xf32>
    %cst_147 = arith.constant dense<0.000000e+00> : vector<10x32xf32>
    %174 = tpu.matmul %173, %45, %cst_147 {dimension_numbers = #tpu.dot_dimension_numbers<[1], [0], [0], [1], [0, 0, 1, 1], [], []>} : vector<10x8xf32>, vector<8x32xf32>, vector<10x32xf32> -> vector<10x32xf32>
    %175 = vector.broadcast %44 : vector<1x32xf32> to vector<10x32xf32>
    %176 = arith.addf %174, %175 : vector<10x32xf32>
    %c0_148 = arith.constant 0 : index
    %c0_149 = arith.constant 0 : index
    %177 = vector.load %arg10[%c0_148, %c0_149] : memref<10x1xi32, #tpu.memory_space<vmem>>, vector<10x1xi32>
    %c0_i32_150 = arith.constant 0 : i32
    %178 = vector.broadcast %c0_i32_150 : i32 to vector<10x1xi32>
    %179 = arith.cmpi eq, %177, %178 : vector<10x1xi32>
    %c0_151 = arith.constant 0 : index
    %c0_152 = arith.constant 0 : index
    %180 = vector.load %arg3[%c0_151, %c0_152] : memref<1x32xf32, #tpu.memory_space<vmem>>, vector<1x32xf32>
    %181 = vector.shape_cast %179 : vector<10x1xi1> to vector<10x1xi1>
    %182 = vector.broadcast %181 : vector<10x1xi1> to vector<10x32xi1>
    %183 = vector.shape_cast %180 : vector<1x32xf32> to vector<1x32xf32>
    %184 = vector.broadcast %183 : vector<1x32xf32> to vector<10x32xf32>
    %185 = arith.select %182, %184, %176 : vector<10x32xi1>, vector<10x32xf32>
    %c0_153 = arith.constant 0 : index
    %c0_154 = arith.constant 0 : index
    %186 = vector.load %arg11[%c0_153, %c0_154] : memref<10x1xi32, #tpu.memory_space<vmem>>, vector<10x1xi32>
    %c0_155 = arith.constant 0 : index
    %c0_156 = arith.constant 0 : index
    %187 = vector.load %arg12[%c0_155, %c0_156] : memref<1x10xi32, #tpu.memory_space<vmem>>, vector<1x10xi32>
    %188 = vector.broadcast %186 : vector<10x1xi32> to vector<10x10xi32>
    %189 = vector.broadcast %187 : vector<1x10xi32> to vector<10x10xi32>
    %190 = arith.cmpi eq, %188, %189 : vector<10x10xi32>
    %cst_157 = arith.constant 0.000000e+00 : f32
    %cst_158 = arith.constant -1.000000e+09 : f32
    %191 = vector.broadcast %cst_157 : f32 to vector<10x10xf32>
    %192 = vector.broadcast %cst_158 : f32 to vector<10x10xf32>
    %193 = arith.select %190, %191, %192 : vector<10x10xi1>, vector<10x10xf32>
    %cst_159 = arith.constant dense<0.000000e+00> : vector<10x32xf32>
    %194 = tpu.matmul %185, %26, %cst_159 {dimension_numbers = #tpu.dot_dimension_numbers<[1], [0], [0], [1], [0, 0, 1, 1], [], []>} : vector<10x32xf32>, vector<32x32xf32>, vector<10x32xf32> -> vector<10x32xf32>
    %195 = vector.broadcast %22 : vector<1x32xf32> to vector<10x32xf32>
    %196 = arith.addf %194, %195 : vector<10x32xf32>
    %cst_160 = arith.constant dense<0.000000e+00> : vector<10x32xf32>
    %197 = tpu.matmul %185, %24, %cst_160 {dimension_numbers = #tpu.dot_dimension_numbers<[1], [0], [0], [1], [0, 0, 1, 1], [], []>} : vector<10x32xf32>, vector<32x32xf32>, vector<10x32xf32> -> vector<10x32xf32>
    %198 = vector.broadcast %20 : vector<1x32xf32> to vector<10x32xf32>
    %199 = arith.addf %197, %198 : vector<10x32xf32>
    %cst_161 = arith.constant dense<0.000000e+00> : vector<10x32xf32>
    %200 = tpu.matmul %185, %27, %cst_161 {dimension_numbers = #tpu.dot_dimension_numbers<[1], [0], [0], [1], [0, 0, 1, 1], [], []>} : vector<10x32xf32>, vector<32x32xf32>, vector<10x32xf32> -> vector<10x32xf32>
    %201 = vector.broadcast %23 : vector<1x32xf32> to vector<10x32xf32>
    %202 = arith.addf %200, %201 : vector<10x32xf32>
    %cst_162 = arith.constant dense<0.000000e+00> : vector<10x10xf32>
    %203 = tpu.matmul %196, %199, %cst_162 {dimension_numbers = #tpu.dot_dimension_numbers<[1], [1], [0], [0], [0, 0, 1, 0], [], []>} : vector<10x32xf32>, vector<10x32xf32>, vector<10x10xf32> -> vector<10x10xf32>
    %cst_163 = arith.constant 0.176776692 : f32
    %204 = vector.broadcast %cst_163 : f32 to vector<10x10xf32>
    %205 = arith.mulf %203, %204 : vector<10x10xf32>
    %206 = arith.addf %205, %193 : vector<10x10xf32>
    %cst_164 = arith.constant dense<0xFF800000> : vector<10xf32>
    %207 = vector.multi_reduction <maximumf>, %206, %cst_164 [1] : vector<10x10xf32> to vector<10xf32>
    %208 = vector.shape_cast %207 : vector<10xf32> to vector<10x1xf32>
    %209 = vector.broadcast %208 : vector<10x1xf32> to vector<10x10xf32>
    %210 = arith.subf %206, %209 : vector<10x10xf32>
    %211 = math.exp %210 : vector<10x10xf32>
    %cst_165 = arith.constant dense<0.000000e+00> : vector<10xf32>
    %212 = vector.multi_reduction <add>, %211, %cst_165 [1] : vector<10x10xf32> to vector<10xf32>
    %213 = vector.shape_cast %212 : vector<10xf32> to vector<10x1xf32>
    %214 = tpu.reciprocal %213 {approx = true} : vector<10x1xf32> -> vector<10x1xf32>
    %215 = vector.broadcast %214 : vector<10x1xf32> to vector<10x10xf32>
    %216 = arith.mulf %211, %215 : vector<10x10xf32>
    %cst_166 = arith.constant dense<0.000000e+00> : vector<10x32xf32>
    %217 = tpu.matmul %216, %202, %cst_166 {dimension_numbers = #tpu.dot_dimension_numbers<[1], [0], [0], [1], [0, 0, 1, 1], [], []>} : vector<10x10xf32>, vector<10x32xf32>, vector<10x32xf32> -> vector<10x32xf32>
    %cst_167 = arith.constant dense<0.000000e+00> : vector<10x32xf32>
    %218 = tpu.matmul %217, %25, %cst_167 {dimension_numbers = #tpu.dot_dimension_numbers<[1], [0], [0], [1], [0, 0, 1, 1], [], []>} : vector<10x32xf32>, vector<32x32xf32>, vector<10x32xf32> -> vector<10x32xf32>
    %219 = vector.broadcast %21 : vector<1x32xf32> to vector<10x32xf32>
    %220 = arith.addf %218, %219 : vector<10x32xf32>
    %221 = arith.addf %185, %220 : vector<10x32xf32>
    %cst_168 = arith.constant dense<0.000000e+00> : vector<10xf32>
    %222 = vector.multi_reduction <add>, %221, %cst_168 [1] : vector<10x32xf32> to vector<10xf32>
    %223 = vector.shape_cast %222 : vector<10xf32> to vector<10x1xf32>
    %cst_169 = arith.constant 3.200000e+01 : f32
    %224 = vector.broadcast %cst_169 : f32 to vector<10x1xf32>
    %225 = arith.divf %223, %224 : vector<10x1xf32>
    %226 = vector.broadcast %225 : vector<10x1xf32> to vector<10x32xf32>
    %227 = arith.subf %221, %226 : vector<10x32xf32>
    %228 = arith.mulf %227, %227 : vector<10x32xf32>
    %cst_170 = arith.constant dense<0.000000e+00> : vector<10xf32>
    %229 = vector.multi_reduction <add>, %228, %cst_170 [1] : vector<10x32xf32> to vector<10xf32>
    %230 = vector.shape_cast %229 : vector<10xf32> to vector<10x1xf32>
    %cst_171 = arith.constant 3.200000e+01 : f32
    %231 = vector.broadcast %cst_171 : f32 to vector<10x1xf32>
    %232 = arith.divf %230, %231 : vector<10x1xf32>
    %cst_172 = arith.constant 9.99999974E-6 : f32
    %233 = vector.broadcast %cst_172 : f32 to vector<10x1xf32>
    %234 = arith.addf %232, %233 : vector<10x1xf32>
    %235 = math.rsqrt %234 : vector<10x1xf32>
    %236 = vector.broadcast %235 : vector<10x1xf32> to vector<10x32xf32>
    %237 = arith.mulf %227, %236 : vector<10x32xf32>
    %238 = vector.broadcast %15 : vector<1x32xf32> to vector<10x32xf32>
    %239 = arith.mulf %237, %238 : vector<10x32xf32>
    %240 = vector.broadcast %14 : vector<1x32xf32> to vector<10x32xf32>
    %241 = arith.addf %239, %240 : vector<10x32xf32>
    %c0_173 = arith.constant 0 : index
    %c0_174 = arith.constant 0 : index
    %242 = vector.load %arg11[%c0_173, %c0_174] : memref<10x1xi32, #tpu.memory_space<vmem>>, vector<10x1xi32>
    %c0_175 = arith.constant 0 : index
    %c0_176 = arith.constant 0 : index
    %243 = vector.load %arg9[%c0_175, %c0_176] : memref<1x18xi32, #tpu.memory_space<vmem>>, vector<1x18xi32>
    %244 = vector.broadcast %242 : vector<10x1xi32> to vector<10x18xi32>
    %245 = vector.broadcast %243 : vector<1x18xi32> to vector<10x18xi32>
    %246 = arith.cmpi eq, %244, %245 : vector<10x18xi32>
    %cst_177 = arith.constant 0.000000e+00 : f32
    %cst_178 = arith.constant -1.000000e+09 : f32
    %247 = vector.broadcast %cst_177 : f32 to vector<10x18xf32>
    %248 = vector.broadcast %cst_178 : f32 to vector<10x18xf32>
    %249 = arith.select %246, %247, %248 : vector<10x18xi1>, vector<10x18xf32>
    %cst_179 = arith.constant dense<0.000000e+00> : vector<10x32xf32>
    %250 = tpu.matmul %241, %8, %cst_179 {dimension_numbers = #tpu.dot_dimension_numbers<[1], [0], [0], [1], [0, 0, 1, 1], [], []>} : vector<10x32xf32>, vector<32x32xf32>, vector<10x32xf32> -> vector<10x32xf32>
    %251 = vector.broadcast %4 : vector<1x32xf32> to vector<10x32xf32>
    %252 = arith.addf %250, %251 : vector<10x32xf32>
    %cst_180 = arith.constant dense<0.000000e+00> : vector<18x32xf32>
    %253 = tpu.matmul %171, %6, %cst_180 {dimension_numbers = #tpu.dot_dimension_numbers<[1], [0], [0], [1], [0, 0, 1, 1], [], []>} : vector<18x32xf32>, vector<32x32xf32>, vector<18x32xf32> -> vector<18x32xf32>
    %254 = vector.broadcast %2 : vector<1x32xf32> to vector<18x32xf32>
    %255 = arith.addf %253, %254 : vector<18x32xf32>
    %cst_181 = arith.constant dense<0.000000e+00> : vector<18x32xf32>
    %256 = tpu.matmul %171, %9, %cst_181 {dimension_numbers = #tpu.dot_dimension_numbers<[1], [0], [0], [1], [0, 0, 1, 1], [], []>} : vector<18x32xf32>, vector<32x32xf32>, vector<18x32xf32> -> vector<18x32xf32>
    %257 = vector.broadcast %5 : vector<1x32xf32> to vector<18x32xf32>
    %258 = arith.addf %256, %257 : vector<18x32xf32>
    %cst_182 = arith.constant dense<0.000000e+00> : vector<10x18xf32>
    %259 = tpu.matmul %252, %255, %cst_182 {dimension_numbers = #tpu.dot_dimension_numbers<[1], [1], [0], [0], [0, 0, 1, 0], [], []>} : vector<10x32xf32>, vector<18x32xf32>, vector<10x18xf32> -> vector<10x18xf32>
    %cst_183 = arith.constant 0.176776692 : f32
    %260 = vector.broadcast %cst_183 : f32 to vector<10x18xf32>
    %261 = arith.mulf %259, %260 : vector<10x18xf32>
    %262 = arith.addf %261, %249 : vector<10x18xf32>
    %cst_184 = arith.constant dense<0xFF800000> : vector<10xf32>
    %263 = vector.multi_reduction <maximumf>, %262, %cst_184 [1] : vector<10x18xf32> to vector<10xf32>
    %264 = vector.shape_cast %263 : vector<10xf32> to vector<10x1xf32>
    %265 = vector.broadcast %264 : vector<10x1xf32> to vector<10x18xf32>
    %266 = arith.subf %262, %265 : vector<10x18xf32>
    %267 = math.exp %266 : vector<10x18xf32>
    %cst_185 = arith.constant dense<0.000000e+00> : vector<10xf32>
    %268 = vector.multi_reduction <add>, %267, %cst_185 [1] : vector<10x18xf32> to vector<10xf32>
    %269 = vector.shape_cast %268 : vector<10xf32> to vector<10x1xf32>
    %270 = tpu.reciprocal %269 {approx = true} : vector<10x1xf32> -> vector<10x1xf32>
    %271 = vector.broadcast %270 : vector<10x1xf32> to vector<10x18xf32>
    %272 = arith.mulf %267, %271 : vector<10x18xf32>
    %cst_186 = arith.constant dense<0.000000e+00> : vector<10x32xf32>
    %273 = tpu.matmul %272, %258, %cst_186 {dimension_numbers = #tpu.dot_dimension_numbers<[1], [0], [0], [1], [0, 0, 1, 1], [], []>} : vector<10x18xf32>, vector<18x32xf32>, vector<10x32xf32> -> vector<10x32xf32>
    %cst_187 = arith.constant dense<0.000000e+00> : vector<10x32xf32>
    %274 = tpu.matmul %273, %7, %cst_187 {dimension_numbers = #tpu.dot_dimension_numbers<[1], [0], [0], [1], [0, 0, 1, 1], [], []>} : vector<10x32xf32>, vector<32x32xf32>, vector<10x32xf32> -> vector<10x32xf32>
    %275 = vector.broadcast %3 : vector<1x32xf32> to vector<10x32xf32>
    %276 = arith.addf %274, %275 : vector<10x32xf32>
    %277 = arith.addf %241, %276 : vector<10x32xf32>
    %cst_188 = arith.constant dense<0.000000e+00> : vector<10xf32>
    %278 = vector.multi_reduction <add>, %277, %cst_188 [1] : vector<10x32xf32> to vector<10xf32>
    %279 = vector.shape_cast %278 : vector<10xf32> to vector<10x1xf32>
    %cst_189 = arith.constant 3.200000e+01 : f32
    %280 = vector.broadcast %cst_189 : f32 to vector<10x1xf32>
    %281 = arith.divf %279, %280 : vector<10x1xf32>
    %282 = vector.broadcast %281 : vector<10x1xf32> to vector<10x32xf32>
    %283 = arith.subf %277, %282 : vector<10x32xf32>
    %284 = arith.mulf %283, %283 : vector<10x32xf32>
    %cst_190 = arith.constant dense<0.000000e+00> : vector<10xf32>
    %285 = vector.multi_reduction <add>, %284, %cst_190 [1] : vector<10x32xf32> to vector<10xf32>
    %286 = vector.shape_cast %285 : vector<10xf32> to vector<10x1xf32>
    %cst_191 = arith.constant 3.200000e+01 : f32
    %287 = vector.broadcast %cst_191 : f32 to vector<10x1xf32>
    %288 = arith.divf %286, %287 : vector<10x1xf32>
    %cst_192 = arith.constant 9.99999974E-6 : f32
    %289 = vector.broadcast %cst_192 : f32 to vector<10x1xf32>
    %290 = arith.addf %288, %289 : vector<10x1xf32>
    %291 = math.rsqrt %290 : vector<10x1xf32>
    %292 = vector.broadcast %291 : vector<10x1xf32> to vector<10x32xf32>
    %293 = arith.mulf %283, %292 : vector<10x32xf32>
    %294 = vector.broadcast %17 : vector<1x32xf32> to vector<10x32xf32>
    %295 = arith.mulf %293, %294 : vector<10x32xf32>
    %296 = vector.broadcast %16 : vector<1x32xf32> to vector<10x32xf32>
    %297 = arith.addf %295, %296 : vector<10x32xf32>
    %cst_193 = arith.constant dense<0.000000e+00> : vector<10x64xf32>
    %298 = tpu.matmul %297, %11, %cst_193 {dimension_numbers = #tpu.dot_dimension_numbers<[1], [0], [0], [1], [0, 0, 1, 1], [], []>} : vector<10x32xf32>, vector<32x64xf32>, vector<10x64xf32> -> vector<10x64xf32>
    %299 = vector.broadcast %10 : vector<1x64xf32> to vector<10x64xf32>
    %300 = arith.addf %298, %299 : vector<10x64xf32>
    %cst_194 = arith.constant 0.000000e+00 : f32
    %301 = vector.broadcast %cst_194 : f32 to vector<10x64xf32>
    %302 = arith.maximumf %300, %301 : vector<10x64xf32>
    %cst_195 = arith.constant dense<0.000000e+00> : vector<10x32xf32>
    %303 = tpu.matmul %302, %13, %cst_195 {dimension_numbers = #tpu.dot_dimension_numbers<[1], [0], [0], [1], [0, 0, 1, 1], [], []>} : vector<10x64xf32>, vector<64x32xf32>, vector<10x32xf32> -> vector<10x32xf32>
    %304 = vector.broadcast %12 : vector<1x32xf32> to vector<10x32xf32>
    %305 = arith.addf %303, %304 : vector<10x32xf32>
    %306 = arith.addf %297, %305 : vector<10x32xf32>
    %cst_196 = arith.constant dense<0.000000e+00> : vector<10xf32>
    %307 = vector.multi_reduction <add>, %306, %cst_196 [1] : vector<10x32xf32> to vector<10xf32>
    %308 = vector.shape_cast %307 : vector<10xf32> to vector<10x1xf32>
    %cst_197 = arith.constant 3.200000e+01 : f32
    %309 = vector.broadcast %cst_197 : f32 to vector<10x1xf32>
    %310 = arith.divf %308, %309 : vector<10x1xf32>
    %311 = vector.broadcast %310 : vector<10x1xf32> to vector<10x32xf32>
    %312 = arith.subf %306, %311 : vector<10x32xf32>
    %313 = arith.mulf %312, %312 : vector<10x32xf32>
    %cst_198 = arith.constant dense<0.000000e+00> : vector<10xf32>
    %314 = vector.multi_reduction <add>, %313, %cst_198 [1] : vector<10x32xf32> to vector<10xf32>
    %315 = vector.shape_cast %314 : vector<10xf32> to vector<10x1xf32>
    %cst_199 = arith.constant 3.200000e+01 : f32
    %316 = vector.broadcast %cst_199 : f32 to vector<10x1xf32>
    %317 = arith.divf %315, %316 : vector<10x1xf32>
    %cst_200 = arith.constant 9.99999974E-6 : f32
    %318 = vector.broadcast %cst_200 : f32 to vector<10x1xf32>
    %319 = arith.addf %317, %318 : vector<10x1xf32>
    %320 = math.rsqrt %319 : vector<10x1xf32>
    %321 = vector.broadcast %320 : vector<10x1xf32> to vector<10x32xf32>
    %322 = arith.mulf %312, %321 : vector<10x32xf32>
    %323 = vector.broadcast %19 : vector<1x32xf32> to vector<10x32xf32>
    %324 = arith.mulf %322, %323 : vector<10x32xf32>
    %325 = vector.broadcast %18 : vector<1x32xf32> to vector<10x32xf32>
    %326 = arith.addf %324, %325 : vector<10x32xf32>
    %c0_201 = arith.constant 0 : index
    %c0_202 = arith.constant 0 : index
    %327 = vector.load %arg64[%c0_201, %c0_202] : memref<10x32xf32, #tpu.memory_space<vmem>>, vector<10x32xf32>
    tpu.vector_store %arg64[%c0_201, %c0_202], %326 {strides = array<i32>} : memref<10x32xf32, #tpu.memory_space<vmem>>, vector<10x32xf32>,
    return
  }
}

</mosaic_0001>

<llo_original>
// kernel: fouseformer_forward.1
$region0: #{fouseformer_forward.1}
  #allocation0 [shape = 'u32[]', space=smem, size = 0x4, offset = 0x4, fixed_abs, tag = 'smem constant byte address 0x4 - core index']
  #allocation1 [shape = 'u32[144,128]{1,0:T(1,128)}', space=vmem, size = 0x12000, scoped, tag = 'internal scratch']
  %s0 = inlined_call_operand.smem [shape: u32[66], index: -1, kind: input, shape index: {}]
  %s1 = sld [smem:[%s0]]
  %s2 = scalar_lea.smem %s0, 1
  %s3 = sld [smem:[%s2]]
  %s4 = scalar_lea.smem %s0, 2
  %s5 = sld [smem:[%s4]]
  %s6 = scalar_lea.smem %s0, 3
  %s7 = sld [smem:[%s6]]
  %s8 = scalar_lea.smem %s0, 4
  %s9 = sld [smem:[%s8]]
  %s10 = scalar_lea.smem %s0, 5
  %s11 = sld [smem:[%s10]]
  %s12 = scalar_lea.smem %s0, 6
  %s13 = sld [smem:[%s12]]
  %s14 = scalar_lea.smem %s0, 7
  %s15 = sld [smem:[%s14]]
  %s16 = scalar_lea.smem %s0, 8
  %s17 = sld [smem:[%s16]]
  %s18 = scalar_lea.smem %s0, 9
  %s19 = sld [smem:[%s18]]
  %s20 = scalar_lea.smem %s0, 10
  %s21 = sld [smem:[%s20]]
  %s22 = scalar_lea.smem %s0, 11
  %s23 = sld [smem:[%s22]]
  %s24 = scalar_lea.smem %s0, 12
  %s25 = sld [smem:[%s24]]
  %s26 = scalar_lea.smem %s0, 13
  %s27 = sld [smem:[%s26]]
  %s28 = scalar_lea.smem %s0, 14
  %s29 = sld [smem:[%s28]]
  %s30 = scalar_lea.smem %s0, 15
  %s31 = sld [smem:[%s30]]
  %s32 = scalar_lea.smem %s0, 16
  %s33 = sld [smem:[%s32]]
  %s34 = scalar_lea.smem %s0, 17
  %s35 = sld [smem:[%s34]]
  %s36 = scalar_lea.smem %s0, 18
  %s37 = sld [smem:[%s36]]
  %s38 = scalar_lea.smem %s0, 19
  %s39 = sld [smem:[%s38]]
  %s40 = scalar_lea.smem %s0, 20
  %s41 = sld [smem:[%s40]]
  %s42 = scalar_lea.smem %s0, 21
  %s43 = sld [smem:[%s42]]
  %s44 = scalar_lea.smem %s0, 22
  %s45 = sld [smem:[%s44]]
  %s46 = scalar_lea.smem %s0, 23
  %s47 = sld [smem:[%s46]]
  %s48 = scalar_lea.smem %s0, 24
  %s49 = sld [smem:[%s48]]
  %s50 = scalar_lea.smem %s0, 25
  %s51 = sld [smem:[%s50]]
  %s52 = scalar_lea.smem %s0, 26
  %s53 = sld [smem:[%s52]]
  %s54 = scalar_lea.smem %s0, 27
  %s55 = sld [smem:[%s54]]
  %s56 = scalar_lea.smem %s0, 28
  %s57 = sld [smem:[%s56]]
  %s58 = scalar_lea.smem %s0, 29
  %s59 = sld [smem:[%s58]]
  %s60 = scalar_lea.smem %s0, 30
  %s61 = sld [smem:[%s60]]
  %s62 = scalar_lea.smem %s0, 31
  %s63 = sld [smem:[%s62]]
  %s64 = scalar_lea.smem %s0, 32
  %s65 = sld [smem:[%s64]]
  %s66 = scalar_lea.smem %s0, 33
  %s67 = sld [smem:[%s66]]
  %s68 = scalar_lea.smem %s0, 34
  %s69 = sld [smem:[%s68]]
  %s70 = scalar_lea.smem %s0, 35
  %s71 = sld [smem:[%s70]]
  %s72 = scalar_lea.smem %s0, 36
  %s73 = sld [smem:[%s72]]
  %s74 = scalar_lea.smem %s0, 37
  %s75 = sld [smem:[%s74]]
  %s76 = scalar_lea.smem %s0, 38
  %s77 = sld [smem:[%s76]]
  %s78 = scalar_lea.smem %s0, 39
  %s79 = sld [smem:[%s78]]
  %s80 = scalar_lea.smem %s0, 40
  %s81 = sld [smem:[%s80]]
  %s82 = scalar_lea.smem %s0, 41
  %s83 = sld [smem:[%s82]]
  %s84 = scalar_lea.smem %s0, 42
  %s85 = sld [smem:[%s84]]
  %s86 = scalar_lea.smem %s0, 43
  %s87 = sld [smem:[%s86]]
  %s88 = scalar_lea.smem %s0, 44
  %s89 = sld [smem:[%s88]]
  %s90 = scalar_lea.smem %s0, 45
  %s91 = sld [smem:[%s90]]
  %s92 = scalar_lea.smem %s0, 46
  %s93 = sld [smem:[%s92]]
  %s94 = scalar_lea.smem %s0, 47
  %s95 = sld [smem:[%s94]]
  %s96 = scalar_lea.smem %s0, 48
  %s97 = sld [smem:[%s96]]
  %s98 = scalar_lea.smem %s0, 49
  %s99 = sld [smem:[%s98]]
  %s100 = scalar_lea.smem %s0, 50
  %s101 = sld [smem:[%s100]]
  %s102 = scalar_lea.smem %s0, 51
  %s103 = sld [smem:[%s102]]
  %s104 = scalar_lea.smem %s0, 52
  %s105 = sld [smem:[%s104]]
  %s106 = scalar_lea.smem %s0, 53
  %s107 = sld [smem:[%s106]]
  %s108 = scalar_lea.smem %s0, 54
  %s109 = sld [smem:[%s108]]
  %s110 = scalar_lea.smem %s0, 55
  %s111 = sld [smem:[%s110]]
  %s112 = scalar_lea.smem %s0, 56
  %s113 = sld [smem:[%s112]]
  %s114 = scalar_lea.smem %s0, 57
  %s115 = sld [smem:[%s114]]
  %s116 = scalar_lea.smem %s0, 58
  %s117 = sld [smem:[%s116]]
  %s118 = scalar_lea.smem %s0, 59
  %s119 = sld [smem:[%s118]]
  %s120 = scalar_lea.smem %s0, 60
  %s121 = sld [smem:[%s120]]
  %s122 = scalar_lea.smem %s0, 61
  %s123 = sld [smem:[%s122]]
  %s124 = scalar_lea.smem %s0, 62
  %s125 = sld [smem:[%s124]]
  %s126 = scalar_lea.smem %s0, 63
  %s127 = sld [smem:[%s126]]
  %s128 = scalar_lea.smem %s0, 64
  %s129 = sld [smem:[%s128]]
  %s130 = scalar_lea.smem %s0, 65
  %s131 = sld [smem:[%s130]]
  %132 = xla_tuple %s129, %s131
  %s133 = sld [smem:[#allocation0]]
  $region326: #{fouseformer_forward.1} parent=0
    _
  %s135 = ssub.s32 1, %s133
  %s136 = scalar_select 0, %s135, %s133
  $region1: #{fouseformer_forward.1} parent=0
    #allocation2 [shape = 'u8[512]{0}', space=vmem, size = 0x400, scoped, tag = 'input window, operand 43, single buffered']
    #allocation3 [shape = 's32[1]{0}', space=sflag, size = 0x4, scoped, tag = 'scoped memory for fouseformer_forward.1']
    #allocation4 [shape = 'u8[512]{0}', space=vmem, size = 0x400, scoped, tag = 'input window, operand 44, single buffered']
    #allocation5 [shape = 's32[1]{0}', space=sflag, size = 0x4, scoped, tag = 'scoped memory for fouseformer_forward.1']
    #allocation6 [shape = 'u8[512]{0}', space=vmem, size = 0x400, scoped, tag = 'input window, operand 49, single buffered']
    #allocation7 [shape = 'u8[512]{0}', space=vmem, size = 0x400, scoped, tag = 'input window, operand 51, single buffered']
    #allocation8 [shape = 's32[1]{0}', space=sflag, size = 0x4, scoped, tag = 'scoped memory for fouseformer_forward.1']
    #allocation9 [shape = 'u8[512]{0}', space=vmem, size = 0x400, scoped, tag = 'input window, operand 53, single buffered']
    #allocation10 [shape = 'u8[512]{0}', space=vmem, size = 0x400, scoped, tag = 'input window, operand 54, single buffered']
    #allocation11 [shape = 's32[1]{0}', space=sflag, size = 0x4, scoped, tag = 'scoped memory for fouseformer_forward.1']
    #allocation12 [shape = 'u8[512]{0}', space=vmem, size = 0x400, scoped, tag = 'input window, operand 55, single buffered']
    #allocation13 [shape = 'u8[512]{0}', space=vmem, size = 0x400, scoped, tag = 'input window, operand 56, single buffered']
    #allocation14 [shape = 's32[1]{0}', space=sflag, size = 0x4, scoped, tag = 'scoped memory for fouseformer_forward.1']
    #allocation15 [shape = 'u8[512]{0}', space=vmem, size = 0x400, scoped, tag = 'input window, operand 57, single buffered']
    #allocation16 [shape = 'u8[512]{0}', space=vmem, size = 0x400, scoped, tag = 'input window, operand 59, single buffered']
    #allocation17 [shape = 's32[1]{0}', space=sflag, size = 0x4, scoped, tag = 'scoped memory for fouseformer_forward.1']
    #allocation18 [shape = 'u8[512]{0}', space=vmem, size = 0x400, scoped, tag = 'input window, operand 61, single buffered']
    #allocation19 [shape = 'u8[512]{0}', space=vmem, size = 0x400, scoped, tag = 'input window, operand 62, single buffered']
    #allocation20 [shape = 's32[1]{0}', space=sflag, size = 0x4, scoped, tag = 'scoped memory for fouseformer_forward.1']
    #allocation21 [shape = 'u8[512]{0}', space=vmem, size = 0x400, scoped, tag = 'input window, operand 63, single buffered']
    %137 = vsyncpa [#allocation3], 0
    %138 = vsyncpa [#allocation5], 0
    %139 = vsyncpa [#allocation8], 0
    %140 = vsyncpa [#allocation11], 0
    %141 = vsyncpa [#allocation14], 0
    %142 = vsyncpa [#allocation17], 0
    %143 = vsyncpa [#allocation20], 0
    // Predicated region
    $region2: #{fouseformer_forward.1} parent=1 // pred_check
      _
    $region3: #{fouseformer_forward.1} parent=1 // pred_check_branch
      %145 = sbr.rel (0) target = $region5
    $region4: #{fouseformer_forward.1} parent=1 // pred_region
      _
    $region5: #{fouseformer_forward.1} parent=1 // pred_fallthru
      _
    // Predicated region
    $region6: #{fouseformer_forward.1} parent=1 // pred_check
      _
    $region7: #{fouseformer_forward.1} parent=1 // pred_check_branch
      %147 = sbr.rel (0) target = $region9
    $region8: #{fouseformer_forward.1} parent=1 // pred_region
      _
    $region9: #{fouseformer_forward.1} parent=1 // pred_fallthru
      _
    // Predicated region
    $region10: #{fouseformer_forward.1} parent=1 // pred_check
      _
    $region11: #{fouseformer_forward.1} parent=1 // pred_check_branch
      %149 = sbr.rel (0) target = $region13
    $region12: #{fouseformer_forward.1} parent=1 // pred_region
      _
    $region13: #{fouseformer_forward.1} parent=1 // pred_fallthru
      _
    // Predicated region
    $region14: #{fouseformer_forward.1} parent=1 // pred_check
      _
    $region15: #{fouseformer_forward.1} parent=1 // pred_check_branch
      %151 = sbr.rel (0) target = $region17
    $region16: #{fouseformer_forward.1} parent=1 // pred_region
      _
    $region17: #{fouseformer_forward.1} parent=1 // pred_fallthru
      _
    // Predicated region
    $region18: #{fouseformer_forward.1} parent=1 // pred_check
      _
    $region19: #{fouseformer_forward.1} parent=1 // pred_check_branch
      %153 = sbr.rel (0) target = $region21
    $region20: #{fouseformer_forward.1} parent=1 // pred_region
      _
    $region21: #{fouseformer_forward.1} parent=1 // pred_fallthru
      _
    // Predicated region
    $region22: #{fouseformer_forward.1} parent=1 // pred_check
      _
    $region23: #{fouseformer_forward.1} parent=1 // pred_check_branch
      %155 = sbr.rel (0) target = $region25
    $region24: #{fouseformer_forward.1} parent=1 // pred_region
      _
    $region25: #{fouseformer_forward.1} parent=1 // pred_fallthru
      _
    // Predicated region
    $region26: #{fouseformer_forward.1} parent=1 // pred_check
      _
    $region27: #{fouseformer_forward.1} parent=1 // pred_check_branch
      %157 = sbr.rel (0) target = $region29
    $region28: #{fouseformer_forward.1} parent=1 // pred_region
      _
    $region29: #{fouseformer_forward.1} parent=1 // pred_fallthru
      _
    // Predicated region
    $region30: #{fouseformer_forward.1} parent=1 // pred_check
      _
    $region31: #{fouseformer_forward.1} parent=1 // pred_check_branch
      %159 = sbr.rel (0) target = $region33
    $region32: #{fouseformer_forward.1} parent=1 // pred_region
      _
    $region33: #{fouseformer_forward.1} parent=1 // pred_fallthru
      _
    // Predicated region
    $region34: #{fouseformer_forward.1} parent=1 // pred_check
      _
    $region35: #{fouseformer_forward.1} parent=1 // pred_check_branch
      %161 = sbr.rel (0) target = $region37
    $region36: #{fouseformer_forward.1} parent=1 // pred_region
      _
    $region37: #{fouseformer_forward.1} parent=1 // pred_fallthru
      _
    // Predicated region
    $region38: #{fouseformer_forward.1} parent=1 // pred_check
      _
    $region39: #{fouseformer_forward.1} parent=1 // pred_check_branch
      %163 = sbr.rel (0) target = $region41
    $region40: #{fouseformer_forward.1} parent=1 // pred_region
      _
    $region41: #{fouseformer_forward.1} parent=1 // pred_fallthru
      _
    // Predicated region
    $region42: #{fouseformer_forward.1} parent=1 // pred_check
      _
    $region43: #{fouseformer_forward.1} parent=1 // pred_check_branch
      %165 = sbr.rel (0) target = $region45
    $region44: #{fouseformer_forward.1} parent=1 // pred_region
      _
    $region45: #{fouseformer_forward.1} parent=1 // pred_fallthru
      _
    // Predicated region
    $region46: #{fouseformer_forward.1} parent=1 // pred_check
      _
    $region47: #{fouseformer_forward.1} parent=1 // pred_check_branch
      %167 = sbr.rel (0) target = $region49
    $region48: #{fouseformer_forward.1} parent=1 // pred_region
      _
    $region49: #{fouseformer_forward.1} parent=1 // pred_fallthru
      _
    // Predicated region
    $region50: #{fouseformer_forward.1} parent=1 // pred_check
      _
    $region51: #{fouseformer_forward.1} parent=1 // pred_check_branch
      %169 = sbr.rel (0) target = $region53
    $region52: #{fouseformer_forward.1} parent=1 // pred_region
      _
    $region53: #{fouseformer_forward.1} parent=1 // pred_fallthru
      _
    // Predicated region
    $region54: #{fouseformer_forward.1} parent=1 // pred_check
      _
    $region55: #{fouseformer_forward.1} parent=1 // pred_check_branch
      %171 = sbr.rel (0) target = $region57
    $region56: #{fouseformer_forward.1} parent=1 // pred_region
      _
    $region57: #{fouseformer_forward.1} parent=1 // pred_fallthru
      _
    // Predicated region
    $region58: #{fouseformer_forward.1} parent=1 // pred_check
      _
    $region59: #{fouseformer_forward.1} parent=1 // pred_check_branch
      %173 = sbr.rel (0) target = $region61
    $region60: #{fouseformer_forward.1} parent=1 // pred_region
      _
    $region61: #{fouseformer_forward.1} parent=1 // pred_fallthru
      _
    // Predicated region
    $region62: #{fouseformer_forward.1} parent=1 // pred_check
      _
    $region63: #{fouseformer_forward.1} parent=1 // pred_check_branch
      %175 = sbr.rel (0) target = $region65
    $region64: #{fouseformer_forward.1} parent=1 // pred_region
      _
    $region65: #{fouseformer_forward.1} parent=1 // pred_fallthru
      _
    // Predicated region
    $region66: #{fouseformer_forward.1} parent=1 // pred_check
      _
    $region67: #{fouseformer_forward.1} parent=1 // pred_check_branch
      %177 = sbr.rel (0) target = $region69
    $region68: #{fouseformer_forward.1} parent=1 // pred_region
      _
    $region69: #{fouseformer_forward.1} parent=1 // pred_fallthru
      _
    // Predicated region
    $region70: #{fouseformer_forward.1} parent=1 // pred_check
      _
    $region71: #{fouseformer_forward.1} parent=1 // pred_check_branch
      %179 = sbr.rel (0) target = $region73
    $region72: #{fouseformer_forward.1} parent=1 // pred_region
      _
    $region73: #{fouseformer_forward.1} parent=1 // pred_fallthru
      _
    // Predicated region
    $region74: #{fouseformer_forward.1} parent=1 // pred_check
      _
    $region75: #{fouseformer_forward.1} parent=1 // pred_check_branch
      %181 = sbr.rel (0) target = $region77
    $region76: #{fouseformer_forward.1} parent=1 // pred_region
      _
    $region77: #{fouseformer_forward.1} parent=1 // pred_fallthru
      _
    // Predicated region
    $region78: #{fouseformer_forward.1} parent=1 // pred_check
      _
    $region79: #{fouseformer_forward.1} parent=1 // pred_check_branch
      %183 = sbr.rel (0) target = $region81
    $region80: #{fouseformer_forward.1} parent=1 // pred_region
      _
    $region81: #{fouseformer_forward.1} parent=1 // pred_fallthru
      _
    // Predicated region
    $region82: #{fouseformer_forward.1} parent=1 // pred_check
      _
    $region83: #{fouseformer_forward.1} parent=1 // pred_check_branch
      %185 = sbr.rel (0) target = $region85
    $region84: #{fouseformer_forward.1} parent=1 // pred_region
      _
    $region85: #{fouseformer_forward.1} parent=1 // pred_fallthru
      _
    // Predicated region
    $region86: #{fouseformer_forward.1} parent=1 // pred_check
      _
    $region87: #{fouseformer_forward.1} parent=1 // pred_check_branch
      %187 = sbr.rel (0) target = $region89
    $region88: #{fouseformer_forward.1} parent=1 // pred_region
      _
    $region89: #{fouseformer_forward.1} parent=1 // pred_fallthru
      _
    // Predicated region
    $region90: #{fouseformer_forward.1} parent=1 // pred_check
      _
    $region91: #{fouseformer_forward.1} parent=1 // pred_check_branch
      %189 = sbr.rel (0) target = $region93
    $region92: #{fouseformer_forward.1} parent=1 // pred_region
      _
    $region93: #{fouseformer_forward.1} parent=1 // pred_fallthru
      _
    // Predicated region
    $region94: #{fouseformer_forward.1} parent=1 // pred_check
      _
    $region95: #{fouseformer_forward.1} parent=1 // pred_check_branch
      %191 = sbr.rel (0) target = $region97
    $region96: #{fouseformer_forward.1} parent=1 // pred_region
      _
    $region97: #{fouseformer_forward.1} parent=1 // pred_fallthru
      _
    // Predicated region
    $region98: #{fouseformer_forward.1} parent=1 // pred_check
      _
    $region99: #{fouseformer_forward.1} parent=1 // pred_check_branch
      %193 = sbr.rel (0) target = $region101
    $region100: #{fouseformer_forward.1} parent=1 // pred_region
      _
    $region101: #{fouseformer_forward.1} parent=1 // pred_fallthru
      _
    // Predicated region
    $region102: #{fouseformer_forward.1} parent=1 // pred_check
      _
    $region103: #{fouseformer_forward.1} parent=1 // pred_check_branch
      %195 = sbr.rel (0) target = $region105
    $region104: #{fouseformer_forward.1} parent=1 // pred_region
      _
    $region105: #{fouseformer_forward.1} parent=1 // pred_fallthru
      _
    // Predicated region
    $region106: #{fouseformer_forward.1} parent=1 // pred_check
      _
    $region107: #{fouseformer_forward.1} parent=1 // pred_check_branch
      %197 = sbr.rel (0) target = $region109
    $region108: #{fouseformer_forward.1} parent=1 // pred_region
      _
    $region109: #{fouseformer_forward.1} parent=1 // pred_fallthru
      _
    // Predicated region
    $region110: #{fouseformer_forward.1} parent=1 // pred_check
      _
    $region111: #{fouseformer_forward.1} parent=1 // pred_check_branch
      %199 = sbr.rel (0) target = $region113
    $region112: #{fouseformer_forward.1} parent=1 // pred_region
      _
    $region113: #{fouseformer_forward.1} parent=1 // pred_fallthru
      _
    // Predicated region
    $region114: #{fouseformer_forward.1} parent=1 // pred_check
      _
    $region115: #{fouseformer_forward.1} parent=1 // pred_check_branch
      %201 = sbr.rel (0) target = $region117
    $region116: #{fouseformer_forward.1} parent=1 // pred_region
      _
    $region117: #{fouseformer_forward.1} parent=1 // pred_fallthru
      _
    // Predicated region
    $region118: #{fouseformer_forward.1} parent=1 // pred_check
      _
    $region119: #{fouseformer_forward.1} parent=1 // pred_check_branch
      %203 = sbr.rel (0) target = $region121
    $region120: #{fouseformer_forward.1} parent=1 // pred_region
      _
    $region121: #{fouseformer_forward.1} parent=1 // pred_fallthru
      _
    // Predicated region
    $region122: #{fouseformer_forward.1} parent=1 // pred_check
      _
    $region123: #{fouseformer_forward.1} parent=1 // pred_check_branch
      %205 = sbr.rel (0) target = $region125
    $region124: #{fouseformer_forward.1} parent=1 // pred_region
      _
    $region125: #{fouseformer_forward.1} parent=1 // pred_fallthru
      _
    // Predicated region
    $region126: #{fouseformer_forward.1} parent=1 // pred_check
      _
    $region127: #{fouseformer_forward.1} parent=1 // pred_check_branch
      %207 = sbr.rel (0) target = $region129
    $region128: #{fouseformer_forward.1} parent=1 // pred_region
      _
    $region129: #{fouseformer_forward.1} parent=1 // pred_fallthru
      _
    // Predicated region
    $region130: #{fouseformer_forward.1} parent=1 // pred_check
      _
    $region131: #{fouseformer_forward.1} parent=1 // pred_check_branch
      %209 = sbr.rel (0) target = $region133
    $region132: #{fouseformer_forward.1} parent=1 // pred_region
      _
    $region133: #{fouseformer_forward.1} parent=1 // pred_fallthru
      _
    // Predicated region
    $region134: #{fouseformer_forward.1} parent=1 // pred_check
      _
    $region135: #{fouseformer_forward.1} parent=1 // pred_check_branch
      %211 = sbr.rel (0) target = $region137
    $region136: #{fouseformer_forward.1} parent=1 // pred_region
      _
    $region137: #{fouseformer_forward.1} parent=1 // pred_fallthru
      _
    // Predicated region
    $region138: #{fouseformer_forward.1} parent=1 // pred_check
      _
    $region139: #{fouseformer_forward.1} parent=1 // pred_check_branch
      %213 = sbr.rel (0) target = $region141
    $region140: #{fouseformer_forward.1} parent=1 // pred_region
      _
    $region141: #{fouseformer_forward.1} parent=1 // pred_fallthru
      _
    // Predicated region
    $region142: #{fouseformer_forward.1} parent=1 // pred_check
      _
    $region143: #{fouseformer_forward.1} parent=1 // pred_check_branch
      %215 = sbr.rel (0) target = $region145
    $region144: #{fouseformer_forward.1} parent=1 // pred_region
      _
    $region145: #{fouseformer_forward.1} parent=1 // pred_fallthru
      _
    // Predicated region
    $region146: #{fouseformer_forward.1} parent=1 // pred_check
      _
    $region147: #{fouseformer_forward.1} parent=1 // pred_check_branch
      %217 = sbr.rel (0) target = $region149
    $region148: #{fouseformer_forward.1} parent=1 // pred_region
      _
    $region149: #{fouseformer_forward.1} parent=1 // pred_fallthru
      _
    // Predicated region
    $region150: #{fouseformer_forward.1} parent=1 // pred_check
      _
    $region151: #{fouseformer_forward.1} parent=1 // pred_check_branch
      %219 = sbr.rel (0) target = $region153
    $region152: #{fouseformer_forward.1} parent=1 // pred_region
      _
    $region153: #{fouseformer_forward.1} parent=1 // pred_fallthru
      _
    // Predicated region
    $region154: #{fouseformer_forward.1} parent=1 // pred_check
      _
    $region155: #{fouseformer_forward.1} parent=1 // pred_check_branch
      %221 = sbr.rel (0) target = $region157
    $region156: #{fouseformer_forward.1} parent=1 // pred_region
      _
    $region157: #{fouseformer_forward.1} parent=1 // pred_fallthru
      _
    // Predicated region
    $region158: #{fouseformer_forward.1} parent=1 // pred_check
      _
    $region159: #{fouseformer_forward.1} parent=1 // pred_check_branch
      %223 = sbr.rel (0) target = $region161
    $region160: #{fouseformer_forward.1} parent=1 // pred_region
      _
    $region161: #{fouseformer_forward.1} parent=1 // pred_fallthru
      _
    // Predicated region
    $region162: #{fouseformer_forward.1} parent=1 // pred_check
      _
    $region163: #{fouseformer_forward.1} parent=1 // pred_check_branch
      %225 = sbr.rel (0) target = $region165
    $region164: #{fouseformer_forward.1} parent=1 // pred_region
      _
    $region165: #{fouseformer_forward.1} parent=1 // pred_fallthru
      _
    // Predicated region
    $region166: #{fouseformer_forward.1} parent=1 // pred_check
      _
    $region167: #{fouseformer_forward.1} parent=1 // pred_check_branch
      %227 = sbr.rel (0) target = $region169
    $region168: #{fouseformer_forward.1} parent=1 // pred_region
      _
    $region169: #{fouseformer_forward.1} parent=1 // pred_fallthru
      _
    // Predicated region
    $region170: #{fouseformer_forward.1} parent=1 // pred_check
      _
    $region171: #{fouseformer_forward.1} parent=1 // pred_check_branch
      %229 = sbr.rel (0) target = $region173
    $region172: #{fouseformer_forward.1} parent=1 // pred_region
      _
    $region173: #{fouseformer_forward.1} parent=1 // pred_fallthru
      _
    // Predicated region
    $region174: #{fouseformer_forward.1} parent=1 // pred_check
      _
    $region175: #{fouseformer_forward.1} parent=1 // pred_check_branch
      %231 = sbr.rel (0) target = $region177
    $region176: #{fouseformer_forward.1} parent=1 // pred_region
      %s233 = ssub.s32 16, 16
      %234 = vsyncadd [#allocation3], %s233
      %s236 = sshll.u32 [#allocation2], 4
      %s237 = int_to_ptr.vmem [resolvable:$true] %s236
      %239 = dma.hbm_to_vmem [thread:$0]  %s87, 16, %s237, [#allocation3]
    $region177: #{fouseformer_forward.1} parent=1 // pred_fallthru
      _
    // Predicated region
    $region178: #{fouseformer_forward.1} parent=1 // pred_check
      _
    $region179: #{fouseformer_forward.1} parent=1 // pred_check_branch
      %241 = sbr.rel (0) target = $region181
    $region180: #{fouseformer_forward.1} parent=1 // pred_region
      %s243 = ssub.s32 16, 16
      %244 = vsyncadd [#allocation5], %s243
      %s246 = sshll.u32 [#allocation4], 4
      %s247 = int_to_ptr.vmem [resolvable:$true] %s246
      %249 = dma.hbm_to_vmem [thread:$0]  %s89, 16, %s247, [#allocation5]
    $region181: #{fouseformer_forward.1} parent=1 // pred_fallthru
      _
    // Predicated region
    $region182: #{fouseformer_forward.1} parent=1 // pred_check
      _
    $region183: #{fouseformer_forward.1} parent=1 // pred_check_branch
      %251 = sbr.rel (0) target = $region185
    $region184: #{fouseformer_forward.1} parent=1 // pred_region
      _
    $region185: #{fouseformer_forward.1} parent=1 // pred_fallthru
      _
    // Predicated region
    $region186: #{fouseformer_forward.1} parent=1 // pred_check
      _
    $region187: #{fouseformer_forward.1} parent=1 // pred_check_branch
      %253 = sbr.rel (0) target = $region189
    $region188: #{fouseformer_forward.1} parent=1 // pred_region
      _
    $region189: #{fouseformer_forward.1} parent=1 // pred_fallthru
      _
    // Predicated region
    $region190: #{fouseformer_forward.1} parent=1 // pred_check
      _
    $region191: #{fouseformer_forward.1} parent=1 // pred_check_branch
      %255 = sbr.rel (0) target = $region193
    $region192: #{fouseformer_forward.1} parent=1 // pred_region
      _
    $region193: #{fouseformer_forward.1} parent=1 // pred_fallthru
      _
    // Predicated region
    $region194: #{fouseformer_forward.1} parent=1 // pred_check
      _
    $region195: #{fouseformer_forward.1} parent=1 // pred_check_branch
      %257 = sbr.rel (0) target = $region197
    $region196: #{fouseformer_forward.1} parent=1 // pred_region
      _
    $region197: #{fouseformer_forward.1} parent=1 // pred_fallthru
      _
    // Predicated region
    $region198: #{fouseformer_forward.1} parent=1 // pred_check
      _
    $region199: #{fouseformer_forward.1} parent=1 // pred_check_branch
      %259 = sbr.rel (0) target = $region201
    $region200: #{fouseformer_forward.1} parent=1 // pred_region
      %s261 = ssub.s32 16, 16
      %262 = vsyncadd [#allocation5], %s261
      %s264 = sshll.u32 [#allocation6], 4
      %s265 = int_to_ptr.vmem [resolvable:$true] %s264
      %267 = dma.hbm_to_vmem [thread:$0]  %s99, 16, %s265, [#allocation5]
    $region201: #{fouseformer_forward.1} parent=1 // pred_fallthru
      _
    // Predicated region
    $region202: #{fouseformer_forward.1} parent=1 // pred_check
      _
    $region203: #{fouseformer_forward.1} parent=1 // pred_check_branch
      %269 = sbr.rel (0) target = $region205
    $region204: #{fouseformer_forward.1} parent=1 // pred_region
      _
    $region205: #{fouseformer_forward.1} parent=1 // pred_fallthru
      _
    // Predicated region
    $region206: #{fouseformer_forward.1} parent=1 // pred_check
      _
    $region207: #{fouseformer_forward.1} parent=1 // pred_check_branch
      %271 = sbr.rel (0) target = $region209
    $region208: #{fouseformer_forward.1} parent=1 // pred_region
      %s273 = ssub.s32 16, 16
      %274 = vsyncadd [#allocation8], %s273
      %s276 = sshll.u32 [#allocation7], 4
      %s277 = int_to_ptr.vmem [resolvable:$true] %s276
      %279 = dma.hbm_to_vmem [thread:$0]  %s103, 16, %s277, [#allocation8]
    $region209: #{fouseformer_forward.1} parent=1 // pred_fallthru
      _
    // Predicated region
    $region210: #{fouseformer_forward.1} parent=1 // pred_check
      _
    $region211: #{fouseformer_forward.1} parent=1 // pred_check_branch
      %281 = sbr.rel (0) target = $region213
    $region212: #{fouseformer_forward.1} parent=1 // pred_region
      _
    $region213: #{fouseformer_forward.1} parent=1 // pred_fallthru
      _
    // Predicated region
    $region214: #{fouseformer_forward.1} parent=1 // pred_check
      _
    $region215: #{fouseformer_forward.1} parent=1 // pred_check_branch
      %283 = sbr.rel (0) target = $region217
    $region216: #{fouseformer_forward.1} parent=1 // pred_region
      %s285 = ssub.s32 16, 16
      %286 = vsyncadd [#allocation8], %s285
      %s288 = sshll.u32 [#allocation9], 4
      %s289 = int_to_ptr.vmem [resolvable:$true] %s288
      %291 = dma.hbm_to_vmem [thread:$0]  %s107, 16, %s289, [#allocation8]
    $region217: #{fouseformer_forward.1} parent=1 // pred_fallthru
      _
    // Predicated region
    $region218: #{fouseformer_forward.1} parent=1 // pred_check
      _
    $region219: #{fouseformer_forward.1} parent=1 // pred_check_branch
      %293 = sbr.rel (0) target = $region221
    $region220: #{fouseformer_forward.1} parent=1 // pred_region
      %s295 = ssub.s32 16, 16
      %296 = vsyncadd [#allocation11], %s295
      %s298 = sshll.u32 [#allocation10], 4
      %s299 = int_to_ptr.vmem [resolvable:$true] %s298
      %301 = dma.hbm_to_vmem [thread:$0]  %s109, 16, %s299, [#allocation11]
    $region221: #{fouseformer_forward.1} parent=1 // pred_fallthru
      _
    // Predicated region
    $region222: #{fouseformer_forward.1} parent=1 // pred_check
      _
    $region223: #{fouseformer_forward.1} parent=1 // pred_check_branch
      %303 = sbr.rel (0) target = $region225
    $region224: #{fouseformer_forward.1} parent=1 // pred_region
      %s305 = ssub.s32 16, 16
      %306 = vsyncadd [#allocation11], %s305
      %s308 = sshll.u32 [#allocation12], 4
      %s309 = int_to_ptr.vmem [resolvable:$true] %s308
      %311 = dma.hbm_to_vmem [thread:$0]  %s111, 16, %s309, [#allocation11]
    $region225: #{fouseformer_forward.1} parent=1 // pred_fallthru
      _
    // Predicated region
    $region226: #{fouseformer_forward.1} parent=1 // pred_check
      _
    $region227: #{fouseformer_forward.1} parent=1 // pred_check_branch
      %313 = sbr.rel (0) target = $region229
    $region228: #{fouseformer_forward.1} parent=1 // pred_region
      %s315 = ssub.s32 16, 16
      %316 = vsyncadd [#allocation14], %s315
      %s318 = sshll.u32 [#allocation13], 4
      %s319 = int_to_ptr.vmem [resolvable:$true] %s318
      %321 = dma.hbm_to_vmem [thread:$0]  %s113, 16, %s319, [#allocation14]
    $region229: #{fouseformer_forward.1} parent=1 // pred_fallthru
      _
    // Predicated region
    $region230: #{fouseformer_forward.1} parent=1 // pred_check
      _
    $region231: #{fouseformer_forward.1} parent=1 // pred_check_branch
      %323 = sbr.rel (0) target = $region233
    $region232: #{fouseformer_forward.1} parent=1 // pred_region
      %s325 = ssub.s32 16, 16
      %326 = vsyncadd [#allocation14], %s325
      %s328 = sshll.u32 [#allocation15], 4
      %s329 = int_to_ptr.vmem [resolvable:$true] %s328
      %331 = dma.hbm_to_vmem [thread:$0]  %s115, 16, %s329, [#allocation14]
    $region233: #{fouseformer_forward.1} parent=1 // pred_fallthru
      _
    // Predicated region
    $region234: #{fouseformer_forward.1} parent=1 // pred_check
      _
    $region235: #{fouseformer_forward.1} parent=1 // pred_check_branch
      %333 = sbr.rel (0) target = $region237
    $region236: #{fouseformer_forward.1} parent=1 // pred_region
      _
    $region237: #{fouseformer_forward.1} parent=1 // pred_fallthru
      _
    // Predicated region
    $region238: #{fouseformer_forward.1} parent=1 // pred_check
      _
    $region239: #{fouseformer_forward.1} parent=1 // pred_check_branch
      %335 = sbr.rel (0) target = $region241
    $region240: #{fouseformer_forward.1} parent=1 // pred_region
      %s337 = ssub.s32 16, 16
      %338 = vsyncadd [#allocation17], %s337
      %s340 = sshll.u32 [#allocation16], 4
      %s341 = int_to_ptr.vmem [resolvable:$true] %s340
      %343 = dma.hbm_to_vmem [thread:$0]  %s119, 16, %s341, [#allocation17]
    $region241: #{fouseformer_forward.1} parent=1 // pred_fallthru
      _
    // Predicated region
    $region242: #{fouseformer_forward.1} parent=1 // pred_check
      _
    $region243: #{fouseformer_forward.1} parent=1 // pred_check_branch
      %345 = sbr.rel (0) target = $region245
    $region244: #{fouseformer_forward.1} parent=1 // pred_region
      _
    $region245: #{fouseformer_forward.1} parent=1 // pred_fallthru
      _
    // Predicated region
    $region246: #{fouseformer_forward.1} parent=1 // pred_check
      _
    $region247: #{fouseformer_forward.1} parent=1 // pred_check_branch
      %347 = sbr.rel (0) target = $region249
    $region248: #{fouseformer_forward.1} parent=1 // pred_region
      %s349 = ssub.s32 16, 16
      %350 = vsyncadd [#allocation17], %s349
      %s352 = sshll.u32 [#allocation18], 4
      %s353 = int_to_ptr.vmem [resolvable:$true] %s352
      %355 = dma.hbm_to_vmem [thread:$0]  %s123, 16, %s353, [#allocation17]
    $region249: #{fouseformer_forward.1} parent=1 // pred_fallthru
      _
    // Predicated region
    $region250: #{fouseformer_forward.1} parent=1 // pred_check
      _
    $region251: #{fouseformer_forward.1} parent=1 // pred_check_branch
      %357 = sbr.rel (0) target = $region253
    $region252: #{fouseformer_forward.1} parent=1 // pred_region
      %s359 = ssub.s32 16, 16
      %360 = vsyncadd [#allocation20], %s359
      %s362 = sshll.u32 [#allocation19], 4
      %s363 = int_to_ptr.vmem [resolvable:$true] %s362
      %365 = dma.hbm_to_vmem [thread:$0]  %s125, 16, %s363, [#allocation20]
    $region253: #{fouseformer_forward.1} parent=1 // pred_fallthru
      _
    // Predicated region
    $region254: #{fouseformer_forward.1} parent=1 // pred_check
      _
    $region255: #{fouseformer_forward.1} parent=1 // pred_check_branch
      %367 = sbr.rel (0) target = $region257
    $region256: #{fouseformer_forward.1} parent=1 // pred_region
      %s369 = ssub.s32 16, 16
      %370 = vsyncadd [#allocation20], %s369
      %s372 = sshll.u32 [#allocation21], 4
      %s373 = int_to_ptr.vmem [resolvable:$true] %s372
      %375 = dma.hbm_to_vmem [thread:$0]  %s127, 16, %s373, [#allocation20]
    $region257: #{fouseformer_forward.1} parent=1 // pred_fallthru
      _
    // Predicated region
    $region258: #{fouseformer_forward.1} parent=1 // pred_check
      _
    $region259: #{fouseformer_forward.1} parent=1 // pred_check_branch
      %377 = sbr.rel (0) target = $region261
    $region260: #{fouseformer_forward.1} parent=1 // pred_region
      %378 = dma.done [#allocation3], 16
    $region261: #{fouseformer_forward.1} parent=1 // pred_fallthru
      _
    // Predicated region
    $region262: #{fouseformer_forward.1} parent=1 // pred_check
      _
    $region263: #{fouseformer_forward.1} parent=1 // pred_check_branch
      %380 = sbr.rel (0) target = $region265
    $region264: #{fouseformer_forward.1} parent=1 // pred_region
      %381 = dma.done [#allocation5], 16
    $region265: #{fouseformer_forward.1} parent=1 // pred_fallthru
      _
    // Predicated region
    $region266: #{fouseformer_forward.1} parent=1 // pred_check
      _
    $region267: #{fouseformer_forward.1} parent=1 // pred_check_branch
      %383 = sbr.rel (0) target = $region269
    $region268: #{fouseformer_forward.1} parent=1 // pred_region
      %384 = dma.done [#allocation5], 16
    $region269: #{fouseformer_forward.1} parent=1 // pred_fallthru
      _
    // Predicated region
    $region270: #{fouseformer_forward.1} parent=1 // pred_check
      _
    $region271: #{fouseformer_forward.1} parent=1 // pred_check_branch
      %386 = sbr.rel (0) target = $region273
    $region272: #{fouseformer_forward.1} parent=1 // pred_region
      %387 = dma.done [#allocation8], 16
    $region273: #{fouseformer_forward.1} parent=1 // pred_fallthru
      _
    // Predicated region
    $region274: #{fouseformer_forward.1} parent=1 // pred_check
      _
    $region275: #{fouseformer_forward.1} parent=1 // pred_check_branch
      %389 = sbr.rel (0) target = $region277
    $region276: #{fouseformer_forward.1} parent=1 // pred_region
      %390 = dma.done [#allocation8], 16
    $region277: #{fouseformer_forward.1} parent=1 // pred_fallthru
      _
    // Predicated region
    $region278: #{fouseformer_forward.1} parent=1 // pred_check
      _
    $region279: #{fouseformer_forward.1} parent=1 // pred_check_branch
      %392 = sbr.rel (0) target = $region281
    $region280: #{fouseformer_forward.1} parent=1 // pred_region
      %393 = dma.done [#allocation11], 16
    $region281: #{fouseformer_forward.1} parent=1 // pred_fallthru
      _
    // Predicated region
    $region282: #{fouseformer_forward.1} parent=1 // pred_check
      _
    $region283: #{fouseformer_forward.1} parent=1 // pred_check_branch
      %395 = sbr.rel (0) target = $region285
    $region284: #{fouseformer_forward.1} parent=1 // pred_region
      %396 = dma.done [#allocation11], 16
    $region285: #{fouseformer_forward.1} parent=1 // pred_fallthru
      _
    // Predicated region
    $region286: #{fouseformer_forward.1} parent=1 // pred_check
      _
    $region287: #{fouseformer_forward.1} parent=1 // pred_check_branch
      %398 = sbr.rel (0) target = $region289
    $region288: #{fouseformer_forward.1} parent=1 // pred_region
      %399 = dma.done [#allocation14], 16
    $region289: #{fouseformer_forward.1} parent=1 // pred_fallthru
      _
    // Predicated region
    $region290: #{fouseformer_forward.1} parent=1 // pred_check
      _
    $region291: #{fouseformer_forward.1} parent=1 // pred_check_branch
      %401 = sbr.rel (0) target = $region293
    $region292: #{fouseformer_forward.1} parent=1 // pred_region
      %402 = dma.done [#allocation14], 16
    $region293: #{fouseformer_forward.1} parent=1 // pred_fallthru
      _
    // Predicated region
    $region294: #{fouseformer_forward.1} parent=1 // pred_check
      _
    $region295: #{fouseformer_forward.1} parent=1 // pred_check_branch
      %404 = sbr.rel (0) target = $region297
    $region296: #{fouseformer_forward.1} parent=1 // pred_region
      %405 = dma.done [#allocation17], 16
    $region297: #{fouseformer_forward.1} parent=1 // pred_fallthru
      _
    // Predicated region
    $region298: #{fouseformer_forward.1} parent=1 // pred_check
      _
    $region299: #{fouseformer_forward.1} parent=1 // pred_check_branch
      %407 = sbr.rel (0) target = $region301
    $region300: #{fouseformer_forward.1} parent=1 // pred_region
      %408 = dma.done [#allocation17], 16
    $region301: #{fouseformer_forward.1} parent=1 // pred_fallthru
      _
    // Predicated region
    $region302: #{fouseformer_forward.1} parent=1 // pred_check
      _
    $region303: #{fouseformer_forward.1} parent=1 // pred_check_branch
      %410 = sbr.rel (0) target = $region305
    $region304: #{fouseformer_forward.1} parent=1 // pred_region
      %411 = dma.done [#allocation20], 16
    $region305: #{fouseformer_forward.1} parent=1 // pred_fallthru
      _
    // Predicated region
    $region306: #{fouseformer_forward.1} parent=1 // pred_check
      _
    $region307: #{fouseformer_forward.1} parent=1 // pred_check_branch
      %413 = sbr.rel (0) target = $region309
    $region308: #{fouseformer_forward.1} parent=1 // pred_region
      %414 = dma.done [#allocation20], 16
    $region309: #{fouseformer_forward.1} parent=1 // pred_fallthru
      _
    %v415 = vld [vmem:[%s27] sm:$0x1]
    %v416 = vld [vmem:[%s29] sm:$0xff]
    %v417 = vld [vmem:[%s31] sm:$0x1]
    %v418 = vld [vmem:[%s33] sm:$0x1]
    %v419 = vld [vmem:[%s35] sm:$0x1]
    %v420 = vld [vmem:[%s37] sm:$0x1]
    %v421 = vld [vmem:[%s39] sm:$0xff]
    %v422 = vld [vmem:[%s39 + $0x8] sm:$0xff]
    %v423 = vld [vmem:[%s39 + $0x10] sm:$0xff]
    %v424 = vld [vmem:[%s39 + $0x18] sm:$0xff]
    %v425 = vld [vmem:[%s41] sm:$0xff]
    %v426 = vld [vmem:[%s41 + $0x8] sm:$0xff]
    %v427 = vld [vmem:[%s41 + $0x10] sm:$0xff]
    %v428 = vld [vmem:[%s41 + $0x18] sm:$0xff]
    %v429 = vld [vmem:[%s43] sm:$0xff]
    %v430 = vld [vmem:[%s43 + $0x8] sm:$0xff]
    %v431 = vld [vmem:[%s43 + $0x10] sm:$0xff]
    %v432 = vld [vmem:[%s43 + $0x18] sm:$0xff]
    %v433 = vld [vmem:[%s45] sm:$0xff]
    %v434 = vld [vmem:[%s45 + $0x8] sm:$0xff]
    %v435 = vld [vmem:[%s45 + $0x10] sm:$0xff]
    %v436 = vld [vmem:[%s45 + $0x18] sm:$0xff]
    %v437 = vld [vmem:[%s47] sm:$0x1]
    %v438 = vld [vmem:[%s49] sm:$0xff]
    %v439 = vld [vmem:[%s49 + $0x8] sm:$0xff]
    %v440 = vld [vmem:[%s49 + $0x10] sm:$0xff]
    %v441 = vld [vmem:[%s49 + $0x18] sm:$0xff]
    %v442 = vld [vmem:[%s51] sm:$0x1]
    %v443 = vld [vmem:[%s53] sm:$0xff]
    %v444 = vld [vmem:[%s53 + $0x8] sm:$0xff]
    %v445 = vld [vmem:[%s53 + $0x10] sm:$0xff]
    %v446 = vld [vmem:[%s53 + $0x18] sm:$0xff]
    %v447 = vld [vmem:[%s53 + $0x20] sm:$0xff]
    %v448 = vld [vmem:[%s53 + $0x28] sm:$0xff]
    %v449 = vld [vmem:[%s53 + $0x30] sm:$0xff]
    %v450 = vld [vmem:[%s53 + $0x38] sm:$0xff]
    %v451 = vld [vmem:[%s55] sm:$0x1]
    %v452 = vld [vmem:[%s57] sm:$0x1]
    %v453 = vld [vmem:[%s59] sm:$0x1]
    %v454 = vld [vmem:[%s61] sm:$0x1]
    %v455 = vld [vmem:[%s63] sm:$0x1]
    %v456 = vld [vmem:[%s65] sm:$0x1]
    %v457 = vld [vmem:[%s67] sm:$0x1]
    %v458 = vld [vmem:[%s69] sm:$0x1]
    %v459 = vld [vmem:[%s71] sm:$0x1]
    %v460 = vld [vmem:[%s73] sm:$0x1]
    %v461 = vld [vmem:[%s75] sm:$0xff]
    %v462 = vld [vmem:[%s75 + $0x8] sm:$0xff]
    %v463 = vld [vmem:[%s75 + $0x10] sm:$0xff]
    %v464 = vld [vmem:[%s75 + $0x18] sm:$0xff]
    %v465 = vld [vmem:[%s77] sm:$0xff]
    %v466 = vld [vmem:[%s77 + $0x8] sm:$0xff]
    %v467 = vld [vmem:[%s77 + $0x10] sm:$0xff]
    %v468 = vld [vmem:[%s77 + $0x18] sm:$0xff]
    %v469 = vld [vmem:[%s79] sm:$0xff]
    %v470 = vld [vmem:[%s79 + $0x8] sm:$0xff]
    %v471 = vld [vmem:[%s79 + $0x10] sm:$0xff]
    %v472 = vld [vmem:[%s79 + $0x18] sm:$0xff]
    %v473 = vld [vmem:[%s81] sm:$0xff]
    %v474 = vld [vmem:[%s81 + $0x8] sm:$0xff]
    %v475 = vld [vmem:[%s81 + $0x10] sm:$0xff]
    %v476 = vld [vmem:[%s81 + $0x18] sm:$0xff]
    %v477 = vld [vmem:[%s83] sm:$0x1]
    %v478 = vld [vmem:[%s85] sm:$0x1]
    %v479 = vld [vmem:[#allocation2] sm:$0x1]
    %v480 = vld [vmem:[#allocation4] sm:$0x1]
    %v481 = vld [vmem:[%s91] sm:$0xff]
    %v482 = vld [vmem:[%s91 + $0x8] sm:$0xff]
    %v483 = vld [vmem:[%s91 + $0x10] sm:$0xff]
    %v484 = vld [vmem:[%s91 + $0x18] sm:$0xff]
    %v485 = vld [vmem:[%s93] sm:$0xff]
    %v486 = vld [vmem:[%s93 + $0x8] sm:$0xff]
    %v487 = vld [vmem:[%s93 + $0x10] sm:$0xff]
    %v488 = vld [vmem:[%s93 + $0x18] sm:$0xff]
    %v489 = vld [vmem:[%s95] sm:$0xff]
    %v490 = vld [vmem:[%s95 + $0x8] sm:$0xff]
    %v491 = vld [vmem:[%s95 + $0x10] sm:$0xff]
    %v492 = vld [vmem:[%s95 + $0x18] sm:$0xff]
    %v493 = vld [vmem:[%s97] sm:$0xff]
    %v494 = vld [vmem:[%s97 + $0x8] sm:$0xff]
    %v495 = vld [vmem:[%s97 + $0x10] sm:$0xff]
    %v496 = vld [vmem:[%s97 + $0x18] sm:$0xff]
    %v497 = vld [vmem:[#allocation6] sm:$0x1]
    %v498 = vld [vmem:[%s101] sm:$0xff]
    %v499 = vld [vmem:[%s101 + $0x8] sm:$0xff]
    %v500 = vld [vmem:[%s101 + $0x10] sm:$0xff]
    %v501 = vld [vmem:[%s101 + $0x18] sm:$0xff]
    %v502 = vld [vmem:[#allocation7] sm:$0x1]
    %v503 = vld [vmem:[%s105] sm:$0xff]
    %v504 = vld [vmem:[%s105 + $0x8] sm:$0xff]
    %v505 = vld [vmem:[%s105 + $0x10] sm:$0xff]
    %v506 = vld [vmem:[%s105 + $0x18] sm:$0xff]
    %v507 = vld [vmem:[%s105 + $0x20] sm:$0xff]
    %v508 = vld [vmem:[%s105 + $0x28] sm:$0xff]
    %v509 = vld [vmem:[%s105 + $0x30] sm:$0xff]
    %v510 = vld [vmem:[%s105 + $0x38] sm:$0xff]
    %v511 = vld [vmem:[#allocation9] sm:$0x1]
    %v512 = vld [vmem:[#allocation10] sm:$0x1]
    %v513 = vld [vmem:[#allocation12] sm:$0x1]
    %v514 = vld [vmem:[#allocation13] sm:$0x1]
    %v515 = vld [vmem:[#allocation15] sm:$0x1]
    %v516 = vld [vmem:[%s117] sm:$0xff]
    %v517 = vld [vmem:[#allocation16] sm:$0x1]
    %v518 = vld [vmem:[%s121] sm:$0xff]
    %v519 = vld [vmem:[#allocation18] sm:$0x1]
    %v520 = vld [vmem:[#allocation19] sm:$0x1]
    %v521 = vld [vmem:[#allocation21] sm:$0x1]
    %v522 = vld [vmem:[%s1] sm:$0xff]
    %v523 = vld [vmem:[%s1 + $0x8] sm:$0xff]
    %v524 = vld [vmem:[%s1 + $0x10] sm:$0x3]
    %v525 = vld [vmem:[%s15] sm:$0xff]
    %v526 = vld [vmem:[%s15 + $0x8] sm:$0xff]
    %v527 = vld [vmem:[%s15 + $0x10] sm:$0x3]
    %v529 = vlaneseq
    %v530 = vshrl.u32 %v529, 7
    %v531 = vsub.s32 0, %v530
    %v532 = vrot.slane %v415, %v531
    %vm534 = vcmask 64512
    %v536 = vsel %vm534, %v522, 0
    %v539 = vsel %vm534, %v523, 0
    %v542 = vsel %vm534, %v524, 0
    %544 = vmatprep.subr.mxu0 0.0
    %545 = vmatpush1.msra.mxu0 %v416
    %546 = vmatprep.subr.mxu0 0.0
    %547 = vmatpush1.msra.mxu0 0.0
    %548 = vmatprep.subr.mxu0 0.0
    %549 = vmatpush1.msra.mxu0 0.0
    %550 = vmatprep.subr.mxu0 0.0
    %551 = vmatpush1.msra.mxu0 0.0
    %552 = vmatprep.subr.mxu0 0.0
    %553 = vmatpush1.msra.mxu0 0.0
    %554 = vmatprep.subr.mxu0 0.0
    %555 = vmatpush1.msra.mxu0 0.0
    %556 = vmatprep.subr.mxu0 0.0
    %557 = vmatpush1.msra.mxu0 0.0
    %558 = vmatprep.subr.mxu0 0.0
    %559 = vmatpush1.msra.mxu0 0.0
    %560 = vmatprep.subr.mxu0 0.0
    %561 = vmatpush1.msra.mxu0 0.0
    %562 = vmatprep.subr.mxu0 0.0
    %563 = vmatpush1.msra.mxu0 0.0
    %564 = vmatprep.subr.mxu0 0.0
    %565 = vmatpush1.msra.mxu0 0.0
    %566 = vmatprep.subr.mxu0 0.0
    %567 = vmatpush1.msra.mxu0 0.0
    %568 = vmatprep.subr.mxu0 0.0
    %569 = vmatpush1.msra.mxu0 0.0
    %570 = vmatprep.subr.mxu0 0.0
    %571 = vmatpush1.msra.mxu0 0.0
    %572 = vmatprep.subr.mxu0 0.0
    %573 = vmatpush1.msra.mxu0 0.0
    %574 = vmatprep.subr.mxu0 0.0
    %575 = vmatpush1.msra.mxu0 0.0
    %576 = vmatprep.subr.mxu0 0.0
    %577 = vmatpush1.msra.mxu0 0.0
    %578 = vmatprep.subr.mxu0 0.0
    %579 = vmatpush1.msra.mxu0 0.0
    %580 = vmatprep.subr.mxu0 0.0
    %581 = vmatpush1.msra.mxu0 0.0
    %582 = vmatprep.subr.mxu0 0.0
    %583 = vmatpush1.msra.mxu0 0.0
    %584 = vmatprep.subr.mxu0 0.0
    %585 = vmatpush1.msra.mxu0 0.0
    %586 = vmatprep.subr.mxu0 0.0
    %587 = vmatpush1.msra.mxu0 0.0
    %588 = vmatprep.subr.mxu0 0.0
    %589 = vmatpush1.msra.mxu0 0.0
    %590 = vmatprep.subr.mxu0 0.0
    %591 = vmatpush1.msra.mxu0 0.0
    %592 = vmatprep.subr.mxu0 0.0
    %593 = vmatpush1.msra.mxu0 0.0
    %594 = vmatprep.subr.mxu0 0.0
    %595 = vmatpush1.msra.mxu0 0.0
    %596 = vmatprep.subr.mxu0 0.0
    %597 = vmatpush1.msra.mxu0 0.0
    %598 = vmatprep.subr.mxu0 0.0
    %599 = vmatpush1.msra.mxu0 0.0
    %600 = vmatprep.subr.mxu0 0.0
    %601 = vmatpush1.msra.mxu0 0.0
    %602 = vmatprep.subr.mxu0 0.0
    %603 = vmatpush1.msra.mxu0 0.0
    %604 = vmatprep.subr.mxu0 0.0
    %605 = vmatpush1.msra.mxu0 0.0
    %606 = vmatprep.subr.mxu0 0.0
    %607 = vmatpush1.msra.mxu0 0.0
    %608 = vmatprep.mubr.f32.mxu0 0.0
    %609 = vmatmul.mubr.f32.gmra.mrb[0].mxu0 %v536
    %v610 = vpop.f32.mrb[0].mxu0
    %v611 = vadd.f32 %v532, %v610
    %v612 = vpop.f32.mrb[0].mxu0
    %613 = vmatprep.mubr.f32.mxu0 0.0
    %614 = vmatmul.mubr.f32.gmra.mrb[0].mxu0 %v539
    %v615 = vpop.f32.mrb[0].mxu0
    %v616 = vadd.f32 %v532, %v615
    %v617 = vpop.f32.mrb[0].mxu0
    %618 = vmatprep.mubr.f32.mxu0 0.0
    %619 = vmatmul.mubr.f32.gmra.mrb[0].mxu0 %v542
    %v620 = vpop.f32.mrb[0].mxu0
    %v621 = vadd.f32 %v532, %v620
    %v622 = vpop.f32.mrb[0].mxu0
    %623 = vdwg.mxu0
    %v625 = vlaneseq
    %v626 = vshrl.u32 %v625, 7
    %v627 = vsub.s32 0, %v626
    %v628 = vrot.slane %v517, %v627
    %630 = vmatprep.subr.mxu0 0.0
    %631 = vmatpush1.msra.mxu0 %v518
    %632 = vmatprep.subr.mxu0 0.0
    %633 = vmatpush1.msra.mxu0 0.0
    %634 = vmatprep.subr.mxu0 0.0
    %635 = vmatpush1.msra.mxu0 0.0
    %636 = vmatprep.subr.mxu0 0.0
    %637 = vmatpush1.msra.mxu0 0.0
    %638 = vmatprep.subr.mxu0 0.0
    %639 = vmatpush1.msra.mxu0 0.0
    %640 = vmatprep.subr.mxu0 0.0
    %641 = vmatpush1.msra.mxu0 0.0
    %642 = vmatprep.subr.mxu0 0.0
    %643 = vmatpush1.msra.mxu0 0.0
    %644 = vmatprep.subr.mxu0 0.0
    %645 = vmatpush1.msra.mxu0 0.0
    %646 = vmatprep.subr.mxu0 0.0
    %647 = vmatpush1.msra.mxu0 0.0
    %648 = vmatprep.subr.mxu0 0.0
    %649 = vmatpush1.msra.mxu0 0.0
    %650 = vmatprep.subr.mxu0 0.0
    %651 = vmatpush1.msra.mxu0 0.0
    %652 = vmatprep.subr.mxu0 0.0
    %653 = vmatpush1.msra.mxu0 0.0
    %654 = vmatprep.subr.mxu0 0.0
    %655 = vmatpush1.msra.mxu0 0.0
    %656 = vmatprep.subr.mxu0 0.0
    %657 = vmatpush1.msra.mxu0 0.0
    %658 = vmatprep.subr.mxu0 0.0
    %659 = vmatpush1.msra.mxu0 0.0
    %660 = vmatprep.subr.mxu0 0.0
    %661 = vmatpush1.msra.mxu0 0.0
    %662 = vmatprep.subr.mxu0 0.0
    %663 = vmatpush1.msra.mxu0 0.0
    %664 = vmatprep.subr.mxu0 0.0
    %665 = vmatpush1.msra.mxu0 0.0
    %666 = vmatprep.subr.mxu0 0.0
    %667 = vmatpush1.msra.mxu0 0.0
    %668 = vmatprep.subr.mxu0 0.0
    %669 = vmatpush1.msra.mxu0 0.0
    %670 = vmatprep.subr.mxu0 0.0
    %671 = vmatpush1.msra.mxu0 0.0
    %672 = vmatprep.subr.mxu0 0.0
    %673 = vmatpush1.msra.mxu0 0.0
    %674 = vmatprep.subr.mxu0 0.0
    %675 = vmatpush1.msra.mxu0 0.0
    %676 = vmatprep.subr.mxu0 0.0
    %677 = vmatpush1.msra.mxu0 0.0
    %678 = vmatprep.subr.mxu0 0.0
    %679 = vmatpush1.msra.mxu0 0.0
    %680 = vmatprep.subr.mxu0 0.0
    %681 = vmatpush1.msra.mxu0 0.0
    %682 = vmatprep.subr.mxu0 0.0
    %683 = vmatpush1.msra.mxu0 0.0
    %684 = vmatprep.subr.mxu0 0.0
    %685 = vmatpush1.msra.mxu0 0.0
    %686 = vmatprep.subr.mxu0 0.0
    %687 = vmatpush1.msra.mxu0 0.0
    %688 = vmatprep.subr.mxu0 0.0
    %689 = vmatpush1.msra.mxu0 0.0
    %690 = vmatprep.subr.mxu0 0.0
    %691 = vmatpush1.msra.mxu0 0.0
    %692 = vmatprep.subr.mxu0 0.0
    %693 = vmatpush1.msra.mxu0 0.0
    %694 = vmatprep.mubr.f32.mxu0 0.0
    %695 = vmatmul.mubr.f32.gmra.mrb[0].mxu0 %v536
    %v696 = vpop.f32.mrb[0].mxu0
    %v697 = vadd.f32 %v628, %v696
    %v698 = vpop.f32.mrb[0].mxu0
    %699 = vmatprep.mubr.f32.mxu0 0.0
    %700 = vmatmul.mubr.f32.gmra.mrb[0].mxu0 %v539
    %v701 = vpop.f32.mrb[0].mxu0
    %v702 = vadd.f32 %v628, %v701
    %v703 = vpop.f32.mrb[0].mxu0
    %704 = vmatprep.mubr.f32.mxu0 0.0
    %705 = vmatmul.mubr.f32.gmra.mrb[0].mxu0 %v542
    %v706 = vpop.f32.mrb[0].mxu0
    %v707 = vadd.f32 %v628, %v706
    %v708 = vpop.f32.mrb[0].mxu0
    %709 = vdwg.mxu0
    %v710 = vld [vmem:[%s11] sm:$0xff]
    %v711 = vld [vmem:[%s11 + $0x8] sm:$0xff]
    %v712 = vld [vmem:[%s11 + $0x10] sm:$0x3]
    %714 = vset.pattern.permute.xlu0 0
    %715 = vperm.xlu0 %714, %v710
    %v716 = vpop.permute.xlu0 %715
    %719 = vset.pattern.permute.xlu0 0
    %720 = vperm.xlu0 %719, %v711
    %v721 = vpop.permute.xlu0 %720
    %724 = vset.pattern.permute.xlu0 0
    %725 = vperm.xlu0 %724, %v712
    %v726 = vpop.permute.xlu0 %725
    %v729 = vlaneseq
    %v730 = vshrl.u32 %v729, 7
    %v731 = vsub.s32 0, %v730
    %v732 = vrot.slane %v520, %v731
    %v734 = vmul.f32 %v716, %v732
    %v735 = vmul.f32 %v721, %v732
    %v736 = vmul.f32 %v726, %v732
    %v737 = vld [vmem:[%s13] sm:$0xff]
    %v738 = vld [vmem:[%s13 + $0x8] sm:$0xff]
    %v739 = vld [vmem:[%s13 + $0x10] sm:$0x3]
    %741 = vset.pattern.permute.xlu0 0
    %742 = vperm.xlu0 %741, %v737
    %v743 = vpop.permute.xlu0 %742
    %746 = vset.pattern.permute.xlu0 0
    %747 = vperm.xlu0 %746, %v738
    %v748 = vpop.permute.xlu0 %747
    %751 = vset.pattern.permute.xlu0 0
    %752 = vperm.xlu0 %751, %v739
    %v753 = vpop.permute.xlu0 %752
    %v756 = vlaneseq
    %v757 = vshrl.u32 %v756, 7
    %v758 = vsub.s32 0, %v757
    %v759 = vrot.slane %v521, %v758
    %v761 = vmul.f32 %v743, %v759
    %v762 = vmul.f32 %v748, %v759
    %v763 = vmul.f32 %v753, %v759
    %v764 = vadd.f32 %v734, %v761
    %v765 = vadd.f32 %v735, %v762
    %v766 = vadd.f32 %v736, %v763
    %v768 = vlaneseq
    %v769 = vshrl.u32 %v768, 7
    %v770 = vsub.s32 0, %v769
    %v771 = vrot.slane %v519, %v770
    %v773 = vadd.f32 %v764, %v771
    %v774 = vadd.f32 %v765, %v771
    %v775 = vadd.f32 %v766, %v771
    %vm776 = vcmp.eq.s32.totalorder %v525, 0
    %vm777 = vcmp.eq.s32.totalorder %v526, 0
    %vm778 = vcmp.eq.s32.totalorder %v527, 0
    %v779 = vsel %vm776, 1, 0
    %v780 = vsel %vm777, 1, 0
    %v781 = vsel %vm778, 1, 0
    %782 = vset.pattern.permute.xlu0 0
    %783 = vperm.xlu0 %782, %v779
    %v784 = vpop.permute.xlu0 %783
    %785 = vset.pattern.permute.xlu0 0
    %786 = vperm.xlu0 %785, %v780
    %v787 = vpop.permute.xlu0 %786
    %788 = vset.pattern.permute.xlu0 0
    %789 = vperm.xlu0 %788, %v781
    %v790 = vpop.permute.xlu0 %789
    %vm791 = vcmp.eq.s32.totalorder %v784, 1
    %vm792 = vcmp.eq.s32.totalorder %v787, 1
    %vm793 = vcmp.eq.s32.totalorder %v790, 1
    %v794 = vsel %vm791, %v611, %v697
    %v795 = vsel %vm792, %v616, %v702
    %v796 = vsel %vm793, %v621, %v707
    %v797 = vadd.f32 %v794, %v773
    %v798 = vadd.f32 %v795, %v774
    %v799 = vadd.f32 %v796, %v775
    %vm800 = vcmp.lt.s32.totalorder %v525, 7
    %vm801 = vcmp.lt.s32.totalorder %v526, 7
    %vm802 = vcmp.lt.s32.totalorder %v527, 7
    %v803 = vld [vmem:[%s3] sm:$0xff]
    %v804 = vld [vmem:[%s3 + $0x8] sm:$0xff]
    %v805 = vld [vmem:[%s3 + $0x10] sm:$0x3]
    %v806 = vsel %vm800, 1, 0
    %v807 = vsel %vm801, 1, 0
    %v808 = vsel %vm802, 1, 0
    %809 = vset.pattern.permute.xlu0 0
    %810 = vperm.xlu0 %809, %v806
    %v811 = vpop.permute.xlu0 %810
    %812 = vset.pattern.permute.xlu0 0
    %813 = vperm.xlu0 %812, %v807
    %v814 = vpop.permute.xlu0 %813
    %815 = vset.pattern.permute.xlu0 0
    %816 = vperm.xlu0 %815, %v808
    %v817 = vpop.permute.xlu0 %816
    %vm818 = vcmp.eq.s32.totalorder %v811, 1
    %vm819 = vcmp.eq.s32.totalorder %v814, 1
    %vm820 = vcmp.eq.s32.totalorder %v817, 1
    %v821 = vsel %vm818, %v797, %v803
    %v822 = vsel %vm819, %v798, %v804
    %v823 = vsel %vm820, %v799, %v805
    %v824 = vld [vmem:[%s17] sm:$0xff]
    %v825 = vld [vmem:[%s17 + $0x8] sm:$0xff]
    %v826 = vld [vmem:[%s17 + $0x10] sm:$0x3]
    %v827 = vld [vmem:[%s19] sm:$0x1]
    %828 = vset.pattern.permute.xlu0 0
    %829 = vperm.xlu0 %828, %v824
    %v830 = vpop.permute.xlu0 %829
    %831 = vset.pattern.permute.xlu0 0
    %832 = vperm.xlu0 %831, %v825
    %v833 = vpop.permute.xlu0 %832
    %834 = vset.pattern.permute.xlu0 0
    %835 = vperm.xlu0 %834, %v826
    %v836 = vpop.permute.xlu0 %835
    %v837 = vlaneseq
    %v838 = vshrl.u32 %v837, 7
    %v839 = vsub.s32 0, %v838
    %v840 = vrot.slane %v827, %v839
    %vm841 = vcmp.eq.s32.totalorder %v830, %v840
    %vm842 = vcmp.eq.s32.totalorder %v833, %v840
    %vm843 = vcmp.eq.s32.totalorder %v836, %v840
    %v844 = vld [vmem:[%s9] sm:$0x1]
    %vm845 = vcmp.gt.f32.partialorder %v844, 0.0
    %v846 = vsel %vm845, 1, 0
    %v847 = vlaneseq
    %v848 = vshrl.u32 %v847, 7
    %v849 = vsub.s32 0, %v848
    %v850 = vrot.slane %v846, %v849
    %vm851 = vcmp.eq.s32.totalorder %v850, 1
    %vm852 = vmand %vm841, %vm851
    %vm853 = vmand %vm842, %vm851
    %vm854 = vmand %vm843, %vm851
    %v855 = vsel %vm852, 0.0, -1e+09
    %v856 = vsel %vm853, 0.0, -1e+09
    %v857 = vsel %vm854, 0.0, -1e+09
    %v859 = vlaneseq
    %v860 = vshrl.u32 %v859, 7
    %v861 = vsub.s32 0, %v860
    %v862 = vrot.slane %v479, %v861
    %vm864 = vcmask 261120
    %v866 = vsel %vm864, %v821, 0
    %v869 = vsel %vm864, %v822, 0
    %v872 = vsel %vm864, %v823, 0
    %874 = vmatprep.subr.mxu0 0.0
    %875 = vmatpush1.msra.mxu0 %v489
    %876 = vmatprep.subr.mxu0 0.0
    %877 = vmatpush1.msra.mxu0 %v490
    %878 = vmatprep.subr.mxu0 0.0
    %879 = vmatpush1.msra.mxu0 %v491
    %880 = vmatprep.subr.mxu0 0.0
    %881 = vmatpush1.msra.mxu0 %v492
    %882 = vmatprep.subr.mxu0 0.0
    %883 = vmatpush1.msra.mxu0 0.0
    %884 = vmatprep.subr.mxu0 0.0
    %885 = vmatpush1.msra.mxu0 0.0
    %886 = vmatprep.subr.mxu0 0.0
    %887 = vmatpush1.msra.mxu0 0.0
    %888 = vmatprep.subr.mxu0 0.0
    %889 = vmatpush1.msra.mxu0 0.0
    %890 = vmatprep.subr.mxu0 0.0
    %891 = vmatpush1.msra.mxu0 0.0
    %892 = vmatprep.subr.mxu0 0.0
    %893 = vmatpush1.msra.mxu0 0.0
    %894 = vmatprep.subr.mxu0 0.0
    %895 = vmatpush1.msra.mxu0 0.0
    %896 = vmatprep.subr.mxu0 0.0
    %897 = vmatpush1.msra.mxu0 0.0
    %898 = vmatprep.subr.mxu0 0.0
    %899 = vmatpush1.msra.mxu0 0.0
    %900 = vmatprep.subr.mxu0 0.0
    %901 = vmatpush1.msra.mxu0 0.0
    %902 = vmatprep.subr.mxu0 0.0
    %903 = vmatpush1.msra.mxu0 0.0
    %904 = vmatprep.subr.mxu0 0.0
    %905 = vmatpush1.msra.mxu0 0.0
    %906 = vmatprep.subr.mxu0 0.0
    %907 = vmatpush1.msra.mxu0 0.0
    %908 = vmatprep.subr.mxu0 0.0
    %909 = vmatpush1.msra.mxu0 0.0
    %910 = vmatprep.subr.mxu0 0.0
    %911 = vmatpush1.msra.mxu0 0.0
    %912 = vmatprep.subr.mxu0 0.0
    %913 = vmatpush1.msra.mxu0 0.0
    %914 = vmatprep.subr.mxu0 0.0
    %915 = vmatpush1.msra.mxu0 0.0
    %916 = vmatprep.subr.mxu0 0.0
    %917 = vmatpush1.msra.mxu0 0.0
    %918 = vmatprep.subr.mxu0 0.0
    %919 = vmatpush1.msra.mxu0 0.0
    %920 = vmatprep.subr.mxu0 0.0
    %921 = vmatpush1.msra.mxu0 0.0
    %922 = vmatprep.subr.mxu0 0.0
    %923 = vmatpush1.msra.mxu0 0.0
    %924 = vmatprep.subr.mxu0 0.0
    %925 = vmatpush1.msra.mxu0 0.0
    %926 = vmatprep.subr.mxu0 0.0
    %927 = vmatpush1.msra.mxu0 0.0
    %928 = vmatprep.subr.mxu0 0.0
    %929 = vmatpush1.msra.mxu0 0.0
    %930 = vmatprep.subr.mxu0 0.0
    %931 = vmatpush1.msra.mxu0 0.0
    %932 = vmatprep.subr.mxu0 0.0
    %933 = vmatpush1.msra.mxu0 0.0
    %934 = vmatprep.subr.mxu0 0.0
    %935 = vmatpush1.msra.mxu0 0.0
    %936 = vmatprep.subr.mxu0 0.0
    %937 = vmatpush1.msra.mxu0 0.0
    %938 = vmatprep.mubr.f32.mxu0 0.0
    %939 = vmatmul.mubr.f32.gmra.mrb[0].mxu0 %v866
    %v940 = vpop.f32.mrb[0].mxu0
    %v941 = vadd.f32 %v862, %v940
    %v942 = vpop.f32.mrb[0].mxu0
    %943 = vmatprep.mubr.f32.mxu0 0.0
    %944 = vmatmul.mubr.f32.gmra.mrb[0].mxu0 %v869
    %v945 = vpop.f32.mrb[0].mxu0
    %v946 = vadd.f32 %v862, %v945
    %v947 = vpop.f32.mrb[0].mxu0
    %948 = vmatprep.mubr.f32.mxu0 0.0
    %949 = vmatmul.mubr.f32.gmra.mrb[0].mxu0 %v872
    %v950 = vpop.f32.mrb[0].mxu0
    %v951 = vadd.f32 %v862, %v950
    %v952 = vpop.f32.mrb[0].mxu0
    %953 = vdwg.mxu0
    %v955 = vlaneseq
    %v956 = vshrl.u32 %v955, 7
    %v957 = vsub.s32 0, %v956
    %v958 = vrot.slane %v477, %v957
    %960 = vmatprep.subr.mxu0 0.0
    %961 = vmatpush1.msra.mxu0 %v481
    %962 = vmatprep.subr.mxu0 0.0
    %963 = vmatpush1.msra.mxu0 %v482
    %964 = vmatprep.subr.mxu0 0.0
    %965 = vmatpush1.msra.mxu0 %v483
    %966 = vmatprep.subr.mxu0 0.0
    %967 = vmatpush1.msra.mxu0 %v484
    %968 = vmatprep.subr.mxu0 0.0
    %969 = vmatpush1.msra.mxu0 0.0
    %970 = vmatprep.subr.mxu0 0.0
    %971 = vmatpush1.msra.mxu0 0.0
    %972 = vmatprep.subr.mxu0 0.0
    %973 = vmatpush1.msra.mxu0 0.0
    %974 = vmatprep.subr.mxu0 0.0
    %975 = vmatpush1.msra.mxu0 0.0
    %976 = vmatprep.subr.mxu0 0.0
    %977 = vmatpush1.msra.mxu0 0.0
    %978 = vmatprep.subr.mxu0 0.0
    %979 = vmatpush1.msra.mxu0 0.0
    %980 = vmatprep.subr.mxu0 0.0
    %981 = vmatpush1.msra.mxu0 0.0
    %982 = vmatprep.subr.mxu0 0.0
    %983 = vmatpush1.msra.mxu0 0.0
    %984 = vmatprep.subr.mxu0 0.0
    %985 = vmatpush1.msra.mxu0 0.0
    %986 = vmatprep.subr.mxu0 0.0
    %987 = vmatpush1.msra.mxu0 0.0
    %988 = vmatprep.subr.mxu0 0.0
    %989 = vmatpush1.msra.mxu0 0.0
    %990 = vmatprep.subr.mxu0 0.0
    %991 = vmatpush1.msra.mxu0 0.0
    %992 = vmatprep.subr.mxu0 0.0
    %993 = vmatpush1.msra.mxu0 0.0
    %994 = vmatprep.subr.mxu0 0.0
    %995 = vmatpush1.msra.mxu0 0.0
    %996 = vmatprep.subr.mxu0 0.0
    %997 = vmatpush1.msra.mxu0 0.0
    %998 = vmatprep.subr.mxu0 0.0
    %999 = vmatpush1.msra.mxu0 0.0
    %1000 = vmatprep.subr.mxu0 0.0
    %1001 = vmatpush1.msra.mxu0 0.0
    %1002 = vmatprep.subr.mxu0 0.0
    %1003 = vmatpush1.msra.mxu0 0.0
    %1004 = vmatprep.subr.mxu0 0.0
    %1005 = vmatpush1.msra.mxu0 0.0
    %1006 = vmatprep.subr.mxu0 0.0
    %1007 = vmatpush1.msra.mxu0 0.0
    %1008 = vmatprep.subr.mxu0 0.0
    %1009 = vmatpush1.msra.mxu0 0.0
    %1010 = vmatprep.subr.mxu0 0.0
    %1011 = vmatpush1.msra.mxu0 0.0
    %1012 = vmatprep.subr.mxu0 0.0
    %1013 = vmatpush1.msra.mxu0 0.0
    %1014 = vmatprep.subr.mxu0 0.0
    %1015 = vmatpush1.msra.mxu0 0.0
    %1016 = vmatprep.subr.mxu0 0.0
    %1017 = vmatpush1.msra.mxu0 0.0
    %1018 = vmatprep.subr.mxu0 0.0
    %1019 = vmatpush1.msra.mxu0 0.0
    %1020 = vmatprep.subr.mxu0 0.0
    %1021 = vmatpush1.msra.mxu0 0.0
    %1022 = vmatprep.subr.mxu0 0.0
    %1023 = vmatpush1.msra.mxu0 0.0
    %1024 = vmatprep.mubr.f32.mxu0 0.0
    %1025 = vmatmul.mubr.f32.gmra.mrb[0].mxu0 %v866
    %v1026 = vpop.f32.mrb[0].mxu0
    %v1027 = vadd.f32 %v958, %v1026
    %v1028 = vpop.f32.mrb[0].mxu0
    %1029 = vmatprep.mubr.f32.mxu0 0.0
    %1030 = vmatmul.mubr.f32.gmra.mrb[0].mxu0 %v869
    %v1031 = vpop.f32.mrb[0].mxu0
    %v1032 = vadd.f32 %v958, %v1031
    %v1033 = vpop.f32.mrb[0].mxu0
    %1034 = vmatprep.mubr.f32.mxu0 0.0
    %1035 = vmatmul.mubr.f32.gmra.mrb[0].mxu0 %v872
    %v1036 = vpop.f32.mrb[0].mxu0
    %v1037 = vadd.f32 %v958, %v1036
    %v1038 = vpop.f32.mrb[0].mxu0
    %1039 = vdwg.mxu0
    %v1041 = vlaneseq
    %v1042 = vshrl.u32 %v1041, 7
    %v1043 = vsub.s32 0, %v1042
    %v1044 = vrot.slane %v480, %v1043
    %1046 = vmatprep.subr.mxu0 0.0
    %1047 = vmatpush1.msra.mxu0 %v493
    %1048 = vmatprep.subr.mxu0 0.0
    %1049 = vmatpush1.msra.mxu0 %v494
    %1050 = vmatprep.subr.mxu0 0.0
    %1051 = vmatpush1.msra.mxu0 %v495
    %1052 = vmatprep.subr.mxu0 0.0
    %1053 = vmatpush1.msra.mxu0 %v496
    %1054 = vmatprep.subr.mxu0 0.0
    %1055 = vmatpush1.msra.mxu0 0.0
    %1056 = vmatprep.subr.mxu0 0.0
    %1057 = vmatpush1.msra.mxu0 0.0
    %1058 = vmatprep.subr.mxu0 0.0
    %1059 = vmatpush1.msra.mxu0 0.0
    %1060 = vmatprep.subr.mxu0 0.0
    %1061 = vmatpush1.msra.mxu0 0.0
    %1062 = vmatprep.subr.mxu0 0.0
    %1063 = vmatpush1.msra.mxu0 0.0
    %1064 = vmatprep.subr.mxu0 0.0
    %1065 = vmatpush1.msra.mxu0 0.0
    %1066 = vmatprep.subr.mxu0 0.0
    %1067 = vmatpush1.msra.mxu0 0.0
    %1068 = vmatprep.subr.mxu0 0.0
    %1069 = vmatpush1.msra.mxu0 0.0
    %1070 = vmatprep.subr.mxu0 0.0
    %1071 = vmatpush1.msra.mxu0 0.0
    %1072 = vmatprep.subr.mxu0 0.0
    %1073 = vmatpush1.msra.mxu0 0.0
    %1074 = vmatprep.subr.mxu0 0.0
    %1075 = vmatpush1.msra.mxu0 0.0
    %1076 = vmatprep.subr.mxu0 0.0
    %1077 = vmatpush1.msra.mxu0 0.0
    %1078 = vmatprep.subr.mxu0 0.0
    %1079 = vmatpush1.msra.mxu0 0.0
    %1080 = vmatprep.subr.mxu0 0.0
    %1081 = vmatpush1.msra.mxu0 0.0
    %1082 = vmatprep.subr.mxu0 0.0
    %1083 = vmatpush1.msra.mxu0 0.0
    %1084 = vmatprep.subr.mxu0 0.0
    %1085 = vmatpush1.msra.mxu0 0.0
    %1086 = vmatprep.subr.mxu0 0.0
    %1087 = vmatpush1.msra.mxu0 0.0
    %1088 = vmatprep.subr.mxu0 0.0
    %1089 = vmatpush1.msra.mxu0 0.0
    %1090 = vmatprep.subr.mxu0 0.0
    %1091 = vmatpush1.msra.mxu0 0.0
    %1092 = vmatprep.subr.mxu0 0.0
    %1093 = vmatpush1.msra.mxu0 0.0
    %1094 = vmatprep.subr.mxu0 0.0
    %1095 = vmatpush1.msra.mxu0 0.0
    %1096 = vmatprep.subr.mxu0 0.0
    %1097 = vmatpush1.msra.mxu0 0.0
    %1098 = vmatprep.subr.mxu0 0.0
    %1099 = vmatpush1.msra.mxu0 0.0
    %1100 = vmatprep.subr.mxu0 0.0
    %1101 = vmatpush1.msra.mxu0 0.0
    %1102 = vmatprep.subr.mxu0 0.0
    %1103 = vmatpush1.msra.mxu0 0.0
    %1104 = vmatprep.subr.mxu0 0.0
    %1105 = vmatpush1.msra.mxu0 0.0
    %1106 = vmatprep.subr.mxu0 0.0
    %1107 = vmatpush1.msra.mxu0 0.0
    %1108 = vmatprep.subr.mxu0 0.0
    %1109 = vmatpush1.msra.mxu0 0.0
    %1110 = vmatprep.mubr.f32.mxu0 0.0
    %1111 = vmatmul.mubr.f32.gmra.mrb[0].mxu0 %v866
    %v1112 = vpop.f32.mrb[0].mxu0
    %v1113 = vadd.f32 %v1044, %v1112
    %v1114 = vpop.f32.mrb[0].mxu0
    %1115 = vmatprep.mubr.f32.mxu0 0.0
    %1116 = vmatmul.mubr.f32.gmra.mrb[0].mxu0 %v869
    %v1117 = vpop.f32.mrb[0].mxu0
    %v1118 = vadd.f32 %v1044, %v1117
    %v1119 = vpop.f32.mrb[0].mxu0
    %1120 = vmatprep.mubr.f32.mxu0 0.0
    %1121 = vmatmul.mubr.f32.gmra.mrb[0].mxu0 %v872
    %v1122 = vpop.f32.mrb[0].mxu0
    %v1123 = vadd.f32 %v1044, %v1122
    %v1124 = vpop.f32.mrb[0].mxu0
    %1125 = vdwg.mxu0
    %v1127 = vsel %vm864, %v941, 0
    %v1130 = vsel %vm864, %v946, 0
    %v1133 = vsel %vm864, %v951, 0
    %v1136 = vsel %vm864, %v1027, 0
    %v1139 = vsel %vm864, %v1032, 0
    %v1142 = vsel %vm864, %v1037, 0
    %1144 = vmatprep.subr.mxu0 0.0
    %1145 = vmatpush1.xpose.msra.mxu0 %v1136
    %1146 = vmatprep.subr.mxu0 0.0
    %1147 = vmatpush1.xpose.msra.mxu0 %v1139
    %1148 = vmatprep.subr.mxu0 0.0
    %1149 = vmatpush1.xpose.msra.mxu0 %v1142
    %1150 = vmatprep.subr.mxu0 0.0
    %1151 = vmatpush1.xpose.msra.mxu0 0.0
    %1152 = vmatprep.subr.mxu0 0.0
    %1153 = vmatpush1.xpose.msra.mxu0 0.0
    %1154 = vmatprep.subr.mxu0 0.0
    %1155 = vmatpush1.xpose.msra.mxu0 0.0
    %1156 = vmatprep.subr.mxu0 0.0
    %1157 = vmatpush1.xpose.msra.mxu0 0.0
    %1158 = vmatprep.subr.mxu0 0.0
    %1159 = vmatpush1.xpose.msra.mxu0 0.0
    %1160 = vmatprep.subr.mxu0 0.0
    %1161 = vmatpush1.xpose.msra.mxu0 0.0
    %1162 = vmatprep.subr.mxu0 0.0
    %1163 = vmatpush1.xpose.msra.mxu0 0.0
    %1164 = vmatprep.subr.mxu0 0.0
    %1165 = vmatpush1.xpose.msra.mxu0 0.0
    %1166 = vmatprep.subr.mxu0 0.0
    %1167 = vmatpush1.xpose.msra.mxu0 0.0
    %1168 = vmatprep.subr.mxu0 0.0
    %1169 = vmatpush1.xpose.msra.mxu0 0.0
    %1170 = vmatprep.subr.mxu0 0.0
    %1171 = vmatpush1.xpose.msra.mxu0 0.0
    %1172 = vmatprep.subr.mxu0 0.0
    %1173 = vmatpush1.xpose.msra.mxu0 0.0
    %1174 = vmatprep.subr.mxu0 0.0
    %1175 = vmatpush1.xpose.msra.mxu0 0.0
    %1176 = vmatprep.subr.mxu0 0.0
    %1177 = vmatpush1.xpose.msra.mxu0 0.0
    %1178 = vmatprep.subr.mxu0 0.0
    %1179 = vmatpush1.xpose.msra.mxu0 0.0
    %1180 = vmatprep.subr.mxu0 0.0
    %1181 = vmatpush1.xpose.msra.mxu0 0.0
    %1182 = vmatprep.subr.mxu0 0.0
    %1183 = vmatpush1.xpose.msra.mxu0 0.0
    %1184 = vmatprep.subr.mxu0 0.0
    %1185 = vmatpush1.xpose.msra.mxu0 0.0
    %1186 = vmatprep.subr.mxu0 0.0
    %1187 = vmatpush1.xpose.msra.mxu0 0.0
    %1188 = vmatprep.subr.mxu0 0.0
    %1189 = vmatpush1.xpose.msra.mxu0 0.0
    %1190 = vmatprep.subr.mxu0 0.0
    %1191 = vmatpush1.xpose.msra.mxu0 0.0
    %1192 = vmatprep.subr.mxu0 0.0
    %1193 = vmatpush1.xpose.msra.mxu0 0.0
    %1194 = vmatprep.subr.mxu0 0.0
    %1195 = vmatpush1.xpose.msra.mxu0 0.0
    %1196 = vmatprep.subr.mxu0 0.0
    %1197 = vmatpush1.xpose.msra.mxu0 0.0
    %1198 = vmatprep.subr.mxu0 0.0
    %1199 = vmatpush1.xpose.msra.mxu0 0.0
    %1200 = vmatprep.subr.mxu0 0.0
    %1201 = vmatpush1.xpose.msra.mxu0 0.0
    %1202 = vmatprep.subr.mxu0 0.0
    %1203 = vmatpush1.xpose.msra.mxu0 0.0
    %1204 = vmatprep.subr.mxu0 0.0
    %1205 = vmatpush1.xpose.msra.mxu0 0.0
    %1206 = vmatprep.subr.mxu0 0.0
    %1207 = vmatpush1.xpose.msra.mxu0 0.0
    %1208 = vmatprep.mubr.f32.mxu0 0.0
    %1209 = vmatmul.mubr.f32.gmra.mrb[0].mxu0 %v1127
    %v1210 = vpop.f32.mrb[0].mxu0
    %v1211 = vadd.f32 0.0, %v1210
    %v1212 = vpop.f32.mrb[0].mxu0
    %1213 = vmatprep.mubr.f32.mxu0 0.0
    %1214 = vmatmul.mubr.f32.gmra.mrb[0].mxu0 %v1130
    %v1215 = vpop.f32.mrb[0].mxu0
    %v1216 = vadd.f32 0.0, %v1215
    %v1217 = vpop.f32.mrb[0].mxu0
    %1218 = vmatprep.mubr.f32.mxu0 0.0
    %1219 = vmatmul.mubr.f32.gmra.mrb[0].mxu0 %v1133
    %v1220 = vpop.f32.mrb[0].mxu0
    %v1221 = vadd.f32 0.0, %v1220
    %v1222 = vpop.f32.mrb[0].mxu0
    %1223 = vdwg.mxu0
    %v1224 = vmul.f32 %v1211, 0.17677669
    %v1225 = vmul.f32 %v1216, 0.17677669
    %v1226 = vmul.f32 %v1221, 0.17677669
    %v1227 = vadd.f32 %v1224, %v855
    %v1228 = vadd.f32 %v1225, %v856
    %v1229 = vadd.f32 %v1226, %v857
    %vm1230 = vcmask 146432
    %v1231 = vsel %vm1230, %v1227, -inf
    %1232 = vmax.xlane.f32.xlu0 %v1231
    %v1233 = vpop.xlane.xlu0 %1232
    %v1234 = vsel %vm1230, %v1228, -inf
    %1235 = vmax.xlane.f32.xlu0 %v1234
    %v1236 = vpop.xlane.xlu0 %1235
    %vm1237 = vcmask 140288
    %v1238 = vsel %vm1237, %v1229, -inf
    %1239 = vmax.xlane.f32.xlu0 %v1238
    %v1240 = vpop.xlane.xlu0 %1239
    %v1241 = vsub.f32 %v1227, %v1233
    %v1242 = vsub.f32 %v1228, %v1236
    %v1243 = vsub.f32 %v1229, %v1240
    %v1244 = vmul.f32 %v1241, 1.442695
    %v1245 = vpow.pop %v1244
    %v1246 = vmul.f32 %v1242, 1.442695
    %v1247 = vpow.pop %v1246
    %v1248 = vmul.f32 %v1243, 1.442695
    %v1249 = vpow.pop %v1248
    %v1250 = vsel %vm1230, %v1245, 0.0
    %1251 = vadd.xlane.f32.xlu0 %v1250
    %v1252 = vpop.xlane.xlu0 %1251
    %v1253 = vsel %vm1230, %v1247, 0.0
    %1254 = vadd.xlane.f32.xlu0 %v1253
    %v1255 = vpop.xlane.xlu0 %1254
    %v1256 = vsel %vm1237, %v1249, 0.0
    %1257 = vadd.xlane.f32.xlu0 %v1256
    %v1258 = vpop.xlane.xlu0 %1257
    %v1259 = vrcp.pop %v1252
    %v1260 = vrcp.pop %v1255
    %v1261 = vrcp.pop %v1258
    %v1262 = vmul.f32 %v1245, %v1259
    %v1263 = vmul.f32 %v1247, %v1260
    %v1264 = vmul.f32 %v1249, %v1261
    %v1266 = vsel %vm1230, %v1262, 0
    %v1269 = vsel %vm1230, %v1263, 0
    %v1272 = vsel %vm1230, %v1264, 0
    %vm1274 = vcmask 1041408
    %v1276 = vsel %vm1274, %v1123, 0
    %1278 = vmatprep.subr.mxu0 0.0
    %1279 = vmatpush1.msra.mxu0 %v1113
    %1280 = vmatprep.subr.mxu0 0.0
    %1281 = vmatpush1.msra.mxu0 %v1118
    %1282 = vmatprep.subr.mxu0 0.0
    %1283 = vmatpush1.msra.mxu0 %v1276
    %1284 = vmatprep.subr.mxu0 0.0
    %1285 = vmatpush1.msra.mxu0 0.0
    %1286 = vmatprep.subr.mxu0 0.0
    %1287 = vmatpush1.msra.mxu0 0.0
    %1288 = vmatprep.subr.mxu0 0.0
    %1289 = vmatpush1.msra.mxu0 0.0
    %1290 = vmatprep.subr.mxu0 0.0
    %1291 = vmatpush1.msra.mxu0 0.0
    %1292 = vmatprep.subr.mxu0 0.0
    %1293 = vmatpush1.msra.mxu0 0.0
    %1294 = vmatprep.subr.mxu0 0.0
    %1295 = vmatpush1.msra.mxu0 0.0
    %1296 = vmatprep.subr.mxu0 0.0
    %1297 = vmatpush1.msra.mxu0 0.0
    %1298 = vmatprep.subr.mxu0 0.0
    %1299 = vmatpush1.msra.mxu0 0.0
    %1300 = vmatprep.subr.mxu0 0.0
    %1301 = vmatpush1.msra.mxu0 0.0
    %1302 = vmatprep.subr.mxu0 0.0
    %1303 = vmatpush1.msra.mxu0 0.0
    %1304 = vmatprep.subr.mxu0 0.0
    %1305 = vmatpush1.msra.mxu0 0.0
    %1306 = vmatprep.subr.mxu0 0.0
    %1307 = vmatpush1.msra.mxu0 0.0
    %1308 = vmatprep.subr.mxu0 0.0
    %1309 = vmatpush1.msra.mxu0 0.0
    %1310 = vmatprep.subr.mxu0 0.0
    %1311 = vmatpush1.msra.mxu0 0.0
    %1312 = vmatprep.subr.mxu0 0.0
    %1313 = vmatpush1.msra.mxu0 0.0
    %1314 = vmatprep.subr.mxu0 0.0
    %1315 = vmatpush1.msra.mxu0 0.0
    %1316 = vmatprep.subr.mxu0 0.0
    %1317 = vmatpush1.msra.mxu0 0.0
    %1318 = vmatprep.subr.mxu0 0.0
    %1319 = vmatpush1.msra.mxu0 0.0
    %1320 = vmatprep.subr.mxu0 0.0
    %1321 = vmatpush1.msra.mxu0 0.0
    %1322 = vmatprep.subr.mxu0 0.0
    %1323 = vmatpush1.msra.mxu0 0.0
    %1324 = vmatprep.subr.mxu0 0.0
    %1325 = vmatpush1.msra.mxu0 0.0
    %1326 = vmatprep.subr.mxu0 0.0
    %1327 = vmatpush1.msra.mxu0 0.0
    %1328 = vmatprep.subr.mxu0 0.0
    %1329 = vmatpush1.msra.mxu0 0.0
    %1330 = vmatprep.subr.mxu0 0.0
    %1331 = vmatpush1.msra.mxu0 0.0
    %1332 = vmatprep.subr.mxu0 0.0
    %1333 = vmatpush1.msra.mxu0 0.0
    %1334 = vmatprep.subr.mxu0 0.0
    %1335 = vmatpush1.msra.mxu0 0.0
    %1336 = vmatprep.subr.mxu0 0.0
    %1337 = vmatpush1.msra.mxu0 0.0
    %1338 = vmatprep.subr.mxu0 0.0
    %1339 = vmatpush1.msra.mxu0 0.0
    %1340 = vmatprep.subr.mxu0 0.0
    %1341 = vmatpush1.msra.mxu0 0.0
    %1342 = vmatprep.mubr.f32.mxu0 0.0
    %1343 = vmatmul.mubr.f32.gmra.mrb[0].mxu0 %v1266
    %v1344 = vpop.f32.mrb[0].mxu0
    %v1345 = vadd.f32 0.0, %v1344
    %v1346 = vpop.f32.mrb[0].mxu0
    %1347 = vmatprep.mubr.f32.mxu0 0.0
    %1348 = vmatmul.mubr.f32.gmra.mrb[0].mxu0 %v1269
    %v1349 = vpop.f32.mrb[0].mxu0
    %v1350 = vadd.f32 0.0, %v1349
    %v1351 = vpop.f32.mrb[0].mxu0
    %1352 = vmatprep.mubr.f32.mxu0 0.0
    %1353 = vmatmul.mubr.f32.gmra.mrb[0].mxu0 %v1272
    %v1354 = vpop.f32.mrb[0].mxu0
    %v1355 = vadd.f32 0.0, %v1354
    %v1356 = vpop.f32.mrb[0].mxu0
    %1357 = vdwg.mxu0
    %v1359 = vlaneseq
    %v1360 = vshrl.u32 %v1359, 7
    %v1361 = vsub.s32 0, %v1360
    %v1362 = vrot.slane %v478, %v1361
    %v1365 = vsel %vm864, %v1345, 0
    %v1368 = vsel %vm864, %v1350, 0
    %v1371 = vsel %vm864, %v1355, 0
    %1373 = vmatprep.subr.mxu0 0.0
    %1374 = vmatpush1.msra.mxu0 %v485
    %1375 = vmatprep.subr.mxu0 0.0
    %1376 = vmatpush1.msra.mxu0 %v486
    %1377 = vmatprep.subr.mxu0 0.0
    %1378 = vmatpush1.msra.mxu0 %v487
    %1379 = vmatprep.subr.mxu0 0.0
    %1380 = vmatpush1.msra.mxu0 %v488
    %1381 = vmatprep.subr.mxu0 0.0
    %1382 = vmatpush1.msra.mxu0 0.0
    %1383 = vmatprep.subr.mxu0 0.0
    %1384 = vmatpush1.msra.mxu0 0.0
    %1385 = vmatprep.subr.mxu0 0.0
    %1386 = vmatpush1.msra.mxu0 0.0
    %1387 = vmatprep.subr.mxu0 0.0
    %1388 = vmatpush1.msra.mxu0 0.0
    %1389 = vmatprep.subr.mxu0 0.0
    %1390 = vmatpush1.msra.mxu0 0.0
    %1391 = vmatprep.subr.mxu0 0.0
    %1392 = vmatpush1.msra.mxu0 0.0
    %1393 = vmatprep.subr.mxu0 0.0
    %1394 = vmatpush1.msra.mxu0 0.0
    %1395 = vmatprep.subr.mxu0 0.0
    %1396 = vmatpush1.msra.mxu0 0.0
    %1397 = vmatprep.subr.mxu0 0.0
    %1398 = vmatpush1.msra.mxu0 0.0
    %1399 = vmatprep.subr.mxu0 0.0
    %1400 = vmatpush1.msra.mxu0 0.0
    %1401 = vmatprep.subr.mxu0 0.0
    %1402 = vmatpush1.msra.mxu0 0.0
    %1403 = vmatprep.subr.mxu0 0.0
    %1404 = vmatpush1.msra.mxu0 0.0
    %1405 = vmatprep.subr.mxu0 0.0
    %1406 = vmatpush1.msra.mxu0 0.0
    %1407 = vmatprep.subr.mxu0 0.0
    %1408 = vmatpush1.msra.mxu0 0.0
    %1409 = vmatprep.subr.mxu0 0.0
    %1410 = vmatpush1.msra.mxu0 0.0
    %1411 = vmatprep.subr.mxu0 0.0
    %1412 = vmatpush1.msra.mxu0 0.0
    %1413 = vmatprep.subr.mxu0 0.0
    %1414 = vmatpush1.msra.mxu0 0.0
    %1415 = vmatprep.subr.mxu0 0.0
    %1416 = vmatpush1.msra.mxu0 0.0
    %1417 = vmatprep.subr.mxu0 0.0
    %1418 = vmatpush1.msra.mxu0 0.0
    %1419 = vmatprep.subr.mxu0 0.0
    %1420 = vmatpush1.msra.mxu0 0.0
    %1421 = vmatprep.subr.mxu0 0.0
    %1422 = vmatpush1.msra.mxu0 0.0
    %1423 = vmatprep.subr.mxu0 0.0
    %1424 = vmatpush1.msra.mxu0 0.0
    %1425 = vmatprep.subr.mxu0 0.0
    %1426 = vmatpush1.msra.mxu0 0.0
    %1427 = vmatprep.subr.mxu0 0.0
    %1428 = vmatpush1.msra.mxu0 0.0
    %1429 = vmatprep.subr.mxu0 0.0
    %1430 = vmatpush1.msra.mxu0 0.0
    %1431 = vmatprep.subr.mxu0 0.0
    %1432 = vmatpush1.msra.mxu0 0.0
    %1433 = vmatprep.subr.mxu0 0.0
    %1434 = vmatpush1.msra.mxu0 0.0
    %1435 = vmatprep.subr.mxu0 0.0
    %1436 = vmatpush1.msra.mxu0 0.0
    %1437 = vmatprep.mubr.f32.mxu0 0.0
    %1438 = vmatmul.mubr.f32.gmra.mrb[0].mxu0 %v1365
    %v1439 = vpop.f32.mrb[0].mxu0
    %v1440 = vadd.f32 %v1362, %v1439
    %v1441 = vpop.f32.mrb[0].mxu0
    %1442 = vmatprep.mubr.f32.mxu0 0.0
    %1443 = vmatmul.mubr.f32.gmra.mrb[0].mxu0 %v1368
    %v1444 = vpop.f32.mrb[0].mxu0
    %v1445 = vadd.f32 %v1362, %v1444
    %v1446 = vpop.f32.mrb[0].mxu0
    %1447 = vmatprep.mubr.f32.mxu0 0.0
    %1448 = vmatmul.mubr.f32.gmra.mrb[0].mxu0 %v1371
    %v1449 = vpop.f32.mrb[0].mxu0
    %v1450 = vadd.f32 %v1362, %v1449
    %v1451 = vpop.f32.mrb[0].mxu0
    %1452 = vdwg.mxu0
    %v1453 = vadd.f32 %v821, %v1440
    %v1454 = vadd.f32 %v822, %v1445
    %v1455 = vadd.f32 %v823, %v1450
    %v1456 = vsel %vm864, %v1453, 0.0
    %1457 = vadd.xlane.f32.xlu0 %v1456
    %v1458 = vpop.xlane.xlu0 %1457
    %v1459 = vsel %vm864, %v1454, 0.0
    %1460 = vadd.xlane.f32.xlu0 %v1459
    %v1461 = vpop.xlane.xlu0 %1460
    %vm1462 = vcmask 254976
    %v1463 = vsel %vm1462, %v1455, 0.0
    %1464 = vadd.xlane.f32.xlu0 %v1463
    %v1465 = vpop.xlane.xlu0 %1464
    %v1466 = vrcp.pop 32.0
    %v1467 = vmul.f32 %v1458, %v1466
    %v1468 = vmul.f32 %v1461, %v1466
    %v1469 = vmul.f32 %v1465, %v1466
    %v1470 = vsub.f32 %v1453, %v1467
    %v1471 = vsub.f32 %v1454, %v1468
    %v1472 = vsub.f32 %v1455, %v1469
    %v1473 = vmul.f32 %v1470, %v1470
    %v1474 = vmul.f32 %v1471, %v1471
    %v1475 = vmul.f32 %v1472, %v1472
    %v1476 = vsel %vm864, %v1473, 0.0
    %1477 = vadd.xlane.f32.xlu0 %v1476
    %v1478 = vpop.xlane.xlu0 %1477
    %v1479 = vsel %vm864, %v1474, 0.0
    %1480 = vadd.xlane.f32.xlu0 %v1479
    %v1481 = vpop.xlane.xlu0 %1480
    %v1482 = vsel %vm1462, %v1475, 0.0
    %1483 = vadd.xlane.f32.xlu0 %v1482
    %v1484 = vpop.xlane.xlu0 %1483
    %v1485 = vmul.f32 %v1478, %v1466
    %v1486 = vmul.f32 %v1481, %v1466
    %v1487 = vmul.f32 %v1484, %v1466
    %v1488 = vadd.f32 %v1485, 1e-05
    %v1489 = vadd.f32 %v1486, 1e-05
    %v1490 = vadd.f32 %v1487, 1e-05
    %v1491 = vrsqrt.pop %v1488
    %v1492 = vrsqrt.pop %v1489
    %v1493 = vrsqrt.pop %v1490
    %v1494 = vmul.f32 %v1470, %v1491
    %v1495 = vmul.f32 %v1471, %v1492
    %v1496 = vmul.f32 %v1472, %v1493
    %v1498 = vlaneseq
    %v1499 = vshrl.u32 %v1498, 7
    %v1500 = vsub.s32 0, %v1499
    %v1501 = vrot.slane %v512, %v1500
    %v1503 = vmul.f32 %v1494, %v1501
    %v1504 = vmul.f32 %v1495, %v1501
    %v1505 = vmul.f32 %v1496, %v1501
    %v1507 = vlaneseq
    %v1508 = vshrl.u32 %v1507, 7
    %v1509 = vsub.s32 0, %v1508
    %v1510 = vrot.slane %v511, %v1509
    %v1512 = vadd.f32 %v1503, %v1510
    %v1513 = vadd.f32 %v1504, %v1510
    %v1514 = vadd.f32 %v1505, %v1510
    %v1516 = vlaneseq
    %v1517 = vshrl.u32 %v1516, 7
    %v1518 = vsub.s32 0, %v1517
    %v1519 = vrot.slane %v497, %v1518
    %v1522 = vsel %vm864, %v1512, 0
    %v1525 = vsel %vm864, %v1513, 0
    %v1528 = vsel %vm864, %v1514, 0
    %1530 = vmatprep.subr.mxu0 0.0
    %1531 = vmatpush1.msra.mxu0 %v498
    %1532 = vmatprep.subr.mxu0 0.0
    %1533 = vmatpush1.msra.mxu0 %v499
    %1534 = vmatprep.subr.mxu0 0.0
    %1535 = vmatpush1.msra.mxu0 %v500
    %1536 = vmatprep.subr.mxu0 0.0
    %1537 = vmatpush1.msra.mxu0 %v501
    %1538 = vmatprep.subr.mxu0 0.0
    %1539 = vmatpush1.msra.mxu0 0.0
    %1540 = vmatprep.subr.mxu0 0.0
    %1541 = vmatpush1.msra.mxu0 0.0
    %1542 = vmatprep.subr.mxu0 0.0
    %1543 = vmatpush1.msra.mxu0 0.0
    %1544 = vmatprep.subr.mxu0 0.0
    %1545 = vmatpush1.msra.mxu0 0.0
    %1546 = vmatprep.subr.mxu0 0.0
    %1547 = vmatpush1.msra.mxu0 0.0
    %1548 = vmatprep.subr.mxu0 0.0
    %1549 = vmatpush1.msra.mxu0 0.0
    %1550 = vmatprep.subr.mxu0 0.0
    %1551 = vmatpush1.msra.mxu0 0.0
    %1552 = vmatprep.subr.mxu0 0.0
    %1553 = vmatpush1.msra.mxu0 0.0
    %1554 = vmatprep.subr.mxu0 0.0
    %1555 = vmatpush1.msra.mxu0 0.0
    %1556 = vmatprep.subr.mxu0 0.0
    %1557 = vmatpush1.msra.mxu0 0.0
    %1558 = vmatprep.subr.mxu0 0.0
    %1559 = vmatpush1.msra.mxu0 0.0
    %1560 = vmatprep.subr.mxu0 0.0
    %1561 = vmatpush1.msra.mxu0 0.0
    %1562 = vmatprep.subr.mxu0 0.0
    %1563 = vmatpush1.msra.mxu0 0.0
    %1564 = vmatprep.subr.mxu0 0.0
    %1565 = vmatpush1.msra.mxu0 0.0
    %1566 = vmatprep.subr.mxu0 0.0
    %1567 = vmatpush1.msra.mxu0 0.0
    %1568 = vmatprep.subr.mxu0 0.0
    %1569 = vmatpush1.msra.mxu0 0.0
    %1570 = vmatprep.subr.mxu0 0.0
    %1571 = vmatpush1.msra.mxu0 0.0
    %1572 = vmatprep.subr.mxu0 0.0
    %1573 = vmatpush1.msra.mxu0 0.0
    %1574 = vmatprep.subr.mxu0 0.0
    %1575 = vmatpush1.msra.mxu0 0.0
    %1576 = vmatprep.subr.mxu0 0.0
    %1577 = vmatpush1.msra.mxu0 0.0
    %1578 = vmatprep.subr.mxu0 0.0
    %1579 = vmatpush1.msra.mxu0 0.0
    %1580 = vmatprep.subr.mxu0 0.0
    %1581 = vmatpush1.msra.mxu0 0.0
    %1582 = vmatprep.subr.mxu0 0.0
    %1583 = vmatpush1.msra.mxu0 0.0
    %1584 = vmatprep.subr.mxu0 0.0
    %1585 = vmatpush1.msra.mxu0 0.0
    %1586 = vmatprep.subr.mxu0 0.0
    %1587 = vmatpush1.msra.mxu0 0.0
    %1588 = vmatprep.subr.mxu0 0.0
    %1589 = vmatpush1.msra.mxu0 0.0
    %1590 = vmatprep.subr.mxu0 0.0
    %1591 = vmatpush1.msra.mxu0 0.0
    %1592 = vmatprep.subr.mxu0 0.0
    %1593 = vmatpush1.msra.mxu0 0.0
    %1594 = vmatprep.mubr.f32.mxu0 0.0
    %1595 = vmatmul.mubr.f32.gmra.mrb[0].mxu0 %v1522
    %v1596 = vpop.f32.mrb[0].mxu0
    %v1597 = vadd.f32 %v1519, %v1596
    %v1598 = vpop.f32.mrb[0].mxu0
    %1599 = vmatprep.mubr.f32.mxu0 0.0
    %1600 = vmatmul.mubr.f32.gmra.mrb[0].mxu0 %v1525
    %v1601 = vpop.f32.mrb[0].mxu0
    %v1602 = vadd.f32 %v1519, %v1601
    %v1603 = vpop.f32.mrb[0].mxu0
    %1604 = vmatprep.mubr.f32.mxu0 0.0
    %1605 = vmatmul.mubr.f32.gmra.mrb[0].mxu0 %v1528
    %v1606 = vpop.f32.mrb[0].mxu0
    %v1607 = vadd.f32 %v1519, %v1606
    %v1608 = vpop.f32.mrb[0].mxu0
    %1609 = vdwg.mxu0
    %v1610 = vmax.f32 %v1597, 0.0
    %v1611 = vmax.f32 %v1602, 0.0
    %v1612 = vmax.f32 %v1607, 0.0
    %v1614 = vlaneseq
    %v1615 = vshrl.u32 %v1614, 7
    %v1616 = vsub.s32 0, %v1615
    %v1617 = vrot.slane %v502, %v1616
    %vm1619 = vcmask 523264
    %v1621 = vsel %vm1619, %v1610, 0
    %v1624 = vsel %vm1619, %v1611, 0
    %v1627 = vsel %vm1619, %v1612, 0
    %1629 = vmatprep.subr.mxu0 0.0
    %1630 = vmatpush1.msra.mxu0 %v503
    %1631 = vmatprep.subr.mxu0 0.0
    %1632 = vmatpush1.msra.mxu0 %v504
    %1633 = vmatprep.subr.mxu0 0.0
    %1634 = vmatpush1.msra.mxu0 %v505
    %1635 = vmatprep.subr.mxu0 0.0
    %1636 = vmatpush1.msra.mxu0 %v506
    %1637 = vmatprep.subr.mxu0 0.0
    %1638 = vmatpush1.msra.mxu0 %v507
    %1639 = vmatprep.subr.mxu0 0.0
    %1640 = vmatpush1.msra.mxu0 %v508
    %1641 = vmatprep.subr.mxu0 0.0
    %1642 = vmatpush1.msra.mxu0 %v509
    %1643 = vmatprep.subr.mxu0 0.0
    %1644 = vmatpush1.msra.mxu0 %v510
    %1645 = vmatprep.subr.mxu0 0.0
    %1646 = vmatpush1.msra.mxu0 0.0
    %1647 = vmatprep.subr.mxu0 0.0
    %1648 = vmatpush1.msra.mxu0 0.0
    %1649 = vmatprep.subr.mxu0 0.0
    %1650 = vmatpush1.msra.mxu0 0.0
    %1651 = vmatprep.subr.mxu0 0.0
    %1652 = vmatpush1.msra.mxu0 0.0
    %1653 = vmatprep.subr.mxu0 0.0
    %1654 = vmatpush1.msra.mxu0 0.0
    %1655 = vmatprep.subr.mxu0 0.0
    %1656 = vmatpush1.msra.mxu0 0.0
    %1657 = vmatprep.subr.mxu0 0.0
    %1658 = vmatpush1.msra.mxu0 0.0
    %1659 = vmatprep.subr.mxu0 0.0
    %1660 = vmatpush1.msra.mxu0 0.0
    %1661 = vmatprep.subr.mxu0 0.0
    %1662 = vmatpush1.msra.mxu0 0.0
    %1663 = vmatprep.subr.mxu0 0.0
    %1664 = vmatpush1.msra.mxu0 0.0
    %1665 = vmatprep.subr.mxu0 0.0
    %1666 = vmatpush1.msra.mxu0 0.0
    %1667 = vmatprep.subr.mxu0 0.0
    %1668 = vmatpush1.msra.mxu0 0.0
    %1669 = vmatprep.subr.mxu0 0.0
    %1670 = vmatpush1.msra.mxu0 0.0
    %1671 = vmatprep.subr.mxu0 0.0
    %1672 = vmatpush1.msra.mxu0 0.0
    %1673 = vmatprep.subr.mxu0 0.0
    %1674 = vmatpush1.msra.mxu0 0.0
    %1675 = vmatprep.subr.mxu0 0.0
    %1676 = vmatpush1.msra.mxu0 0.0
    %1677 = vmatprep.subr.mxu0 0.0
    %1678 = vmatpush1.msra.mxu0 0.0
    %1679 = vmatprep.subr.mxu0 0.0
    %1680 = vmatpush1.msra.mxu0 0.0
    %1681 = vmatprep.subr.mxu0 0.0
    %1682 = vmatpush1.msra.mxu0 0.0
    %1683 = vmatprep.subr.mxu0 0.0
    %1684 = vmatpush1.msra.mxu0 0.0
    %1685 = vmatprep.subr.mxu0 0.0
    %1686 = vmatpush1.msra.mxu0 0.0
    %1687 = vmatprep.subr.mxu0 0.0
    %1688 = vmatpush1.msra.mxu0 0.0
    %1689 = vmatprep.subr.mxu0 0.0
    %1690 = vmatpush1.msra.mxu0 0.0
    %1691 = vmatprep.subr.mxu0 0.0
    %1692 = vmatpush1.msra.mxu0 0.0
    %1693 = vmatprep.mubr.f32.mxu0 0.0
    %1694 = vmatmul.mubr.f32.gmra.mrb[0].mxu0 %v1621
    %v1695 = vpop.f32.mrb[0].mxu0
    %v1696 = vadd.f32 %v1617, %v1695
    %v1697 = vpop.f32.mrb[0].mxu0
    %1698 = vmatprep.mubr.f32.mxu0 0.0
    %1699 = vmatmul.mubr.f32.gmra.mrb[0].mxu0 %v1624
    %v1700 = vpop.f32.mrb[0].mxu0
    %v1701 = vadd.f32 %v1617, %v1700
    %v1702 = vpop.f32.mrb[0].mxu0
    %1703 = vmatprep.mubr.f32.mxu0 0.0
    %1704 = vmatmul.mubr.f32.gmra.mrb[0].mxu0 %v1627
    %v1705 = vpop.f32.mrb[0].mxu0
    %v1706 = vadd.f32 %v1617, %v1705
    %v1707 = vpop.f32.mrb[0].mxu0
    %1708 = vdwg.mxu0
    %v1709 = vadd.f32 %v1512, %v1696
    %v1710 = vadd.f32 %v1513, %v1701
    %v1711 = vadd.f32 %v1514, %v1706
    %v1712 = vsel %vm864, %v1709, 0.0
    %1713 = vadd.xlane.f32.xlu0 %v1712
    %v1714 = vpop.xlane.xlu0 %1713
    %v1715 = vsel %vm864, %v1710, 0.0
    %1716 = vadd.xlane.f32.xlu0 %v1715
    %v1717 = vpop.xlane.xlu0 %1716
    %v1718 = vsel %vm1462, %v1711, 0.0
    %1719 = vadd.xlane.f32.xlu0 %v1718
    %v1720 = vpop.xlane.xlu0 %1719
    %v1721 = vmul.f32 %v1714, %v1466
    %v1722 = vmul.f32 %v1717, %v1466
    %v1723 = vmul.f32 %v1720, %v1466
    %v1724 = vsub.f32 %v1709, %v1721
    %v1725 = vsub.f32 %v1710, %v1722
    %v1726 = vsub.f32 %v1711, %v1723
    %v1727 = vmul.f32 %v1724, %v1724
    %v1728 = vmul.f32 %v1725, %v1725
    %v1729 = vmul.f32 %v1726, %v1726
    %v1730 = vsel %vm864, %v1727, 0.0
    %1731 = vadd.xlane.f32.xlu0 %v1730
    %v1732 = vpop.xlane.xlu0 %1731
    %v1733 = vsel %vm864, %v1728, 0.0
    %1734 = vadd.xlane.f32.xlu0 %v1733
    %v1735 = vpop.xlane.xlu0 %1734
    %v1736 = vsel %vm1462, %v1729, 0.0
    %1737 = vadd.xlane.f32.xlu0 %v1736
    %v1738 = vpop.xlane.xlu0 %1737
    %v1739 = vmul.f32 %v1732, %v1466
    %v1740 = vmul.f32 %v1735, %v1466
    %v1741 = vmul.f32 %v1738, %v1466
    %v1742 = vadd.f32 %v1739, 1e-05
    %v1743 = vadd.f32 %v1740, 1e-05
    %v1744 = vadd.f32 %v1741, 1e-05
    %v1745 = vrsqrt.pop %v1742
    %v1746 = vrsqrt.pop %v1743
    %v1747 = vrsqrt.pop %v1744
    %v1748 = vmul.f32 %v1724, %v1745
    %v1749 = vmul.f32 %v1725, %v1746
    %v1750 = vmul.f32 %v1726, %v1747
    %v1752 = vlaneseq
    %v1753 = vshrl.u32 %v1752, 7
    %v1754 = vsub.s32 0, %v1753
    %v1755 = vrot.slane %v514, %v1754
    %v1757 = vmul.f32 %v1748, %v1755
    %v1758 = vmul.f32 %v1749, %v1755
    %v1759 = vmul.f32 %v1750, %v1755
    %v1761 = vlaneseq
    %v1762 = vshrl.u32 %v1761, 7
    %v1763 = vsub.s32 0, %v1762
    %v1764 = vrot.slane %v513, %v1763
    %v1766 = vadd.f32 %v1757, %v1764
    %v1767 = vadd.f32 %v1758, %v1764
    %v1768 = vadd.f32 %v1759, %v1764
    %1769 = vst.msk [vmem:[%s131] sm:$0xff] %vm864, %v1766
    %1770 = vst.msk [vmem:[%s131 + $0x8] sm:$0xff] %vm864, %v1767
    %1771 = vst.msk [vmem:[%s131 + $0x10] sm:$0x3] %vm1462, %v1768
    %v1772 = vld [vmem:[%s5] sm:$0xff]
    %v1773 = vld [vmem:[%s5 + $0x8] sm:$0x3]
    %v1775 = vlaneseq
    %v1776 = vshrl.u32 %v1775, 7
    %v1777 = vsub.s32 0, %v1776
    %v1778 = vrot.slane %v515, %v1777
    %v1781 = vsel %vm534, %v1772, 0
    %v1784 = vsel %vm534, %v1773, 0
    %1786 = vmatprep.subr.mxu0 0.0
    %1787 = vmatpush1.msra.mxu0 %v516
    %1788 = vmatprep.subr.mxu0 0.0
    %1789 = vmatpush1.msra.mxu0 0.0
    %1790 = vmatprep.subr.mxu0 0.0
    %1791 = vmatpush1.msra.mxu0 0.0
    %1792 = vmatprep.subr.mxu0 0.0
    %1793 = vmatpush1.msra.mxu0 0.0
    %1794 = vmatprep.subr.mxu0 0.0
    %1795 = vmatpush1.msra.mxu0 0.0
    %1796 = vmatprep.subr.mxu0 0.0
    %1797 = vmatpush1.msra.mxu0 0.0
    %1798 = vmatprep.subr.mxu0 0.0
    %1799 = vmatpush1.msra.mxu0 0.0
    %1800 = vmatprep.subr.mxu0 0.0
    %1801 = vmatpush1.msra.mxu0 0.0
    %1802 = vmatprep.subr.mxu0 0.0
    %1803 = vmatpush1.msra.mxu0 0.0
    %1804 = vmatprep.subr.mxu0 0.0
    %1805 = vmatpush1.msra.mxu0 0.0
    %1806 = vmatprep.subr.mxu0 0.0
    %1807 = vmatpush1.msra.mxu0 0.0
    %1808 = vmatprep.subr.mxu0 0.0
    %1809 = vmatpush1.msra.mxu0 0.0
    %1810 = vmatprep.subr.mxu0 0.0
    %1811 = vmatpush1.msra.mxu0 0.0
    %1812 = vmatprep.subr.mxu0 0.0
    %1813 = vmatpush1.msra.mxu0 0.0
    %1814 = vmatprep.subr.mxu0 0.0
    %1815 = vmatpush1.msra.mxu0 0.0
    %1816 = vmatprep.subr.mxu0 0.0
    %1817 = vmatpush1.msra.mxu0 0.0
    %1818 = vmatprep.subr.mxu0 0.0
    %1819 = vmatpush1.msra.mxu0 0.0
    %1820 = vmatprep.subr.mxu0 0.0
    %1821 = vmatpush1.msra.mxu0 0.0
    %1822 = vmatprep.subr.mxu0 0.0
    %1823 = vmatpush1.msra.mxu0 0.0
    %1824 = vmatprep.subr.mxu0 0.0
    %1825 = vmatpush1.msra.mxu0 0.0
    %1826 = vmatprep.subr.mxu0 0.0
    %1827 = vmatpush1.msra.mxu0 0.0
    %1828 = vmatprep.subr.mxu0 0.0
    %1829 = vmatpush1.msra.mxu0 0.0
    %1830 = vmatprep.subr.mxu0 0.0
    %1831 = vmatpush1.msra.mxu0 0.0
    %1832 = vmatprep.subr.mxu0 0.0
    %1833 = vmatpush1.msra.mxu0 0.0
    %1834 = vmatprep.subr.mxu0 0.0
    %1835 = vmatpush1.msra.mxu0 0.0
    %1836 = vmatprep.subr.mxu0 0.0
    %1837 = vmatpush1.msra.mxu0 0.0
    %1838 = vmatprep.subr.mxu0 0.0
    %1839 = vmatpush1.msra.mxu0 0.0
    %1840 = vmatprep.subr.mxu0 0.0
    %1841 = vmatpush1.msra.mxu0 0.0
    %1842 = vmatprep.subr.mxu0 0.0
    %1843 = vmatpush1.msra.mxu0 0.0
    %1844 = vmatprep.subr.mxu0 0.0
    %1845 = vmatpush1.msra.mxu0 0.0
    %1846 = vmatprep.subr.mxu0 0.0
    %1847 = vmatpush1.msra.mxu0 0.0
    %1848 = vmatprep.subr.mxu0 0.0
    %1849 = vmatpush1.msra.mxu0 0.0
    %1850 = vmatprep.mubr.f32.mxu0 0.0
    %1851 = vmatmul.mubr.f32.gmra.mrb[0].mxu0 %v1781
    %v1852 = vpop.f32.mrb[0].mxu0
    %v1853 = vadd.f32 %v1778, %v1852
    %v1854 = vpop.f32.mrb[0].mxu0
    %1855 = vmatprep.mubr.f32.mxu0 0.0
    %1856 = vmatmul.mubr.f32.gmra.mrb[0].mxu0 %v1784
    %v1857 = vpop.f32.mrb[0].mxu0
    %v1858 = vadd.f32 %v1778, %v1857
    %v1859 = vpop.f32.mrb[0].mxu0
    %1860 = vdwg.mxu0
    %v1861 = vld [vmem:[%s21] sm:$0xff]
    %v1862 = vld [vmem:[%s21 + $0x8] sm:$0x3]
    %vm1863 = vcmp.eq.s32.totalorder %v1861, 0
    %vm1864 = vcmp.eq.s32.totalorder %v1862, 0
    %v1865 = vld [vmem:[%s7] sm:$0x1]
    %v1866 = vsel %vm1863, 1, 0
    %v1867 = vsel %vm1864, 1, 0
    %1868 = vset.pattern.permute.xlu0 0
    %1869 = vperm.xlu0 %1868, %v1866
    %v1870 = vpop.permute.xlu0 %1869
    %1871 = vset.pattern.permute.xlu0 0
    %1872 = vperm.xlu0 %1871, %v1867
    %v1873 = vpop.permute.xlu0 %1872
    %vm1874 = vcmp.eq.s32.totalorder %v1870, 1
    %vm1875 = vcmp.eq.s32.totalorder %v1873, 1
    %v1877 = vlaneseq
    %v1878 = vshrl.u32 %v1877, 7
    %v1879 = vsub.s32 0, %v1878
    %v1880 = vrot.slane %v1865, %v1879
    %v1882 = vsel %vm1874, %v1880, %v1853
    %v1883 = vsel %vm1875, %v1880, %v1858
    %v1884 = vld [vmem:[%s23] sm:$0xff]
    %v1885 = vld [vmem:[%s23 + $0x8] sm:$0x3]
    %v1886 = vld [vmem:[%s25] sm:$0x1]
    %1887 = vset.pattern.permute.xlu0 0
    %1888 = vperm.xlu0 %1887, %v1884
    %v1889 = vpop.permute.xlu0 %1888
    %1890 = vset.pattern.permute.xlu0 0
    %1891 = vperm.xlu0 %1890, %v1885
    %v1892 = vpop.permute.xlu0 %1891
    %v1893 = vlaneseq
    %v1894 = vshrl.u32 %v1893, 7
    %v1895 = vsub.s32 0, %v1894
    %v1896 = vrot.slane %v1886, %v1895
    %vm1897 = vcmp.eq.s32.totalorder %v1889, %v1896
    %vm1898 = vcmp.eq.s32.totalorder %v1892, %v1896
    %v1899 = vsel %vm1897, 0.0, -1e+09
    %v1900 = vsel %vm1898, 0.0, -1e+09
    %v1902 = vlaneseq
    %v1903 = vshrl.u32 %v1902, 7
    %v1904 = vsub.s32 0, %v1903
    %v1905 = vrot.slane %v459, %v1904
    %v1908 = vsel %vm864, %v1882, 0
    %v1911 = vsel %vm864, %v1883, 0
    %1913 = vmatprep.subr.mxu0 0.0
    %1914 = vmatpush1.msra.mxu0 %v469
    %1915 = vmatprep.subr.mxu0 0.0
    %1916 = vmatpush1.msra.mxu0 %v470
    %1917 = vmatprep.subr.mxu0 0.0
    %1918 = vmatpush1.msra.mxu0 %v471
    %1919 = vmatprep.subr.mxu0 0.0
    %1920 = vmatpush1.msra.mxu0 %v472
    %1921 = vmatprep.subr.mxu0 0.0
    %1922 = vmatpush1.msra.mxu0 0.0
    %1923 = vmatprep.subr.mxu0 0.0
    %1924 = vmatpush1.msra.mxu0 0.0
    %1925 = vmatprep.subr.mxu0 0.0
    %1926 = vmatpush1.msra.mxu0 0.0
    %1927 = vmatprep.subr.mxu0 0.0
    %1928 = vmatpush1.msra.mxu0 0.0
    %1929 = vmatprep.subr.mxu0 0.0
    %1930 = vmatpush1.msra.mxu0 0.0
    %1931 = vmatprep.subr.mxu0 0.0
    %1932 = vmatpush1.msra.mxu0 0.0
    %1933 = vmatprep.subr.mxu0 0.0
    %1934 = vmatpush1.msra.mxu0 0.0
    %1935 = vmatprep.subr.mxu0 0.0
    %1936 = vmatpush1.msra.mxu0 0.0
    %1937 = vmatprep.subr.mxu0 0.0
    %1938 = vmatpush1.msra.mxu0 0.0
    %1939 = vmatprep.subr.mxu0 0.0
    %1940 = vmatpush1.msra.mxu0 0.0
    %1941 = vmatprep.subr.mxu0 0.0
    %1942 = vmatpush1.msra.mxu0 0.0
    %1943 = vmatprep.subr.mxu0 0.0
    %1944 = vmatpush1.msra.mxu0 0.0
    %1945 = vmatprep.subr.mxu0 0.0
    %1946 = vmatpush1.msra.mxu0 0.0
    %1947 = vmatprep.subr.mxu0 0.0
    %1948 = vmatpush1.msra.mxu0 0.0
    %1949 = vmatprep.subr.mxu0 0.0
    %1950 = vmatpush1.msra.mxu0 0.0
    %1951 = vmatprep.subr.mxu0 0.0
    %1952 = vmatpush1.msra.mxu0 0.0
    %1953 = vmatprep.subr.mxu0 0.0
    %1954 = vmatpush1.msra.mxu0 0.0
    %1955 = vmatprep.subr.mxu0 0.0
    %1956 = vmatpush1.msra.mxu0 0.0
    %1957 = vmatprep.subr.mxu0 0.0
    %1958 = vmatpush1.msra.mxu0 0.0
    %1959 = vmatprep.subr.mxu0 0.0
    %1960 = vmatpush1.msra.mxu0 0.0
    %1961 = vmatprep.subr.mxu0 0.0
    %1962 = vmatpush1.msra.mxu0 0.0
    %1963 = vmatprep.subr.mxu0 0.0
    %1964 = vmatpush1.msra.mxu0 0.0
    %1965 = vmatprep.subr.mxu0 0.0
    %1966 = vmatpush1.msra.mxu0 0.0
    %1967 = vmatprep.subr.mxu0 0.0
    %1968 = vmatpush1.msra.mxu0 0.0
    %1969 = vmatprep.subr.mxu0 0.0
    %1970 = vmatpush1.msra.mxu0 0.0
    %1971 = vmatprep.subr.mxu0 0.0
    %1972 = vmatpush1.msra.mxu0 0.0
    %1973 = vmatprep.subr.mxu0 0.0
    %1974 = vmatpush1.msra.mxu0 0.0
    %1975 = vmatprep.subr.mxu0 0.0
    %1976 = vmatpush1.msra.mxu0 0.0
    %1977 = vmatprep.mubr.f32.mxu0 0.0
    %1978 = vmatmul.mubr.f32.gmra.mrb[0].mxu0 %v1908
    %v1979 = vpop.f32.mrb[0].mxu0
    %v1980 = vadd.f32 %v1905, %v1979
    %v1981 = vpop.f32.mrb[0].mxu0
    %1982 = vmatprep.mubr.f32.mxu0 0.0
    %1983 = vmatmul.mubr.f32.gmra.mrb[0].mxu0 %v1911
    %v1984 = vpop.f32.mrb[0].mxu0
    %v1985 = vadd.f32 %v1905, %v1984
    %v1986 = vpop.f32.mrb[0].mxu0
    %1987 = vdwg.mxu0
    %v1989 = vlaneseq
    %v1990 = vshrl.u32 %v1989, 7
    %v1991 = vsub.s32 0, %v1990
    %v1992 = vrot.slane %v457, %v1991
    %1994 = vmatprep.subr.mxu0 0.0
    %1995 = vmatpush1.msra.mxu0 %v461
    %1996 = vmatprep.subr.mxu0 0.0
    %1997 = vmatpush1.msra.mxu0 %v462
    %1998 = vmatprep.subr.mxu0 0.0
    %1999 = vmatpush1.msra.mxu0 %v463
    %2000 = vmatprep.subr.mxu0 0.0
    %2001 = vmatpush1.msra.mxu0 %v464
    %2002 = vmatprep.subr.mxu0 0.0
    %2003 = vmatpush1.msra.mxu0 0.0
    %2004 = vmatprep.subr.mxu0 0.0
    %2005 = vmatpush1.msra.mxu0 0.0
    %2006 = vmatprep.subr.mxu0 0.0
    %2007 = vmatpush1.msra.mxu0 0.0
    %2008 = vmatprep.subr.mxu0 0.0
    %2009 = vmatpush1.msra.mxu0 0.0
    %2010 = vmatprep.subr.mxu0 0.0
    %2011 = vmatpush1.msra.mxu0 0.0
    %2012 = vmatprep.subr.mxu0 0.0
    %2013 = vmatpush1.msra.mxu0 0.0
    %2014 = vmatprep.subr.mxu0 0.0
    %2015 = vmatpush1.msra.mxu0 0.0
    %2016 = vmatprep.subr.mxu0 0.0
    %2017 = vmatpush1.msra.mxu0 0.0
    %2018 = vmatprep.subr.mxu0 0.0
    %2019 = vmatpush1.msra.mxu0 0.0
    %2020 = vmatprep.subr.mxu0 0.0
    %2021 = vmatpush1.msra.mxu0 0.0
    %2022 = vmatprep.subr.mxu0 0.0
    %2023 = vmatpush1.msra.mxu0 0.0
    %2024 = vmatprep.subr.mxu0 0.0
    %2025 = vmatpush1.msra.mxu0 0.0
    %2026 = vmatprep.subr.mxu0 0.0
    %2027 = vmatpush1.msra.mxu0 0.0
    %2028 = vmatprep.subr.mxu0 0.0
    %2029 = vmatpush1.msra.mxu0 0.0
    %2030 = vmatprep.subr.mxu0 0.0
    %2031 = vmatpush1.msra.mxu0 0.0
    %2032 = vmatprep.subr.mxu0 0.0
    %2033 = vmatpush1.msra.mxu0 0.0
    %2034 = vmatprep.subr.mxu0 0.0
    %2035 = vmatpush1.msra.mxu0 0.0
    %2036 = vmatprep.subr.mxu0 0.0
    %2037 = vmatpush1.msra.mxu0 0.0
    %2038 = vmatprep.subr.mxu0 0.0
    %2039 = vmatpush1.msra.mxu0 0.0
    %2040 = vmatprep.subr.mxu0 0.0
    %2041 = vmatpush1.msra.mxu0 0.0
    %2042 = vmatprep.subr.mxu0 0.0
    %2043 = vmatpush1.msra.mxu0 0.0
    %2044 = vmatprep.subr.mxu0 0.0
    %2045 = vmatpush1.msra.mxu0 0.0
    %2046 = vmatprep.subr.mxu0 0.0
    %2047 = vmatpush1.msra.mxu0 0.0
    %2048 = vmatprep.subr.mxu0 0.0
    %2049 = vmatpush1.msra.mxu0 0.0
    %2050 = vmatprep.subr.mxu0 0.0
    %2051 = vmatpush1.msra.mxu0 0.0
    %2052 = vmatprep.subr.mxu0 0.0
    %2053 = vmatpush1.msra.mxu0 0.0
    %2054 = vmatprep.subr.mxu0 0.0
    %2055 = vmatpush1.msra.mxu0 0.0
    %2056 = vmatprep.subr.mxu0 0.0
    %2057 = vmatpush1.msra.mxu0 0.0
    %2058 = vmatprep.mubr.f32.mxu0 0.0
    %2059 = vmatmul.mubr.f32.gmra.mrb[0].mxu0 %v1908
    %v2060 = vpop.f32.mrb[0].mxu0
    %v2061 = vadd.f32 %v1992, %v2060
    %v2062 = vpop.f32.mrb[0].mxu0
    %2063 = vmatprep.mubr.f32.mxu0 0.0
    %2064 = vmatmul.mubr.f32.gmra.mrb[0].mxu0 %v1911
    %v2065 = vpop.f32.mrb[0].mxu0
    %v2066 = vadd.f32 %v1992, %v2065
    %v2067 = vpop.f32.mrb[0].mxu0
    %2068 = vdwg.mxu0
    %v2070 = vlaneseq
    %v2071 = vshrl.u32 %v2070, 7
    %v2072 = vsub.s32 0, %v2071
    %v2073 = vrot.slane %v460, %v2072
    %2075 = vmatprep.subr.mxu0 0.0
    %2076 = vmatpush1.msra.mxu0 %v473
    %2077 = vmatprep.subr.mxu0 0.0
    %2078 = vmatpush1.msra.mxu0 %v474
    %2079 = vmatprep.subr.mxu0 0.0
    %2080 = vmatpush1.msra.mxu0 %v475
    %2081 = vmatprep.subr.mxu0 0.0
    %2082 = vmatpush1.msra.mxu0 %v476
    %2083 = vmatprep.subr.mxu0 0.0
    %2084 = vmatpush1.msra.mxu0 0.0
    %2085 = vmatprep.subr.mxu0 0.0
    %2086 = vmatpush1.msra.mxu0 0.0
    %2087 = vmatprep.subr.mxu0 0.0
    %2088 = vmatpush1.msra.mxu0 0.0
    %2089 = vmatprep.subr.mxu0 0.0
    %2090 = vmatpush1.msra.mxu0 0.0
    %2091 = vmatprep.subr.mxu0 0.0
    %2092 = vmatpush1.msra.mxu0 0.0
    %2093 = vmatprep.subr.mxu0 0.0
    %2094 = vmatpush1.msra.mxu0 0.0
    %2095 = vmatprep.subr.mxu0 0.0
    %2096 = vmatpush1.msra.mxu0 0.0
    %2097 = vmatprep.subr.mxu0 0.0
    %2098 = vmatpush1.msra.mxu0 0.0
    %2099 = vmatprep.subr.mxu0 0.0
    %2100 = vmatpush1.msra.mxu0 0.0
    %2101 = vmatprep.subr.mxu0 0.0
    %2102 = vmatpush1.msra.mxu0 0.0
    %2103 = vmatprep.subr.mxu0 0.0
    %2104 = vmatpush1.msra.mxu0 0.0
    %2105 = vmatprep.subr.mxu0 0.0
    %2106 = vmatpush1.msra.mxu0 0.0
    %2107 = vmatprep.subr.mxu0 0.0
    %2108 = vmatpush1.msra.mxu0 0.0
    %2109 = vmatprep.subr.mxu0 0.0
    %2110 = vmatpush1.msra.mxu0 0.0
    %2111 = vmatprep.subr.mxu0 0.0
    %2112 = vmatpush1.msra.mxu0 0.0
    %2113 = vmatprep.subr.mxu0 0.0
    %2114 = vmatpush1.msra.mxu0 0.0
    %2115 = vmatprep.subr.mxu0 0.0
    %2116 = vmatpush1.msra.mxu0 0.0
    %2117 = vmatprep.subr.mxu0 0.0
    %2118 = vmatpush1.msra.mxu0 0.0
    %2119 = vmatprep.subr.mxu0 0.0
    %2120 = vmatpush1.msra.mxu0 0.0
    %2121 = vmatprep.subr.mxu0 0.0
    %2122 = vmatpush1.msra.mxu0 0.0
    %2123 = vmatprep.subr.mxu0 0.0
    %2124 = vmatpush1.msra.mxu0 0.0
    %2125 = vmatprep.subr.mxu0 0.0
    %2126 = vmatpush1.msra.mxu0 0.0
    %2127 = vmatprep.subr.mxu0 0.0
    %2128 = vmatpush1.msra.mxu0 0.0
    %2129 = vmatprep.subr.mxu0 0.0
    %2130 = vmatpush1.msra.mxu0 0.0
    %2131 = vmatprep.subr.mxu0 0.0
    %2132 = vmatpush1.msra.mxu0 0.0
    %2133 = vmatprep.subr.mxu0 0.0
    %2134 = vmatpush1.msra.mxu0 0.0
    %2135 = vmatprep.subr.mxu0 0.0
    %2136 = vmatpush1.msra.mxu0 0.0
    %2137 = vmatprep.subr.mxu0 0.0
    %2138 = vmatpush1.msra.mxu0 0.0
    %2139 = vmatprep.mubr.f32.mxu0 0.0
    %2140 = vmatmul.mubr.f32.gmra.mrb[0].mxu0 %v1908
    %v2141 = vpop.f32.mrb[0].mxu0
    %v2142 = vadd.f32 %v2073, %v2141
    %v2143 = vpop.f32.mrb[0].mxu0
    %2144 = vmatprep.mubr.f32.mxu0 0.0
    %2145 = vmatmul.mubr.f32.gmra.mrb[0].mxu0 %v1911
    %v2146 = vpop.f32.mrb[0].mxu0
    %v2147 = vadd.f32 %v2073, %v2146
    %v2148 = vpop.f32.mrb[0].mxu0
    %2149 = vdwg.mxu0
    %v2151 = vsel %vm864, %v1980, 0
    %v2154 = vsel %vm864, %v1985, 0
    %v2157 = vsel %vm864, %v2061, 0
    %v2160 = vsel %vm864, %v2066, 0
    %2162 = vmatprep.subr.mxu0 0.0
    %2163 = vmatpush1.xpose.msra.mxu0 %v2157
    %2164 = vmatprep.subr.mxu0 0.0
    %2165 = vmatpush1.xpose.msra.mxu0 %v2160
    %2166 = vmatprep.subr.mxu0 0.0
    %2167 = vmatpush1.xpose.msra.mxu0 0.0
    %2168 = vmatprep.subr.mxu0 0.0
    %2169 = vmatpush1.xpose.msra.mxu0 0.0
    %2170 = vmatprep.subr.mxu0 0.0
    %2171 = vmatpush1.xpose.msra.mxu0 0.0
    %2172 = vmatprep.subr.mxu0 0.0
    %2173 = vmatpush1.xpose.msra.mxu0 0.0
    %2174 = vmatprep.subr.mxu0 0.0
    %2175 = vmatpush1.xpose.msra.mxu0 0.0
    %2176 = vmatprep.subr.mxu0 0.0
    %2177 = vmatpush1.xpose.msra.mxu0 0.0
    %2178 = vmatprep.subr.mxu0 0.0
    %2179 = vmatpush1.xpose.msra.mxu0 0.0
    %2180 = vmatprep.subr.mxu0 0.0
    %2181 = vmatpush1.xpose.msra.mxu0 0.0
    %2182 = vmatprep.subr.mxu0 0.0
    %2183 = vmatpush1.xpose.msra.mxu0 0.0
    %2184 = vmatprep.subr.mxu0 0.0
    %2185 = vmatpush1.xpose.msra.mxu0 0.0
    %2186 = vmatprep.subr.mxu0 0.0
    %2187 = vmatpush1.xpose.msra.mxu0 0.0
    %2188 = vmatprep.subr.mxu0 0.0
    %2189 = vmatpush1.xpose.msra.mxu0 0.0
    %2190 = vmatprep.subr.mxu0 0.0
    %2191 = vmatpush1.xpose.msra.mxu0 0.0
    %2192 = vmatprep.subr.mxu0 0.0
    %2193 = vmatpush1.xpose.msra.mxu0 0.0
    %2194 = vmatprep.subr.mxu0 0.0
    %2195 = vmatpush1.xpose.msra.mxu0 0.0
    %2196 = vmatprep.subr.mxu0 0.0
    %2197 = vmatpush1.xpose.msra.mxu0 0.0
    %2198 = vmatprep.subr.mxu0 0.0
    %2199 = vmatpush1.xpose.msra.mxu0 0.0
    %2200 = vmatprep.subr.mxu0 0.0
    %2201 = vmatpush1.xpose.msra.mxu0 0.0
    %2202 = vmatprep.subr.mxu0 0.0
    %2203 = vmatpush1.xpose.msra.mxu0 0.0
    %2204 = vmatprep.subr.mxu0 0.0
    %2205 = vmatpush1.xpose.msra.mxu0 0.0
    %2206 = vmatprep.subr.mxu0 0.0
    %2207 = vmatpush1.xpose.msra.mxu0 0.0
    %2208 = vmatprep.subr.mxu0 0.0
    %2209 = vmatpush1.xpose.msra.mxu0 0.0
    %2210 = vmatprep.subr.mxu0 0.0
    %2211 = vmatpush1.xpose.msra.mxu0 0.0
    %2212 = vmatprep.subr.mxu0 0.0
    %2213 = vmatpush1.xpose.msra.mxu0 0.0
    %2214 = vmatprep.subr.mxu0 0.0
    %2215 = vmatpush1.xpose.msra.mxu0 0.0
    %2216 = vmatprep.subr.mxu0 0.0
    %2217 = vmatpush1.xpose.msra.mxu0 0.0
    %2218 = vmatprep.subr.mxu0 0.0
    %2219 = vmatpush1.xpose.msra.mxu0 0.0
    %2220 = vmatprep.subr.mxu0 0.0
    %2221 = vmatpush1.xpose.msra.mxu0 0.0
    %2222 = vmatprep.subr.mxu0 0.0
    %2223 = vmatpush1.xpose.msra.mxu0 0.0
    %2224 = vmatprep.subr.mxu0 0.0
    %2225 = vmatpush1.xpose.msra.mxu0 0.0
    %2226 = vmatprep.mubr.f32.mxu0 0.0
    %2227 = vmatmul.mubr.f32.gmra.mrb[0].mxu0 %v2151
    %v2228 = vpop.f32.mrb[0].mxu0
    %v2229 = vadd.f32 0.0, %v2228
    %v2230 = vpop.f32.mrb[0].mxu0
    %2231 = vmatprep.mubr.f32.mxu0 0.0
    %2232 = vmatmul.mubr.f32.gmra.mrb[0].mxu0 %v2154
    %v2233 = vpop.f32.mrb[0].mxu0
    %v2234 = vadd.f32 0.0, %v2233
    %v2235 = vpop.f32.mrb[0].mxu0
    %2236 = vdwg.mxu0
    %v2237 = vmul.f32 %v2229, 0.17677669
    %v2238 = vmul.f32 %v2234, 0.17677669
    %v2239 = vadd.f32 %v2237, %v1899
    %v2240 = vadd.f32 %v2238, %v1900
    %vm2241 = vcmask 80896
    %v2242 = vsel %vm2241, %v2239, -inf
    %2243 = vmax.xlane.f32.xlu0 %v2242
    %v2244 = vpop.xlane.xlu0 %2243
    %vm2245 = vcmask 74752
    %v2246 = vsel %vm2245, %v2240, -inf
    %2247 = vmax.xlane.f32.xlu0 %v2246
    %v2248 = vpop.xlane.xlu0 %2247
    %v2249 = vsub.f32 %v2239, %v2244
    %v2250 = vsub.f32 %v2240, %v2248
    %v2251 = vmul.f32 %v2249, 1.442695
    %v2252 = vpow.pop %v2251
    %v2253 = vmul.f32 %v2250, 1.442695
    %v2254 = vpow.pop %v2253
    %v2255 = vsel %vm2241, %v2252, 0.0
    %2256 = vadd.xlane.f32.xlu0 %v2255
    %v2257 = vpop.xlane.xlu0 %2256
    %v2258 = vsel %vm2245, %v2254, 0.0
    %2259 = vadd.xlane.f32.xlu0 %v2258
    %v2260 = vpop.xlane.xlu0 %2259
    %v2261 = vrcp.pop %v2257
    %v2262 = vrcp.pop %v2260
    %v2263 = vmul.f32 %v2252, %v2261
    %v2264 = vmul.f32 %v2254, %v2262
    %v2266 = vsel %vm2241, %v2263, 0
    %v2269 = vsel %vm2241, %v2264, 0
    %v2272 = vsel %vm1274, %v2147, 0
    %2274 = vmatprep.subr.mxu0 0.0
    %2275 = vmatpush1.msra.mxu0 %v2142
    %2276 = vmatprep.subr.mxu0 0.0
    %2277 = vmatpush1.msra.mxu0 %v2272
    %2278 = vmatprep.subr.mxu0 0.0
    %2279 = vmatpush1.msra.mxu0 0.0
    %2280 = vmatprep.subr.mxu0 0.0
    %2281 = vmatpush1.msra.mxu0 0.0
    %2282 = vmatprep.subr.mxu0 0.0
    %2283 = vmatpush1.msra.mxu0 0.0
    %2284 = vmatprep.subr.mxu0 0.0
    %2285 = vmatpush1.msra.mxu0 0.0
    %2286 = vmatprep.subr.mxu0 0.0
    %2287 = vmatpush1.msra.mxu0 0.0
    %2288 = vmatprep.subr.mxu0 0.0
    %2289 = vmatpush1.msra.mxu0 0.0
    %2290 = vmatprep.subr.mxu0 0.0
    %2291 = vmatpush1.msra.mxu0 0.0
    %2292 = vmatprep.subr.mxu0 0.0
    %2293 = vmatpush1.msra.mxu0 0.0
    %2294 = vmatprep.subr.mxu0 0.0
    %2295 = vmatpush1.msra.mxu0 0.0
    %2296 = vmatprep.subr.mxu0 0.0
    %2297 = vmatpush1.msra.mxu0 0.0
    %2298 = vmatprep.subr.mxu0 0.0
    %2299 = vmatpush1.msra.mxu0 0.0
    %2300 = vmatprep.subr.mxu0 0.0
    %2301 = vmatpush1.msra.mxu0 0.0
    %2302 = vmatprep.subr.mxu0 0.0
    %2303 = vmatpush1.msra.mxu0 0.0
    %2304 = vmatprep.subr.mxu0 0.0
    %2305 = vmatpush1.msra.mxu0 0.0
    %2306 = vmatprep.subr.mxu0 0.0
    %2307 = vmatpush1.msra.mxu0 0.0
    %2308 = vmatprep.subr.mxu0 0.0
    %2309 = vmatpush1.msra.mxu0 0.0
    %2310 = vmatprep.subr.mxu0 0.0
    %2311 = vmatpush1.msra.mxu0 0.0
    %2312 = vmatprep.subr.mxu0 0.0
    %2313 = vmatpush1.msra.mxu0 0.0
    %2314 = vmatprep.subr.mxu0 0.0
    %2315 = vmatpush1.msra.mxu0 0.0
    %2316 = vmatprep.subr.mxu0 0.0
    %2317 = vmatpush1.msra.mxu0 0.0
    %2318 = vmatprep.subr.mxu0 0.0
    %2319 = vmatpush1.msra.mxu0 0.0
    %2320 = vmatprep.subr.mxu0 0.0
    %2321 = vmatpush1.msra.mxu0 0.0
    %2322 = vmatprep.subr.mxu0 0.0
    %2323 = vmatpush1.msra.mxu0 0.0
    %2324 = vmatprep.subr.mxu0 0.0
    %2325 = vmatpush1.msra.mxu0 0.0
    %2326 = vmatprep.subr.mxu0 0.0
    %2327 = vmatpush1.msra.mxu0 0.0
    %2328 = vmatprep.subr.mxu0 0.0
    %2329 = vmatpush1.msra.mxu0 0.0
    %2330 = vmatprep.subr.mxu0 0.0
    %2331 = vmatpush1.msra.mxu0 0.0
    %2332 = vmatprep.subr.mxu0 0.0
    %2333 = vmatpush1.msra.mxu0 0.0
    %2334 = vmatprep.subr.mxu0 0.0
    %2335 = vmatpush1.msra.mxu0 0.0
    %2336 = vmatprep.subr.mxu0 0.0
    %2337 = vmatpush1.msra.mxu0 0.0
    %2338 = vmatprep.mubr.f32.mxu0 0.0
    %2339 = vmatmul.mubr.f32.gmra.mrb[0].mxu0 %v2266
    %v2340 = vpop.f32.mrb[0].mxu0
    %v2341 = vadd.f32 0.0, %v2340
    %v2342 = vpop.f32.mrb[0].mxu0
    %2343 = vmatprep.mubr.f32.mxu0 0.0
    %2344 = vmatmul.mubr.f32.gmra.mrb[0].mxu0 %v2269
    %v2345 = vpop.f32.mrb[0].mxu0
    %v2346 = vadd.f32 0.0, %v2345
    %v2347 = vpop.f32.mrb[0].mxu0
    %2348 = vdwg.mxu0
    %v2350 = vlaneseq
    %v2351 = vshrl.u32 %v2350, 7
    %v2352 = vsub.s32 0, %v2351
    %v2353 = vrot.slane %v458, %v2352
    %v2356 = vsel %vm864, %v2341, 0
    %v2359 = vsel %vm864, %v2346, 0
    %2361 = vmatprep.subr.mxu0 0.0
    %2362 = vmatpush1.msra.mxu0 %v465
    %2363 = vmatprep.subr.mxu0 0.0
    %2364 = vmatpush1.msra.mxu0 %v466
    %2365 = vmatprep.subr.mxu0 0.0
    %2366 = vmatpush1.msra.mxu0 %v467
    %2367 = vmatprep.subr.mxu0 0.0
    %2368 = vmatpush1.msra.mxu0 %v468
    %2369 = vmatprep.subr.mxu0 0.0
    %2370 = vmatpush1.msra.mxu0 0.0
    %2371 = vmatprep.subr.mxu0 0.0
    %2372 = vmatpush1.msra.mxu0 0.0
    %2373 = vmatprep.subr.mxu0 0.0
    %2374 = vmatpush1.msra.mxu0 0.0
    %2375 = vmatprep.subr.mxu0 0.0
    %2376 = vmatpush1.msra.mxu0 0.0
    %2377 = vmatprep.subr.mxu0 0.0
    %2378 = vmatpush1.msra.mxu0 0.0
    %2379 = vmatprep.subr.mxu0 0.0
    %2380 = vmatpush1.msra.mxu0 0.0
    %2381 = vmatprep.subr.mxu0 0.0
    %2382 = vmatpush1.msra.mxu0 0.0
    %2383 = vmatprep.subr.mxu0 0.0
    %2384 = vmatpush1.msra.mxu0 0.0
    %2385 = vmatprep.subr.mxu0 0.0
    %2386 = vmatpush1.msra.mxu0 0.0
    %2387 = vmatprep.subr.mxu0 0.0
    %2388 = vmatpush1.msra.mxu0 0.0
    %2389 = vmatprep.subr.mxu0 0.0
    %2390 = vmatpush1.msra.mxu0 0.0
    %2391 = vmatprep.subr.mxu0 0.0
    %2392 = vmatpush1.msra.mxu0 0.0
    %2393 = vmatprep.subr.mxu0 0.0
    %2394 = vmatpush1.msra.mxu0 0.0
    %2395 = vmatprep.subr.mxu0 0.0
    %2396 = vmatpush1.msra.mxu0 0.0
    %2397 = vmatprep.subr.mxu0 0.0
    %2398 = vmatpush1.msra.mxu0 0.0
    %2399 = vmatprep.subr.mxu0 0.0
    %2400 = vmatpush1.msra.mxu0 0.0
    %2401 = vmatprep.subr.mxu0 0.0
    %2402 = vmatpush1.msra.mxu0 0.0
    %2403 = vmatprep.subr.mxu0 0.0
    %2404 = vmatpush1.msra.mxu0 0.0
    %2405 = vmatprep.subr.mxu0 0.0
    %2406 = vmatpush1.msra.mxu0 0.0
    %2407 = vmatprep.subr.mxu0 0.0
    %2408 = vmatpush1.msra.mxu0 0.0
    %2409 = vmatprep.subr.mxu0 0.0
    %2410 = vmatpush1.msra.mxu0 0.0
    %2411 = vmatprep.subr.mxu0 0.0
    %2412 = vmatpush1.msra.mxu0 0.0
    %2413 = vmatprep.subr.mxu0 0.0
    %2414 = vmatpush1.msra.mxu0 0.0
    %2415 = vmatprep.subr.mxu0 0.0
    %2416 = vmatpush1.msra.mxu0 0.0
    %2417 = vmatprep.subr.mxu0 0.0
    %2418 = vmatpush1.msra.mxu0 0.0
    %2419 = vmatprep.subr.mxu0 0.0
    %2420 = vmatpush1.msra.mxu0 0.0
    %2421 = vmatprep.subr.mxu0 0.0
    %2422 = vmatpush1.msra.mxu0 0.0
    %2423 = vmatprep.subr.mxu0 0.0
    %2424 = vmatpush1.msra.mxu0 0.0
    %2425 = vmatprep.mubr.f32.mxu0 0.0
    %2426 = vmatmul.mubr.f32.gmra.mrb[0].mxu0 %v2356
    %v2427 = vpop.f32.mrb[0].mxu0
    %v2428 = vadd.f32 %v2353, %v2427
    %v2429 = vpop.f32.mrb[0].mxu0
    %2430 = vmatprep.mubr.f32.mxu0 0.0
    %2431 = vmatmul.mubr.f32.gmra.mrb[0].mxu0 %v2359
    %v2432 = vpop.f32.mrb[0].mxu0
    %v2433 = vadd.f32 %v2353, %v2432
    %v2434 = vpop.f32.mrb[0].mxu0
    %2435 = vdwg.mxu0
    %v2436 = vadd.f32 %v1882, %v2428
    %v2437 = vadd.f32 %v1883, %v2433
    %v2438 = vsel %vm864, %v2436, 0.0
    %2439 = vadd.xlane.f32.xlu0 %v2438
    %v2440 = vpop.xlane.xlu0 %2439
    %v2441 = vsel %vm1462, %v2437, 0.0
    %2442 = vadd.xlane.f32.xlu0 %v2441
    %v2443 = vpop.xlane.xlu0 %2442
    %v2444 = vmul.f32 %v2440, %v1466
    %v2445 = vmul.f32 %v2443, %v1466
    %v2446 = vsub.f32 %v2436, %v2444
    %v2447 = vsub.f32 %v2437, %v2445
    %v2448 = vmul.f32 %v2446, %v2446
    %v2449 = vmul.f32 %v2447, %v2447
    %v2450 = vsel %vm864, %v2448, 0.0
    %2451 = vadd.xlane.f32.xlu0 %v2450
    %v2452 = vpop.xlane.xlu0 %2451
    %v2453 = vsel %vm1462, %v2449, 0.0
    %2454 = vadd.xlane.f32.xlu0 %v2453
    %v2455 = vpop.xlane.xlu0 %2454
    %v2456 = vmul.f32 %v2452, %v1466
    %v2457 = vmul.f32 %v2455, %v1466
    %v2458 = vadd.f32 %v2456, 1e-05
    %v2459 = vadd.f32 %v2457, 1e-05
    %v2460 = vrsqrt.pop %v2458
    %v2461 = vrsqrt.pop %v2459
    %v2462 = vmul.f32 %v2446, %v2460
    %v2463 = vmul.f32 %v2447, %v2461
    %v2465 = vlaneseq
    %v2466 = vshrl.u32 %v2465, 7
    %v2467 = vsub.s32 0, %v2466
    %v2468 = vrot.slane %v452, %v2467
    %v2470 = vmul.f32 %v2462, %v2468
    %v2471 = vmul.f32 %v2463, %v2468
    %v2473 = vlaneseq
    %v2474 = vshrl.u32 %v2473, 7
    %v2475 = vsub.s32 0, %v2474
    %v2476 = vrot.slane %v451, %v2475
    %v2478 = vadd.f32 %v2470, %v2476
    %v2479 = vadd.f32 %v2471, %v2476
    %v2480 = vld [vmem:[%s19] sm:$0x1]
    %v2481 = vlaneseq
    %v2482 = vshrl.u32 %v2481, 7
    %v2483 = vsub.s32 0, %v2482
    %v2484 = vrot.slane %v2480, %v2483
    %vm2485 = vcmp.eq.s32.totalorder %v1889, %v2484
    %vm2486 = vcmp.eq.s32.totalorder %v1892, %v2484
    %v2487 = vsel %vm2485, 0.0, -1e+09
    %v2488 = vsel %vm2486, 0.0, -1e+09
    %v2490 = vlaneseq
    %v2491 = vshrl.u32 %v2490, 7
    %v2492 = vsub.s32 0, %v2491
    %v2493 = vrot.slane %v419, %v2492
    %v2496 = vsel %vm864, %v2478, 0
    %v2499 = vsel %vm864, %v2479, 0
    %2501 = vmatprep.subr.mxu0 0.0
    %2502 = vmatpush1.msra.mxu0 %v429
    %2503 = vmatprep.subr.mxu0 0.0
    %2504 = vmatpush1.msra.mxu0 %v430
    %2505 = vmatprep.subr.mxu0 0.0
    %2506 = vmatpush1.msra.mxu0 %v431
    %2507 = vmatprep.subr.mxu0 0.0
    %2508 = vmatpush1.msra.mxu0 %v432
    %2509 = vmatprep.subr.mxu0 0.0
    %2510 = vmatpush1.msra.mxu0 0.0
    %2511 = vmatprep.subr.mxu0 0.0
    %2512 = vmatpush1.msra.mxu0 0.0
    %2513 = vmatprep.subr.mxu0 0.0
    %2514 = vmatpush1.msra.mxu0 0.0
    %2515 = vmatprep.subr.mxu0 0.0
    %2516 = vmatpush1.msra.mxu0 0.0
    %2517 = vmatprep.subr.mxu0 0.0
    %2518 = vmatpush1.msra.mxu0 0.0
    %2519 = vmatprep.subr.mxu0 0.0
    %2520 = vmatpush1.msra.mxu0 0.0
    %2521 = vmatprep.subr.mxu0 0.0
    %2522 = vmatpush1.msra.mxu0 0.0
    %2523 = vmatprep.subr.mxu0 0.0
    %2524 = vmatpush1.msra.mxu0 0.0
    %2525 = vmatprep.subr.mxu0 0.0
    %2526 = vmatpush1.msra.mxu0 0.0
    %2527 = vmatprep.subr.mxu0 0.0
    %2528 = vmatpush1.msra.mxu0 0.0
    %2529 = vmatprep.subr.mxu0 0.0
    %2530 = vmatpush1.msra.mxu0 0.0
    %2531 = vmatprep.subr.mxu0 0.0
    %2532 = vmatpush1.msra.mxu0 0.0
    %2533 = vmatprep.subr.mxu0 0.0
    %2534 = vmatpush1.msra.mxu0 0.0
    %2535 = vmatprep.subr.mxu0 0.0
    %2536 = vmatpush1.msra.mxu0 0.0
    %2537 = vmatprep.subr.mxu0 0.0
    %2538 = vmatpush1.msra.mxu0 0.0
    %2539 = vmatprep.subr.mxu0 0.0
    %2540 = vmatpush1.msra.mxu0 0.0
    %2541 = vmatprep.subr.mxu0 0.0
    %2542 = vmatpush1.msra.mxu0 0.0
    %2543 = vmatprep.subr.mxu0 0.0
    %2544 = vmatpush1.msra.mxu0 0.0
    %2545 = vmatprep.subr.mxu0 0.0
    %2546 = vmatpush1.msra.mxu0 0.0
    %2547 = vmatprep.subr.mxu0 0.0
    %2548 = vmatpush1.msra.mxu0 0.0
    %2549 = vmatprep.subr.mxu0 0.0
    %2550 = vmatpush1.msra.mxu0 0.0
    %2551 = vmatprep.subr.mxu0 0.0
    %2552 = vmatpush1.msra.mxu0 0.0
    %2553 = vmatprep.subr.mxu0 0.0
    %2554 = vmatpush1.msra.mxu0 0.0
    %2555 = vmatprep.subr.mxu0 0.0
    %2556 = vmatpush1.msra.mxu0 0.0
    %2557 = vmatprep.subr.mxu0 0.0
    %2558 = vmatpush1.msra.mxu0 0.0
    %2559 = vmatprep.subr.mxu0 0.0
    %2560 = vmatpush1.msra.mxu0 0.0
    %2561 = vmatprep.subr.mxu0 0.0
    %2562 = vmatpush1.msra.mxu0 0.0
    %2563 = vmatprep.subr.mxu0 0.0
    %2564 = vmatpush1.msra.mxu0 0.0
    %2565 = vmatprep.mubr.f32.mxu0 0.0
    %2566 = vmatmul.mubr.f32.gmra.mrb[0].mxu0 %v2496
    %v2567 = vpop.f32.mrb[0].mxu0
    %v2568 = vadd.f32 %v2493, %v2567
    %v2569 = vpop.f32.mrb[0].mxu0
    %2570 = vmatprep.mubr.f32.mxu0 0.0
    %2571 = vmatmul.mubr.f32.gmra.mrb[0].mxu0 %v2499
    %v2572 = vpop.f32.mrb[0].mxu0
    %v2573 = vadd.f32 %v2493, %v2572
    %v2574 = vpop.f32.mrb[0].mxu0
    %2575 = vdwg.mxu0
    %v2577 = vlaneseq
    %v2578 = vshrl.u32 %v2577, 7
    %v2579 = vsub.s32 0, %v2578
    %v2580 = vrot.slane %v417, %v2579
    %v2583 = vsel %vm864, %v1766, 0
    %v2586 = vsel %vm864, %v1767, 0
    %v2589 = vsel %vm864, %v1768, 0
    %2591 = vmatprep.subr.mxu0 0.0
    %2592 = vmatpush1.msra.mxu0 %v421
    %2593 = vmatprep.subr.mxu0 0.0
    %2594 = vmatpush1.msra.mxu0 %v422
    %2595 = vmatprep.subr.mxu0 0.0
    %2596 = vmatpush1.msra.mxu0 %v423
    %2597 = vmatprep.subr.mxu0 0.0
    %2598 = vmatpush1.msra.mxu0 %v424
    %2599 = vmatprep.subr.mxu0 0.0
    %2600 = vmatpush1.msra.mxu0 0.0
    %2601 = vmatprep.subr.mxu0 0.0
    %2602 = vmatpush1.msra.mxu0 0.0
    %2603 = vmatprep.subr.mxu0 0.0
    %2604 = vmatpush1.msra.mxu0 0.0
    %2605 = vmatprep.subr.mxu0 0.0
    %2606 = vmatpush1.msra.mxu0 0.0
    %2607 = vmatprep.subr.mxu0 0.0
    %2608 = vmatpush1.msra.mxu0 0.0
    %2609 = vmatprep.subr.mxu0 0.0
    %2610 = vmatpush1.msra.mxu0 0.0
    %2611 = vmatprep.subr.mxu0 0.0
    %2612 = vmatpush1.msra.mxu0 0.0
    %2613 = vmatprep.subr.mxu0 0.0
    %2614 = vmatpush1.msra.mxu0 0.0
    %2615 = vmatprep.subr.mxu0 0.0
    %2616 = vmatpush1.msra.mxu0 0.0
    %2617 = vmatprep.subr.mxu0 0.0
    %2618 = vmatpush1.msra.mxu0 0.0
    %2619 = vmatprep.subr.mxu0 0.0
    %2620 = vmatpush1.msra.mxu0 0.0
    %2621 = vmatprep.subr.mxu0 0.0
    %2622 = vmatpush1.msra.mxu0 0.0
    %2623 = vmatprep.subr.mxu0 0.0
    %2624 = vmatpush1.msra.mxu0 0.0
    %2625 = vmatprep.subr.mxu0 0.0
    %2626 = vmatpush1.msra.mxu0 0.0
    %2627 = vmatprep.subr.mxu0 0.0
    %2628 = vmatpush1.msra.mxu0 0.0
    %2629 = vmatprep.subr.mxu0 0.0
    %2630 = vmatpush1.msra.mxu0 0.0
    %2631 = vmatprep.subr.mxu0 0.0
    %2632 = vmatpush1.msra.mxu0 0.0
    %2633 = vmatprep.subr.mxu0 0.0
    %2634 = vmatpush1.msra.mxu0 0.0
    %2635 = vmatprep.subr.mxu0 0.0
    %2636 = vmatpush1.msra.mxu0 0.0
    %2637 = vmatprep.subr.mxu0 0.0
    %2638 = vmatpush1.msra.mxu0 0.0
    %2639 = vmatprep.subr.mxu0 0.0
    %2640 = vmatpush1.msra.mxu0 0.0
    %2641 = vmatprep.subr.mxu0 0.0
    %2642 = vmatpush1.msra.mxu0 0.0
    %2643 = vmatprep.subr.mxu0 0.0
    %2644 = vmatpush1.msra.mxu0 0.0
    %2645 = vmatprep.subr.mxu0 0.0
    %2646 = vmatpush1.msra.mxu0 0.0
    %2647 = vmatprep.subr.mxu0 0.0
    %2648 = vmatpush1.msra.mxu0 0.0
    %2649 = vmatprep.subr.mxu0 0.0
    %2650 = vmatpush1.msra.mxu0 0.0
    %2651 = vmatprep.subr.mxu0 0.0
    %2652 = vmatpush1.msra.mxu0 0.0
    %2653 = vmatprep.subr.mxu0 0.0
    %2654 = vmatpush1.msra.mxu0 0.0
    %2655 = vmatprep.mubr.f32.mxu0 0.0
    %2656 = vmatmul.mubr.f32.gmra.mrb[0].mxu0 %v2583
    %v2657 = vpop.f32.mrb[0].mxu0
    %v2658 = vadd.f32 %v2580, %v2657
    %v2659 = vpop.f32.mrb[0].mxu0
    %2660 = vmatprep.mubr.f32.mxu0 0.0
    %2661 = vmatmul.mubr.f32.gmra.mrb[0].mxu0 %v2586
    %v2662 = vpop.f32.mrb[0].mxu0
    %v2663 = vadd.f32 %v2580, %v2662
    %v2664 = vpop.f32.mrb[0].mxu0
    %2665 = vmatprep.mubr.f32.mxu0 0.0
    %2666 = vmatmul.mubr.f32.gmra.mrb[0].mxu0 %v2589
    %v2667 = vpop.f32.mrb[0].mxu0
    %v2668 = vadd.f32 %v2580, %v2667
    %v2669 = vpop.f32.mrb[0].mxu0
    %2670 = vdwg.mxu0
    %v2672 = vlaneseq
    %v2673 = vshrl.u32 %v2672, 7
    %v2674 = vsub.s32 0, %v2673
    %v2675 = vrot.slane %v420, %v2674
    %2677 = vmatprep.subr.mxu0 0.0
    %2678 = vmatpush1.msra.mxu0 %v433
    %2679 = vmatprep.subr.mxu0 0.0
    %2680 = vmatpush1.msra.mxu0 %v434
    %2681 = vmatprep.subr.mxu0 0.0
    %2682 = vmatpush1.msra.mxu0 %v435
    %2683 = vmatprep.subr.mxu0 0.0
    %2684 = vmatpush1.msra.mxu0 %v436
    %2685 = vmatprep.subr.mxu0 0.0
    %2686 = vmatpush1.msra.mxu0 0.0
    %2687 = vmatprep.subr.mxu0 0.0
    %2688 = vmatpush1.msra.mxu0 0.0
    %2689 = vmatprep.subr.mxu0 0.0
    %2690 = vmatpush1.msra.mxu0 0.0
    %2691 = vmatprep.subr.mxu0 0.0
    %2692 = vmatpush1.msra.mxu0 0.0
    %2693 = vmatprep.subr.mxu0 0.0
    %2694 = vmatpush1.msra.mxu0 0.0
    %2695 = vmatprep.subr.mxu0 0.0
    %2696 = vmatpush1.msra.mxu0 0.0
    %2697 = vmatprep.subr.mxu0 0.0
    %2698 = vmatpush1.msra.mxu0 0.0
    %2699 = vmatprep.subr.mxu0 0.0
    %2700 = vmatpush1.msra.mxu0 0.0
    %2701 = vmatprep.subr.mxu0 0.0
    %2702 = vmatpush1.msra.mxu0 0.0
    %2703 = vmatprep.subr.mxu0 0.0
    %2704 = vmatpush1.msra.mxu0 0.0
    %2705 = vmatprep.subr.mxu0 0.0
    %2706 = vmatpush1.msra.mxu0 0.0
    %2707 = vmatprep.subr.mxu0 0.0
    %2708 = vmatpush1.msra.mxu0 0.0
    %2709 = vmatprep.subr.mxu0 0.0
    %2710 = vmatpush1.msra.mxu0 0.0
    %2711 = vmatprep.subr.mxu0 0.0
    %2712 = vmatpush1.msra.mxu0 0.0
    %2713 = vmatprep.subr.mxu0 0.0
    %2714 = vmatpush1.msra.mxu0 0.0
    %2715 = vmatprep.subr.mxu0 0.0
    %2716 = vmatpush1.msra.mxu0 0.0
    %2717 = vmatprep.subr.mxu0 0.0
    %2718 = vmatpush1.msra.mxu0 0.0
    %2719 = vmatprep.subr.mxu0 0.0
    %2720 = vmatpush1.msra.mxu0 0.0
    %2721 = vmatprep.subr.mxu0 0.0
    %2722 = vmatpush1.msra.mxu0 0.0
    %2723 = vmatprep.subr.mxu0 0.0
    %2724 = vmatpush1.msra.mxu0 0.0
    %2725 = vmatprep.subr.mxu0 0.0
    %2726 = vmatpush1.msra.mxu0 0.0
    %2727 = vmatprep.subr.mxu0 0.0
    %2728 = vmatpush1.msra.mxu0 0.0
    %2729 = vmatprep.subr.mxu0 0.0
    %2730 = vmatpush1.msra.mxu0 0.0
    %2731 = vmatprep.subr.mxu0 0.0
    %2732 = vmatpush1.msra.mxu0 0.0
    %2733 = vmatprep.subr.mxu0 0.0
    %2734 = vmatpush1.msra.mxu0 0.0
    %2735 = vmatprep.subr.mxu0 0.0
    %2736 = vmatpush1.msra.mxu0 0.0
    %2737 = vmatprep.subr.mxu0 0.0
    %2738 = vmatpush1.msra.mxu0 0.0
    %2739 = vmatprep.subr.mxu0 0.0
    %2740 = vmatpush1.msra.mxu0 0.0
    %2741 = vmatprep.mubr.f32.mxu0 0.0
    %2742 = vmatmul.mubr.f32.gmra.mrb[0].mxu0 %v2583
    %v2743 = vpop.f32.mrb[0].mxu0
    %v2744 = vadd.f32 %v2675, %v2743
    %v2745 = vpop.f32.mrb[0].mxu0
    %2746 = vmatprep.mubr.f32.mxu0 0.0
    %2747 = vmatmul.mubr.f32.gmra.mrb[0].mxu0 %v2586
    %v2748 = vpop.f32.mrb[0].mxu0
    %v2749 = vadd.f32 %v2675, %v2748
    %v2750 = vpop.f32.mrb[0].mxu0
    %2751 = vmatprep.mubr.f32.mxu0 0.0
    %2752 = vmatmul.mubr.f32.gmra.mrb[0].mxu0 %v2589
    %v2753 = vpop.f32.mrb[0].mxu0
    %v2754 = vadd.f32 %v2675, %v2753
    %v2755 = vpop.f32.mrb[0].mxu0
    %2756 = vdwg.mxu0
    %v2758 = vsel %vm864, %v2568, 0
    %v2761 = vsel %vm864, %v2573, 0
    %v2764 = vsel %vm864, %v2658, 0
    %v2767 = vsel %vm864, %v2663, 0
    %v2770 = vsel %vm864, %v2668, 0
    %2772 = vmatprep.subr.mxu0 0.0
    %2773 = vmatpush1.xpose.msra.mxu0 %v2764
    %2774 = vmatprep.subr.mxu0 0.0
    %2775 = vmatpush1.xpose.msra.mxu0 %v2767
    %2776 = vmatprep.subr.mxu0 0.0
    %2777 = vmatpush1.xpose.msra.mxu0 %v2770
    %2778 = vmatprep.subr.mxu0 0.0
    %2779 = vmatpush1.xpose.msra.mxu0 0.0
    %2780 = vmatprep.subr.mxu0 0.0
    %2781 = vmatpush1.xpose.msra.mxu0 0.0
    %2782 = vmatprep.subr.mxu0 0.0
    %2783 = vmatpush1.xpose.msra.mxu0 0.0
    %2784 = vmatprep.subr.mxu0 0.0
    %2785 = vmatpush1.xpose.msra.mxu0 0.0
    %2786 = vmatprep.subr.mxu0 0.0
    %2787 = vmatpush1.xpose.msra.mxu0 0.0
    %2788 = vmatprep.subr.mxu0 0.0
    %2789 = vmatpush1.xpose.msra.mxu0 0.0
    %2790 = vmatprep.subr.mxu0 0.0
    %2791 = vmatpush1.xpose.msra.mxu0 0.0
    %2792 = vmatprep.subr.mxu0 0.0
    %2793 = vmatpush1.xpose.msra.mxu0 0.0
    %2794 = vmatprep.subr.mxu0 0.0
    %2795 = vmatpush1.xpose.msra.mxu0 0.0
    %2796 = vmatprep.subr.mxu0 0.0
    %2797 = vmatpush1.xpose.msra.mxu0 0.0
    %2798 = vmatprep.subr.mxu0 0.0
    %2799 = vmatpush1.xpose.msra.mxu0 0.0
    %2800 = vmatprep.subr.mxu0 0.0
    %2801 = vmatpush1.xpose.msra.mxu0 0.0
    %2802 = vmatprep.subr.mxu0 0.0
    %2803 = vmatpush1.xpose.msra.mxu0 0.0
    %2804 = vmatprep.subr.mxu0 0.0
    %2805 = vmatpush1.xpose.msra.mxu0 0.0
    %2806 = vmatprep.subr.mxu0 0.0
    %2807 = vmatpush1.xpose.msra.mxu0 0.0
    %2808 = vmatprep.subr.mxu0 0.0
    %2809 = vmatpush1.xpose.msra.mxu0 0.0
    %2810 = vmatprep.subr.mxu0 0.0
    %2811 = vmatpush1.xpose.msra.mxu0 0.0
    %2812 = vmatprep.subr.mxu0 0.0
    %2813 = vmatpush1.xpose.msra.mxu0 0.0
    %2814 = vmatprep.subr.mxu0 0.0
    %2815 = vmatpush1.xpose.msra.mxu0 0.0
    %2816 = vmatprep.subr.mxu0 0.0
    %2817 = vmatpush1.xpose.msra.mxu0 0.0
    %2818 = vmatprep.subr.mxu0 0.0
    %2819 = vmatpush1.xpose.msra.mxu0 0.0
    %2820 = vmatprep.subr.mxu0 0.0
    %2821 = vmatpush1.xpose.msra.mxu0 0.0
    %2822 = vmatprep.subr.mxu0 0.0
    %2823 = vmatpush1.xpose.msra.mxu0 0.0
    %2824 = vmatprep.subr.mxu0 0.0
    %2825 = vmatpush1.xpose.msra.mxu0 0.0
    %2826 = vmatprep.subr.mxu0 0.0
    %2827 = vmatpush1.xpose.msra.mxu0 0.0
    %2828 = vmatprep.subr.mxu0 0.0
    %2829 = vmatpush1.xpose.msra.mxu0 0.0
    %2830 = vmatprep.subr.mxu0 0.0
    %2831 = vmatpush1.xpose.msra.mxu0 0.0
    %2832 = vmatprep.subr.mxu0 0.0
    %2833 = vmatpush1.xpose.msra.mxu0 0.0
    %2834 = vmatprep.subr.mxu0 0.0
    %2835 = vmatpush1.xpose.msra.mxu0 0.0
    %2836 = vmatprep.mubr.f32.mxu0 0.0
    %2837 = vmatmul.mubr.f32.gmra.mrb[0].mxu0 %v2758
    %v2838 = vpop.f32.mrb[0].mxu0
    %v2839 = vadd.f32 0.0, %v2838
    %v2840 = vpop.f32.mrb[0].mxu0
    %2841 = vmatprep.mubr.f32.mxu0 0.0
    %2842 = vmatmul.mubr.f32.gmra.mrb[0].mxu0 %v2761
    %v2843 = vpop.f32.mrb[0].mxu0
    %v2844 = vadd.f32 0.0, %v2843
    %v2845 = vpop.f32.mrb[0].mxu0
    %2846 = vdwg.mxu0
    %v2847 = vmul.f32 %v2839, 0.17677669
    %v2848 = vmul.f32 %v2844, 0.17677669
    %v2849 = vadd.f32 %v2847, %v2487
    %v2850 = vadd.f32 %v2848, %v2488
    %v2851 = vsel %vm1230, %v2849, -inf
    %2852 = vmax.xlane.f32.xlu0 %v2851
    %v2853 = vpop.xlane.xlu0 %2852
    %v2854 = vsel %vm1237, %v2850, -inf
    %2855 = vmax.xlane.f32.xlu0 %v2854
    %v2856 = vpop.xlane.xlu0 %2855
    %v2857 = vsub.f32 %v2849, %v2853
    %v2858 = vsub.f32 %v2850, %v2856
    %v2859 = vmul.f32 %v2857, 1.442695
    %v2860 = vpow.pop %v2859
    %v2861 = vmul.f32 %v2858, 1.442695
    %v2862 = vpow.pop %v2861
    %v2863 = vsel %vm1230, %v2860, 0.0
    %2864 = vadd.xlane.f32.xlu0 %v2863
    %v2865 = vpop.xlane.xlu0 %2864
    %v2866 = vsel %vm1237, %v2862, 0.0
    %2867 = vadd.xlane.f32.xlu0 %v2866
    %v2868 = vpop.xlane.xlu0 %2867
    %v2869 = vrcp.pop %v2865
    %v2870 = vrcp.pop %v2868
    %v2871 = vmul.f32 %v2860, %v2869
    %v2872 = vmul.f32 %v2862, %v2870
    %v2874 = vsel %vm1230, %v2871, 0
    %v2877 = vsel %vm1230, %v2872, 0
    %v2880 = vsel %vm1274, %v2754, 0
    %2882 = vmatprep.subr.mxu0 0.0
    %2883 = vmatpush1.msra.mxu0 %v2744
    %2884 = vmatprep.subr.mxu0 0.0
    %2885 = vmatpush1.msra.mxu0 %v2749
    %2886 = vmatprep.subr.mxu0 0.0
    %2887 = vmatpush1.msra.mxu0 %v2880
    %2888 = vmatprep.subr.mxu0 0.0
    %2889 = vmatpush1.msra.mxu0 0.0
    %2890 = vmatprep.subr.mxu0 0.0
    %2891 = vmatpush1.msra.mxu0 0.0
    %2892 = vmatprep.subr.mxu0 0.0
    %2893 = vmatpush1.msra.mxu0 0.0
    %2894 = vmatprep.subr.mxu0 0.0
    %2895 = vmatpush1.msra.mxu0 0.0
    %2896 = vmatprep.subr.mxu0 0.0
    %2897 = vmatpush1.msra.mxu0 0.0
    %2898 = vmatprep.subr.mxu0 0.0
    %2899 = vmatpush1.msra.mxu0 0.0
    %2900 = vmatprep.subr.mxu0 0.0
    %2901 = vmatpush1.msra.mxu0 0.0
    %2902 = vmatprep.subr.mxu0 0.0
    %2903 = vmatpush1.msra.mxu0 0.0
    %2904 = vmatprep.subr.mxu0 0.0
    %2905 = vmatpush1.msra.mxu0 0.0
    %2906 = vmatprep.subr.mxu0 0.0
    %2907 = vmatpush1.msra.mxu0 0.0
    %2908 = vmatprep.subr.mxu0 0.0
    %2909 = vmatpush1.msra.mxu0 0.0
    %2910 = vmatprep.subr.mxu0 0.0
    %2911 = vmatpush1.msra.mxu0 0.0
    %2912 = vmatprep.subr.mxu0 0.0
    %2913 = vmatpush1.msra.mxu0 0.0
    %2914 = vmatprep.subr.mxu0 0.0
    %2915 = vmatpush1.msra.mxu0 0.0
    %2916 = vmatprep.subr.mxu0 0.0
    %2917 = vmatpush1.msra.mxu0 0.0
    %2918 = vmatprep.subr.mxu0 0.0
    %2919 = vmatpush1.msra.mxu0 0.0
    %2920 = vmatprep.subr.mxu0 0.0
    %2921 = vmatpush1.msra.mxu0 0.0
    %2922 = vmatprep.subr.mxu0 0.0
    %2923 = vmatpush1.msra.mxu0 0.0
    %2924 = vmatprep.subr.mxu0 0.0
    %2925 = vmatpush1.msra.mxu0 0.0
    %2926 = vmatprep.subr.mxu0 0.0
    %2927 = vmatpush1.msra.mxu0 0.0
    %2928 = vmatprep.subr.mxu0 0.0
    %2929 = vmatpush1.msra.mxu0 0.0
    %2930 = vmatprep.subr.mxu0 0.0
    %2931 = vmatpush1.msra.mxu0 0.0
    %2932 = vmatprep.subr.mxu0 0.0
    %2933 = vmatpush1.msra.mxu0 0.0
    %2934 = vmatprep.subr.mxu0 0.0
    %2935 = vmatpush1.msra.mxu0 0.0
    %2936 = vmatprep.subr.mxu0 0.0
    %2937 = vmatpush1.msra.mxu0 0.0
    %2938 = vmatprep.subr.mxu0 0.0
    %2939 = vmatpush1.msra.mxu0 0.0
    %2940 = vmatprep.subr.mxu0 0.0
    %2941 = vmatpush1.msra.mxu0 0.0
    %2942 = vmatprep.subr.mxu0 0.0
    %2943 = vmatpush1.msra.mxu0 0.0
    %2944 = vmatprep.subr.mxu0 0.0
    %2945 = vmatpush1.msra.mxu0 0.0
    %2946 = vmatprep.mubr.f32.mxu0 0.0
    %2947 = vmatmul.mubr.f32.gmra.mrb[0].mxu0 %v2874
    %v2948 = vpop.f32.mrb[0].mxu0
    %v2949 = vadd.f32 0.0, %v2948
    %v2950 = vpop.f32.mrb[0].mxu0
    %2951 = vmatprep.mubr.f32.mxu0 0.0
    %2952 = vmatmul.mubr.f32.gmra.mrb[0].mxu0 %v2877
    %v2953 = vpop.f32.mrb[0].mxu0
    %v2954 = vadd.f32 0.0, %v2953
    %v2955 = vpop.f32.mrb[0].mxu0
    %2956 = vdwg.mxu0
    %v2958 = vlaneseq
    %v2959 = vshrl.u32 %v2958, 7
    %v2960 = vsub.s32 0, %v2959
    %v2961 = vrot.slane %v418, %v2960
    %v2964 = vsel %vm864, %v2949, 0
    %v2967 = vsel %vm864, %v2954, 0
    %2969 = vmatprep.subr.mxu0 0.0
    %2970 = vmatpush1.msra.mxu0 %v425
    %2971 = vmatprep.subr.mxu0 0.0
    %2972 = vmatpush1.msra.mxu0 %v426
    %2973 = vmatprep.subr.mxu0 0.0
    %2974 = vmatpush1.msra.mxu0 %v427
    %2975 = vmatprep.subr.mxu0 0.0
    %2976 = vmatpush1.msra.mxu0 %v428
    %2977 = vmatprep.subr.mxu0 0.0
    %2978 = vmatpush1.msra.mxu0 0.0
    %2979 = vmatprep.subr.mxu0 0.0
    %2980 = vmatpush1.msra.mxu0 0.0
    %2981 = vmatprep.subr.mxu0 0.0
    %2982 = vmatpush1.msra.mxu0 0.0
    %2983 = vmatprep.subr.mxu0 0.0
    %2984 = vmatpush1.msra.mxu0 0.0
    %2985 = vmatprep.subr.mxu0 0.0
    %2986 = vmatpush1.msra.mxu0 0.0
    %2987 = vmatprep.subr.mxu0 0.0
    %2988 = vmatpush1.msra.mxu0 0.0
    %2989 = vmatprep.subr.mxu0 0.0
    %2990 = vmatpush1.msra.mxu0 0.0
    %2991 = vmatprep.subr.mxu0 0.0
    %2992 = vmatpush1.msra.mxu0 0.0
    %2993 = vmatprep.subr.mxu0 0.0
    %2994 = vmatpush1.msra.mxu0 0.0
    %2995 = vmatprep.subr.mxu0 0.0
    %2996 = vmatpush1.msra.mxu0 0.0
    %2997 = vmatprep.subr.mxu0 0.0
    %2998 = vmatpush1.msra.mxu0 0.0
    %2999 = vmatprep.subr.mxu0 0.0
    %3000 = vmatpush1.msra.mxu0 0.0
    %3001 = vmatprep.subr.mxu0 0.0
    %3002 = vmatpush1.msra.mxu0 0.0
    %3003 = vmatprep.subr.mxu0 0.0
    %3004 = vmatpush1.msra.mxu0 0.0
    %3005 = vmatprep.subr.mxu0 0.0
    %3006 = vmatpush1.msra.mxu0 0.0
    %3007 = vmatprep.subr.mxu0 0.0
    %3008 = vmatpush1.msra.mxu0 0.0
    %3009 = vmatprep.subr.mxu0 0.0
    %3010 = vmatpush1.msra.mxu0 0.0
    %3011 = vmatprep.subr.mxu0 0.0
    %3012 = vmatpush1.msra.mxu0 0.0
    %3013 = vmatprep.subr.mxu0 0.0
    %3014 = vmatpush1.msra.mxu0 0.0
    %3015 = vmatprep.subr.mxu0 0.0
    %3016 = vmatpush1.msra.mxu0 0.0
    %3017 = vmatprep.subr.mxu0 0.0
    %3018 = vmatpush1.msra.mxu0 0.0
    %3019 = vmatprep.subr.mxu0 0.0
    %3020 = vmatpush1.msra.mxu0 0.0
    %3021 = vmatprep.subr.mxu0 0.0
    %3022 = vmatpush1.msra.mxu0 0.0
    %3023 = vmatprep.subr.mxu0 0.0
    %3024 = vmatpush1.msra.mxu0 0.0
    %3025 = vmatprep.subr.mxu0 0.0
    %3026 = vmatpush1.msra.mxu0 0.0
    %3027 = vmatprep.subr.mxu0 0.0
    %3028 = vmatpush1.msra.mxu0 0.0
    %3029 = vmatprep.subr.mxu0 0.0
    %3030 = vmatpush1.msra.mxu0 0.0
    %3031 = vmatprep.subr.mxu0 0.0
    %3032 = vmatpush1.msra.mxu0 0.0
    %3033 = vmatprep.mubr.f32.mxu0 0.0
    %3034 = vmatmul.mubr.f32.gmra.mrb[0].mxu0 %v2964
    %v3035 = vpop.f32.mrb[0].mxu0
    %v3036 = vadd.f32 %v2961, %v3035
    %v3037 = vpop.f32.mrb[0].mxu0
    %3038 = vmatprep.mubr.f32.mxu0 0.0
    %3039 = vmatmul.mubr.f32.gmra.mrb[0].mxu0 %v2967
    %v3040 = vpop.f32.mrb[0].mxu0
    %v3041 = vadd.f32 %v2961, %v3040
    %v3042 = vpop.f32.mrb[0].mxu0
    %3043 = vdwg.mxu0
    %v3044 = vadd.f32 %v2478, %v3036
    %v3045 = vadd.f32 %v2479, %v3041
    %v3046 = vsel %vm864, %v3044, 0.0
    %3047 = vadd.xlane.f32.xlu0 %v3046
    %v3048 = vpop.xlane.xlu0 %3047
    %v3049 = vsel %vm1462, %v3045, 0.0
    %3050 = vadd.xlane.f32.xlu0 %v3049
    %v3051 = vpop.xlane.xlu0 %3050
    %v3052 = vmul.f32 %v3048, %v1466
    %v3053 = vmul.f32 %v3051, %v1466
    %v3054 = vsub.f32 %v3044, %v3052
    %v3055 = vsub.f32 %v3045, %v3053
    %v3056 = vmul.f32 %v3054, %v3054
    %v3057 = vmul.f32 %v3055, %v3055
    %v3058 = vsel %vm864, %v3056, 0.0
    %3059 = vadd.xlane.f32.xlu0 %v3058
    %v3060 = vpop.xlane.xlu0 %3059
    %v3061 = vsel %vm1462, %v3057, 0.0
    %3062 = vadd.xlane.f32.xlu0 %v3061
    %v3063 = vpop.xlane.xlu0 %3062
    %v3064 = vmul.f32 %v3060, %v1466
    %v3065 = vmul.f32 %v3063, %v1466
    %v3066 = vadd.f32 %v3064, 1e-05
    %v3067 = vadd.f32 %v3065, 1e-05
    %v3068 = vrsqrt.pop %v3066
    %v3069 = vrsqrt.pop %v3067
    %v3070 = vmul.f32 %v3054, %v3068
    %v3071 = vmul.f32 %v3055, %v3069
    %v3073 = vlaneseq
    %v3074 = vshrl.u32 %v3073, 7
    %v3075 = vsub.s32 0, %v3074
    %v3076 = vrot.slane %v454, %v3075
    %v3078 = vmul.f32 %v3070, %v3076
    %v3079 = vmul.f32 %v3071, %v3076
    %v3081 = vlaneseq
    %v3082 = vshrl.u32 %v3081, 7
    %v3083 = vsub.s32 0, %v3082
    %v3084 = vrot.slane %v453, %v3083
    %v3086 = vadd.f32 %v3078, %v3084
    %v3087 = vadd.f32 %v3079, %v3084
    %v3089 = vlaneseq
    %v3090 = vshrl.u32 %v3089, 7
    %v3091 = vsub.s32 0, %v3090
    %v3092 = vrot.slane %v437, %v3091
    %v3095 = vsel %vm864, %v3086, 0
    %v3098 = vsel %vm864, %v3087, 0
    %3100 = vmatprep.subr.mxu0 0.0
    %3101 = vmatpush1.msra.mxu0 %v438
    %3102 = vmatprep.subr.mxu0 0.0
    %3103 = vmatpush1.msra.mxu0 %v439
    %3104 = vmatprep.subr.mxu0 0.0
    %3105 = vmatpush1.msra.mxu0 %v440
    %3106 = vmatprep.subr.mxu0 0.0
    %3107 = vmatpush1.msra.mxu0 %v441
    %3108 = vmatprep.subr.mxu0 0.0
    %3109 = vmatpush1.msra.mxu0 0.0
    %3110 = vmatprep.subr.mxu0 0.0
    %3111 = vmatpush1.msra.mxu0 0.0
    %3112 = vmatprep.subr.mxu0 0.0
    %3113 = vmatpush1.msra.mxu0 0.0
    %3114 = vmatprep.subr.mxu0 0.0
    %3115 = vmatpush1.msra.mxu0 0.0
    %3116 = vmatprep.subr.mxu0 0.0
    %3117 = vmatpush1.msra.mxu0 0.0
    %3118 = vmatprep.subr.mxu0 0.0
    %3119 = vmatpush1.msra.mxu0 0.0
    %3120 = vmatprep.subr.mxu0 0.0
    %3121 = vmatpush1.msra.mxu0 0.0
    %3122 = vmatprep.subr.mxu0 0.0
    %3123 = vmatpush1.msra.mxu0 0.0
    %3124 = vmatprep.subr.mxu0 0.0
    %3125 = vmatpush1.msra.mxu0 0.0
    %3126 = vmatprep.subr.mxu0 0.0
    %3127 = vmatpush1.msra.mxu0 0.0
    %3128 = vmatprep.subr.mxu0 0.0
    %3129 = vmatpush1.msra.mxu0 0.0
    %3130 = vmatprep.subr.mxu0 0.0
    %3131 = vmatpush1.msra.mxu0 0.0
    %3132 = vmatprep.subr.mxu0 0.0
    %3133 = vmatpush1.msra.mxu0 0.0
    %3134 = vmatprep.subr.mxu0 0.0
    %3135 = vmatpush1.msra.mxu0 0.0
    %3136 = vmatprep.subr.mxu0 0.0
    %3137 = vmatpush1.msra.mxu0 0.0
    %3138 = vmatprep.subr.mxu0 0.0
    %3139 = vmatpush1.msra.mxu0 0.0
    %3140 = vmatprep.subr.mxu0 0.0
    %3141 = vmatpush1.msra.mxu0 0.0
    %3142 = vmatprep.subr.mxu0 0.0
    %3143 = vmatpush1.msra.mxu0 0.0
    %3144 = vmatprep.subr.mxu0 0.0
    %3145 = vmatpush1.msra.mxu0 0.0
    %3146 = vmatprep.subr.mxu0 0.0
    %3147 = vmatpush1.msra.mxu0 0.0
    %3148 = vmatprep.subr.mxu0 0.0
    %3149 = vmatpush1.msra.mxu0 0.0
    %3150 = vmatprep.subr.mxu0 0.0
    %3151 = vmatpush1.msra.mxu0 0.0
    %3152 = vmatprep.subr.mxu0 0.0
    %3153 = vmatpush1.msra.mxu0 0.0
    %3154 = vmatprep.subr.mxu0 0.0
    %3155 = vmatpush1.msra.mxu0 0.0
    %3156 = vmatprep.subr.mxu0 0.0
    %3157 = vmatpush1.msra.mxu0 0.0
    %3158 = vmatprep.subr.mxu0 0.0
    %3159 = vmatpush1.msra.mxu0 0.0
    %3160 = vmatprep.subr.mxu0 0.0
    %3161 = vmatpush1.msra.mxu0 0.0
    %3162 = vmatprep.subr.mxu0 0.0
    %3163 = vmatpush1.msra.mxu0 0.0
    %3164 = vmatprep.mubr.f32.mxu0 0.0
    %3165 = vmatmul.mubr.f32.gmra.mrb[0].mxu0 %v3095
    %v3166 = vpop.f32.mrb[0].mxu0
    %v3167 = vadd.f32 %v3092, %v3166
    %v3168 = vpop.f32.mrb[0].mxu0
    %3169 = vmatprep.mubr.f32.mxu0 0.0
    %3170 = vmatmul.mubr.f32.gmra.mrb[0].mxu0 %v3098
    %v3171 = vpop.f32.mrb[0].mxu0
    %v3172 = vadd.f32 %v3092, %v3171
    %v3173 = vpop.f32.mrb[0].mxu0
    %3174 = vdwg.mxu0
    %v3175 = vmax.f32 %v3167, 0.0
    %v3176 = vmax.f32 %v3172, 0.0
    %v3178 = vlaneseq
    %v3179 = vshrl.u32 %v3178, 7
    %v3180 = vsub.s32 0, %v3179
    %v3181 = vrot.slane %v442, %v3180
    %v3184 = vsel %vm1619, %v3175, 0
    %v3187 = vsel %vm1619, %v3176, 0
    %3189 = vmatprep.subr.mxu0 0.0
    %3190 = vmatpush1.msra.mxu0 %v443
    %3191 = vmatprep.subr.mxu0 0.0
    %3192 = vmatpush1.msra.mxu0 %v444
    %3193 = vmatprep.subr.mxu0 0.0
    %3194 = vmatpush1.msra.mxu0 %v445
    %3195 = vmatprep.subr.mxu0 0.0
    %3196 = vmatpush1.msra.mxu0 %v446
    %3197 = vmatprep.subr.mxu0 0.0
    %3198 = vmatpush1.msra.mxu0 %v447
    %3199 = vmatprep.subr.mxu0 0.0
    %3200 = vmatpush1.msra.mxu0 %v448
    %3201 = vmatprep.subr.mxu0 0.0
    %3202 = vmatpush1.msra.mxu0 %v449
    %3203 = vmatprep.subr.mxu0 0.0
    %3204 = vmatpush1.msra.mxu0 %v450
    %3205 = vmatprep.subr.mxu0 0.0
    %3206 = vmatpush1.msra.mxu0 0.0
    %3207 = vmatprep.subr.mxu0 0.0
    %3208 = vmatpush1.msra.mxu0 0.0
    %3209 = vmatprep.subr.mxu0 0.0
    %3210 = vmatpush1.msra.mxu0 0.0
    %3211 = vmatprep.subr.mxu0 0.0
    %3212 = vmatpush1.msra.mxu0 0.0
    %3213 = vmatprep.subr.mxu0 0.0
    %3214 = vmatpush1.msra.mxu0 0.0
    %3215 = vmatprep.subr.mxu0 0.0
    %3216 = vmatpush1.msra.mxu0 0.0
    %3217 = vmatprep.subr.mxu0 0.0
    %3218 = vmatpush1.msra.mxu0 0.0
    %3219 = vmatprep.subr.mxu0 0.0
    %3220 = vmatpush1.msra.mxu0 0.0
    %3221 = vmatprep.subr.mxu0 0.0
    %3222 = vmatpush1.msra.mxu0 0.0
    %3223 = vmatprep.subr.mxu0 0.0
    %3224 = vmatpush1.msra.mxu0 0.0
    %3225 = vmatprep.subr.mxu0 0.0
    %3226 = vmatpush1.msra.mxu0 0.0
    %3227 = vmatprep.subr.mxu0 0.0
    %3228 = vmatpush1.msra.mxu0 0.0
    %3229 = vmatprep.subr.mxu0 0.0
    %3230 = vmatpush1.msra.mxu0 0.0
    %3231 = vmatprep.subr.mxu0 0.0
    %3232 = vmatpush1.msra.mxu0 0.0
    %3233 = vmatprep.subr.mxu0 0.0
    %3234 = vmatpush1.msra.mxu0 0.0
    %3235 = vmatprep.subr.mxu0 0.0
    %3236 = vmatpush1.msra.mxu0 0.0
    %3237 = vmatprep.subr.mxu0 0.0
    %3238 = vmatpush1.msra.mxu0 0.0
    %3239 = vmatprep.subr.mxu0 0.0
    %3240 = vmatpush1.msra.mxu0 0.0
    %3241 = vmatprep.subr.mxu0 0.0
    %3242 = vmatpush1.msra.mxu0 0.0
    %3243 = vmatprep.subr.mxu0 0.0
    %3244 = vmatpush1.msra.mxu0 0.0
    %3245 = vmatprep.subr.mxu0 0.0
    %3246 = vmatpush1.msra.mxu0 0.0
    %3247 = vmatprep.subr.mxu0 0.0
    %3248 = vmatpush1.msra.mxu0 0.0
    %3249 = vmatprep.subr.mxu0 0.0
    %3250 = vmatpush1.msra.mxu0 0.0
    %3251 = vmatprep.subr.mxu0 0.0
    %3252 = vmatpush1.msra.mxu0 0.0
    %3253 = vmatprep.mubr.f32.mxu0 0.0
    %3254 = vmatmul.mubr.f32.gmra.mrb[0].mxu0 %v3184
    %v3255 = vpop.f32.mrb[0].mxu0
    %v3256 = vadd.f32 %v3181, %v3255
    %v3257 = vpop.f32.mrb[0].mxu0
    %3258 = vmatprep.mubr.f32.mxu0 0.0
    %3259 = vmatmul.mubr.f32.gmra.mrb[0].mxu0 %v3187
    %v3260 = vpop.f32.mrb[0].mxu0
    %v3261 = vadd.f32 %v3181, %v3260
    %v3262 = vpop.f32.mrb[0].mxu0
    %3263 = vdwg.mxu0
    %v3264 = vadd.f32 %v3086, %v3256
    %v3265 = vadd.f32 %v3087, %v3261
    %v3266 = vsel %vm864, %v3264, 0.0
    %3267 = vadd.xlane.f32.xlu0 %v3266
    %v3268 = vpop.xlane.xlu0 %3267
    %v3269 = vsel %vm1462, %v3265, 0.0
    %3270 = vadd.xlane.f32.xlu0 %v3269
    %v3271 = vpop.xlane.xlu0 %3270
    %v3272 = vmul.f32 %v3268, %v1466
    %v3273 = vmul.f32 %v3271, %v1466
    %v3274 = vsub.f32 %v3264, %v3272
    %v3275 = vsub.f32 %v3265, %v3273
    %v3276 = vmul.f32 %v3274, %v3274
    %v3277 = vmul.f32 %v3275, %v3275
    %v3278 = vsel %vm864, %v3276, 0.0
    %3279 = vadd.xlane.f32.xlu0 %v3278
    %v3280 = vpop.xlane.xlu0 %3279
    %v3281 = vsel %vm1462, %v3277, 0.0
    %3282 = vadd.xlane.f32.xlu0 %v3281
    %v3283 = vpop.xlane.xlu0 %3282
    %v3284 = vmul.f32 %v3280, %v1466
    %v3285 = vmul.f32 %v3283, %v1466
    %v3286 = vadd.f32 %v3284, 1e-05
    %v3287 = vadd.f32 %v3285, 1e-05
    %v3288 = vrsqrt.pop %v3286
    %v3289 = vrsqrt.pop %v3287
    %v3290 = vmul.f32 %v3274, %v3288
    %v3291 = vmul.f32 %v3275, %v3289
    %v3293 = vlaneseq
    %v3294 = vshrl.u32 %v3293, 7
    %v3295 = vsub.s32 0, %v3294
    %v3296 = vrot.slane %v456, %v3295
    %v3298 = vmul.f32 %v3290, %v3296
    %v3299 = vmul.f32 %v3291, %v3296
    %v3301 = vlaneseq
    %v3302 = vshrl.u32 %v3301, 7
    %v3303 = vsub.s32 0, %v3302
    %v3304 = vrot.slane %v455, %v3303
    %v3306 = vadd.f32 %v3298, %v3304
    %v3307 = vadd.f32 %v3299, %v3304
    %3308 = vst.msk [vmem:[%s129] sm:$0xff] %vm864, %v3306
    %3309 = vst.msk [vmem:[%s129 + $0x8] sm:$0x3] %vm1462, %v3307
    // Predicated region
    $region310: #{fouseformer_forward.1} parent=1 // pred_check
      _
    $region311: #{fouseformer_forward.1} parent=1 // pred_check_branch
      %3311 = sbr.rel (0) target = $region313
    $region312: #{fouseformer_forward.1} parent=1 // pred_region
      _
    $region313: #{fouseformer_forward.1} parent=1 // pred_fallthru
      _
    // Predicated region
    $region314: #{fouseformer_forward.1} parent=1 // pred_check
      _
    $region315: #{fouseformer_forward.1} parent=1 // pred_check_branch
      %3313 = sbr.rel (0) target = $region317
    $region316: #{fouseformer_forward.1} parent=1 // pred_region
      _
    $region317: #{fouseformer_forward.1} parent=1 // pred_fallthru
      _
    // Predicated region
    $region318: #{fouseformer_forward.1} parent=1 // pred_check
      _
    $region319: #{fouseformer_forward.1} parent=1 // pred_check_branch
      %3315 = sbr.rel (0) target = $region321
    $region320: #{fouseformer_forward.1} parent=1 // pred_region
      _
    $region321: #{fouseformer_forward.1} parent=1 // pred_fallthru
      _
    // Predicated region
    $region322: #{fouseformer_forward.1} parent=1 // pred_check
      _
    $region323: #{fouseformer_forward.1} parent=1 // pred_check_branch
      %3317 = sbr.rel (0) target = $region325
    $region324: #{fouseformer_forward.1} parent=1 // pred_region
      _
    $region325: #{fouseformer_forward.1} parent=1 // pred_fallthru
      _
    %3318 = vsyncpa [#allocation3], 1
    %3319 = vsyncpa [#allocation5], 1
    %3320 = vsyncpa [#allocation8], 1
    %3321 = vsyncpa [#allocation11], 1
    %3322 = vsyncpa [#allocation14], 1
    %3323 = vsyncpa [#allocation17], 1
    %3324 = vsyncpa [#allocation20], 1

</llo_original>
